<compile_context>
chip_gen: v6e
topology: v6e:2x2x1
jax: 0.10.0
libtpu: 0.0.40
codegen_flags: <defaults>
</compile_context>

<pallas_src>
import math
import functools

import jax
import jax.numpy as jnp
from jax.experimental import pallas as pl
from jax.experimental.pallas import tpu as pltpu


def dsconv_block2_kernel(x_ref,
                         lng_ref, lnb_ref,        # LayerNorm gamma/beta     (NL, 1, W)
                         dwt_ref, dwb_ref,        # depthwise taps/bias      (NL, C, K), (NL, C, 1)
                         pww_ref, pwb_ref,        # pointwise weight/bias    (NL, C, C) bf16, (NL, C, 1)
                         out_ref,
                         *, num_layers, kernel_size, eps=1e-6):
    t = x_ref[0]                                   # (C, W) float32, one batch element
    C, W = t.shape
    pad = kernel_size // 2                         # == 1 (module hard-codes padding=1)

    def shift_w(a, off):
        # s[:, w] = a[:, w + off], zero-padded at the boundary.
        if off == 0:
            return a
        z = jnp.zeros((C, abs(off)), a.dtype)
        if off < 0:
            return jnp.concatenate([z, a[:, :off]], axis=1)
        return jnp.concatenate([a[:, off:], z], axis=1)

    for l in range(num_layers):                    # static unroll over the 4 layers
        residual = t

        # ---- LayerNorm over the last axis (eps = 1e-6, as in the module) ----
        mean = jnp.mean(t, axis=-1, keepdims=True)
        cent = t - mean
        var = jnp.mean(cent * cent, axis=-1, keepdims=True)
        h = cent * jax.lax.rsqrt(var + eps) * lng_ref[l] + lnb_ref[l]      # (C, W)

        # ---- depthwise conv: 3-tap 1-D conv along W (centre kernel row only) ----
        taps = dwt_ref[l]                          # (C, K)
        dconv = taps[:, 0:1] * shift_w(h, -pad)
        for j in range(1, kernel_size):
            dconv = dconv + taps[:, j:j + 1] * shift_w(h, j - pad)
        dconv = dconv + dwb_ref[l]                 # (C, W) + (C, 1)

        # ---- pointwise 1x1 conv = channel-mixing matmul on the MXU (bf16 in, f32 acc) ----
        p = jnp.dot(pww_ref[l], dconv.astype(jnp.bfloat16),
                    preferred_element_type=jnp.float32) + pwb_ref[l]       # (C, W)

        # ---- ReLU, dropout(=identity), residual ----
        t = jnp.maximum(p, 0.0) + residual

    out_ref[0] = t


def depthwise_separable_conv_block2(x, params, *, kernel_size=3, num_layers=4):
    """x: [B, dim, dim] float32.  params: see init_params()."""
    B, C, W = x.shape
    NL = num_layers
    assert kernel_size == 3, "padding=1 in the module is shape-preserving only for kernel_size=3"
    assert params["pw_w"].shape == (NL, C, C)

    # Host-side layout plumbing: broadcast-ready, lane-dense parameter slabs.
    ln_g = params["ln_g"].reshape(NL, 1, W)
    ln_b = params["ln_b"].reshape(NL, 1, W)
    mid = kernel_size // 2
    dw_taps = params["dw_w"][:, :, 0, mid, :]              # (NL, C, K): only this row sees data
    dw_b = params["dw_b"].reshape(NL, C, 1)
    pw_w = params["pw_w"].astype(jnp.bfloat16)             # MXU operand in bf16
    pw_b = params["pw_b"].reshape(NL, C, 1)

    kernel = functools.partial(dsconv_block2_kernel,
                               num_layers=NL, kernel_size=kernel_size)

    const3 = lambda shape: pl.BlockSpec(shape, lambda b: (0, 0, 0))   # grid-invariant weights

    return pl.pallas_call(
        kernel,
        out_shape=jax.ShapeDtypeStruct((B, C, W), jnp.float32),
        grid_spec=pltpu.PrefetchScalarGridSpec(
            num_scalar_prefetch=0,
            grid=(B,),
            in_specs=[
                pl.BlockSpec((1, C, W), lambda b: (b, 0, 0)),   # x (one batch element)
                const3((NL, 1, W)),                             # LN gamma
                const3((NL, 1, W)),                             # LN beta
                const3((NL, C, kernel_size)),                   # depthwise taps
                const3((NL, C, 1)),                             # depthwise bias
                const3((NL, C, C)),                             # pointwise weight (bf16)
                const3((NL, C, 1)),                             # pointwise bias
            ],
            out_specs=pl.BlockSpec((1, C, W), lambda b: (b, 0, 0)),
        ),
        compiler_params=pltpu.CompilerParams(
            dimension_semantics=("parallel",)),
    )(x, ln_g, ln_b, dw_taps, dw_b, pw_w, pw_b)


def init_params(key, dim, kernel_size, num_layers):
    """Deterministic synthetic parameters (PyTorch-like init scales)."""
    ks = jax.random.split(key, 6)
    dw_bound = 1.0 / math.sqrt(kernel_size * kernel_size)   # depthwise fan_in = 1*k*k
    pw_bound = 1.0 / math.sqrt(dim)                          # pointwise fan_in = dim
    u = lambda k, shape, b: jax.random.uniform(k, shape, jnp.float32, minval=-b, maxval=b)
    return {
        "ln_g": 1.0 + 0.1 * jax.random.normal(ks[0], (num_layers, dim), jnp.float32),
        "ln_b": 0.05 * jax.random.normal(ks[1], (num_layers, dim), jnp.float32),
        "dw_w": u(ks[2], (num_layers, dim, 1, kernel_size, kernel_size), dw_bound),
        "dw_b": u(ks[3], (num_layers, dim), dw_bound),
        "pw_w": u(ks[4], (num_layers, dim, dim), pw_bound),   # (out, in)
        "pw_b": u(ks[5], (num_layers, dim), pw_bound),
    }


def reference_forward(x, params, *, kernel_size):
    """Pure-JAX reference mirroring the PyTorch forward (eval mode, full Conv2d)."""
    B, C, W = x.shape
    num_layers = params["pw_w"].shape[0]
    t = x[:, :, None, :]                                     # x.unsqueeze(2) -> [B, C, 1, W]
    for l in range(num_layers):
        residual = t
        mean = jnp.mean(t, axis=-1, keepdims=True)
        var = jnp.mean((t - mean) ** 2, axis=-1, keepdims=True)
        h = (t - mean) * jax.lax.rsqrt(var + 1e-6) * params["ln_g"][l] + params["ln_b"][l]
        h = jax.lax.conv_general_dilated(                    # depthwise Conv2d, padding=1
            h, params["dw_w"][l], window_strides=(1, 1), padding=((1, 1), (1, 1)),
            dimension_numbers=("NCHW", "OIHW", "NCHW"), feature_group_count=C)
        h = h + params["dw_b"][l][None, :, None, None]
        h = jnp.einsum("oc,bchw->bohw", params["pw_w"][l], h)      # pointwise 1x1 Conv2d
        h = h + params["pw_b"][l][None, :, None, None]
        h = jnp.maximum(h, 0.0)                                    # ReLU
        t = h + residual                                           # dropout = identity
    return t[:, :, 0, :]                                           # squeeze(2)


if __name__ == "__main__":
    B, DIM, K, NL = 2, 128, 3, 4
    key = jax.random.PRNGKey(0)
    kx, kp = jax.random.split(key)
    # The module requires both the channel axis and the trailing axis to equal `dim`.
    x = jax.random.normal(kx, (B, DIM, DIM), jnp.float32)
    params = init_params(kp, DIM, K, NL)

    out = depthwise_separable_conv_block2(x, params, kernel_size=K, num_layers=NL)
    out = jax.block_until_ready(out)

    ref = reference_forward(x, params, kernel_size=K)
    assert out.shape == x.shape
    max_err = float(jnp.max(jnp.abs(out - ref)))
    # Tolerance sized for bf16 MXU operands (f32 accumulation) across 4 fused layers.
    assert jnp.allclose(out, ref, atol=3e-2, rtol=3e-2), max_err

    print("KERNEL_OK")
</pallas_src>

<mosaic_0001>
module attributes {stable_mosaic.version = 11 : i64} {
  func.func @dsconv_block2_kernel(%arg0: i32, %arg1: memref<1x128x128xf32, #tpu.memory_space<vmem>>, %arg2: memref<4x1x128xf32, #tpu.memory_space<vmem>>, %arg3: memref<4x1x128xf32, #tpu.memory_space<vmem>>, %arg4: memref<4x128x3xf32, #tpu.memory_space<vmem>>, %arg5: memref<4x128x1xf32, #tpu.memory_space<vmem>>, %arg6: memref<4x128x128xbf16, #tpu.memory_space<vmem>>, %arg7: memref<4x128x1xf32, #tpu.memory_space<vmem>>, %arg8: memref<1x128x128xf32, #tpu.memory_space<vmem>>) attributes {dimension_semantics = [#tpu.dimension_semantics<parallel>], iteration_bounds = array<i64: 2>, scalar_prefetch = 0 : i64, scratch_operands = 0 : i64, tpu.core_type = #tpu.core_type<tc>, window_params = [{transform_indices = @transform_0, window_bounds = array<i64: 1, 128, 128>}, {pipeline_mode = #tpu.pipeline_mode<synchronous>, transform_indices = @transform_1, window_bounds = array<i64: 4, 1, 128>}, {pipeline_mode = #tpu.pipeline_mode<synchronous>, transform_indices = @transform_2, window_bounds = array<i64: 4, 1, 128>}, {pipeline_mode = #tpu.pipeline_mode<synchronous>, transform_indices = @transform_3, window_bounds = array<i64: 4, 128, 3>}, {pipeline_mode = #tpu.pipeline_mode<synchronous>, transform_indices = @transform_4, window_bounds = array<i64: 4, 128, 1>}, {pipeline_mode = #tpu.pipeline_mode<synchronous>, transform_indices = @transform_5, window_bounds = array<i64: 4, 128, 128>}, {pipeline_mode = #tpu.pipeline_mode<synchronous>, transform_indices = @transform_6, window_bounds = array<i64: 4, 128, 1>}, {transform_indices = @transform_7, window_bounds = array<i64: 1, 128, 128>}]} {
    %c0 = arith.constant 0 : index
    %c0_0 = arith.constant 0 : index
    %c0_1 = arith.constant 0 : index
    %0 = vector.load %arg1[%c0, %c0_0, %c0_1] : memref<1x128x128xf32, #tpu.memory_space<vmem>>, vector<1x128x128xf32>
    %1 = vector.shape_cast %0 : vector<1x128x128xf32> to vector<128x128xf32>
    %cst = arith.constant dense<0.000000e+00> : vector<128xf32>
    %2 = vector.multi_reduction <add>, %1, %cst [1] : vector<128x128xf32> to vector<128xf32>
    %3 = vector.shape_cast %2 : vector<128xf32> to vector<128x1xf32>
    %cst_2 = arith.constant 1.280000e+02 : f32
    %4 = vector.broadcast %cst_2 : f32 to vector<128x1xf32>
    %5 = arith.divf %3, %4 : vector<128x1xf32>
    %6 = vector.broadcast %5 : vector<128x1xf32> to vector<128x128xf32>
    %7 = arith.subf %1, %6 : vector<128x128xf32>
    %8 = arith.mulf %7, %7 : vector<128x128xf32>
    %cst_3 = arith.constant dense<0.000000e+00> : vector<128xf32>
    %9 = vector.multi_reduction <add>, %8, %cst_3 [1] : vector<128x128xf32> to vector<128xf32>
    %10 = vector.shape_cast %9 : vector<128xf32> to vector<128x1xf32>
    %cst_4 = arith.constant 1.280000e+02 : f32
    %11 = vector.broadcast %cst_4 : f32 to vector<128x1xf32>
    %12 = arith.divf %10, %11 : vector<128x1xf32>
    %cst_5 = arith.constant 9.99999997E-7 : f32
    %13 = vector.broadcast %cst_5 : f32 to vector<128x1xf32>
    %14 = arith.addf %12, %13 : vector<128x1xf32>
    %15 = math.rsqrt %14 : vector<128x1xf32>
    %16 = vector.broadcast %15 : vector<128x1xf32> to vector<128x128xf32>
    %17 = arith.mulf %7, %16 : vector<128x128xf32>
    %c0_6 = arith.constant 0 : index
    %c0_7 = arith.constant 0 : index
    %c0_8 = arith.constant 0 : index
    %18 = vector.load %arg2[%c0_6, %c0_7, %c0_8] : memref<4x1x128xf32, #tpu.memory_space<vmem>>, vector<1x1x128xf32>
    %19 = vector.shape_cast %18 : vector<1x1x128xf32> to vector<1x128xf32>
    %20 = vector.broadcast %19 : vector<1x128xf32> to vector<128x128xf32>
    %21 = arith.mulf %17, %20 : vector<128x128xf32>
    %c0_9 = arith.constant 0 : index
    %c0_10 = arith.constant 0 : index
    %c0_11 = arith.constant 0 : index
    %22 = vector.load %arg3[%c0_9, %c0_10, %c0_11] : memref<4x1x128xf32, #tpu.memory_space<vmem>>, vector<1x1x128xf32>
    %23 = vector.shape_cast %22 : vector<1x1x128xf32> to vector<1x128xf32>
    %24 = vector.broadcast %23 : vector<1x128xf32> to vector<128x128xf32>
    %25 = arith.addf %21, %24 : vector<128x128xf32>
    %c0_12 = arith.constant 0 : index
    %c0_13 = arith.constant 0 : index
    %c0_14 = arith.constant 0 : index
    %26 = vector.load %arg4[%c0_12, %c0_13, %c0_14] : memref<4x128x3xf32, #tpu.memory_space<vmem>>, vector<1x128x3xf32>
    %27 = vector.shape_cast %26 : vector<1x128x3xf32> to vector<128x3xf32>
    %28 = vector.extract_strided_slice %27 {offsets = [0, 0], sizes = [128, 1], strides = [1, 1]} : vector<128x3xf32> to vector<128x1xf32>
    %cst_15 = arith.constant 0.000000e+00 : f32
    %29 = vector.broadcast %cst_15 : f32 to vector<128x1xf32>
    %30 = vector.extract_strided_slice %25 {offsets = [0, 0], sizes = [128, 127], strides = [1, 1]} : vector<128x128xf32> to vector<128x127xf32>
    %31 = tpu.concatenate %29, %30 in 1 : vector<128x1xf32>, vector<128x127xf32> -> vector<128x128xf32>
    %32 = vector.broadcast %28 : vector<128x1xf32> to vector<128x128xf32>
    %33 = arith.mulf %32, %31 : vector<128x128xf32>
    %34 = vector.extract_strided_slice %27 {offsets = [0, 1], sizes = [128, 1], strides = [1, 1]} : vector<128x3xf32> to vector<128x1xf32>
    %35 = vector.broadcast %34 : vector<128x1xf32> to vector<128x128xf32>
    %36 = arith.mulf %35, %25 : vector<128x128xf32>
    %37 = arith.addf %33, %36 : vector<128x128xf32>
    %38 = vector.extract_strided_slice %27 {offsets = [0, 2], sizes = [128, 1], strides = [1, 1]} : vector<128x3xf32> to vector<128x1xf32>
    %cst_16 = arith.constant 0.000000e+00 : f32
    %39 = vector.broadcast %cst_16 : f32 to vector<128x1xf32>
    %40 = vector.extract_strided_slice %25 {offsets = [0, 1], sizes = [128, 127], strides = [1, 1]} : vector<128x128xf32> to vector<128x127xf32>
    %41 = tpu.concatenate %40, %39 in 1 : vector<128x127xf32>, vector<128x1xf32> -> vector<128x128xf32>
    %42 = vector.broadcast %38 : vector<128x1xf32> to vector<128x128xf32>
    %43 = arith.mulf %42, %41 : vector<128x128xf32>
    %44 = arith.addf %37, %43 : vector<128x128xf32>
    %c0_17 = arith.constant 0 : index
    %c0_18 = arith.constant 0 : index
    %c0_19 = arith.constant 0 : index
    %45 = vector.load %arg5[%c0_17, %c0_18, %c0_19] : memref<4x128x1xf32, #tpu.memory_space<vmem>>, vector<1x128x1xf32>
    %46 = vector.shape_cast %45 : vector<1x128x1xf32> to vector<128x1xf32>
    %47 = vector.broadcast %46 : vector<128x1xf32> to vector<128x128xf32>
    %48 = arith.addf %44, %47 : vector<128x128xf32>
    %c0_20 = arith.constant 0 : index
    %c0_21 = arith.constant 0 : index
    %c0_22 = arith.constant 0 : index
    %49 = vector.load %arg6[%c0_20, %c0_21, %c0_22] : memref<4x128x128xbf16, #tpu.memory_space<vmem>>, vector<1x128x128xbf16>
    %50 = vector.shape_cast %49 : vector<1x128x128xbf16> to vector<128x128xbf16>
    %51 = arith.truncf %48 : vector<128x128xf32> to vector<128x128xbf16>
    %cst_23 = arith.constant dense<0.000000e+00> : vector<128x128xf32>
    %52 = tpu.matmul %50, %51, %cst_23 {dimension_numbers = #tpu.dot_dimension_numbers<[1], [0], [0], [1], [0, 0, 1, 1], [], []>} : vector<128x128xbf16>, vector<128x128xbf16>, vector<128x128xf32> -> vector<128x128xf32>
    %c0_24 = arith.constant 0 : index
    %c0_25 = arith.constant 0 : index
    %c0_26 = arith.constant 0 : index
    %53 = vector.load %arg7[%c0_24, %c0_25, %c0_26] : memref<4x128x1xf32, #tpu.memory_space<vmem>>, vector<1x128x1xf32>
    %54 = vector.shape_cast %53 : vector<1x128x1xf32> to vector<128x1xf32>
    %55 = vector.broadcast %54 : vector<128x1xf32> to vector<128x128xf32>
    %56 = arith.addf %52, %55 : vector<128x128xf32>
    %cst_27 = arith.constant 0.000000e+00 : f32
    %57 = vector.broadcast %cst_27 : f32 to vector<128x128xf32>
    %58 = arith.maximumf %56, %57 : vector<128x128xf32>
    %59 = arith.addf %58, %1 : vector<128x128xf32>
    %cst_28 = arith.constant dense<0.000000e+00> : vector<128xf32>
    %60 = vector.multi_reduction <add>, %59, %cst_28 [1] : vector<128x128xf32> to vector<128xf32>
    %61 = vector.shape_cast %60 : vector<128xf32> to vector<128x1xf32>
    %cst_29 = arith.constant 1.280000e+02 : f32
    %62 = vector.broadcast %cst_29 : f32 to vector<128x1xf32>
    %63 = arith.divf %61, %62 : vector<128x1xf32>
    %64 = vector.broadcast %63 : vector<128x1xf32> to vector<128x128xf32>
    %65 = arith.subf %59, %64 : vector<128x128xf32>
    %66 = arith.mulf %65, %65 : vector<128x128xf32>
    %cst_30 = arith.constant dense<0.000000e+00> : vector<128xf32>
    %67 = vector.multi_reduction <add>, %66, %cst_30 [1] : vector<128x128xf32> to vector<128xf32>
    %68 = vector.shape_cast %67 : vector<128xf32> to vector<128x1xf32>
    %cst_31 = arith.constant 1.280000e+02 : f32
    %69 = vector.broadcast %cst_31 : f32 to vector<128x1xf32>
    %70 = arith.divf %68, %69 : vector<128x1xf32>
    %cst_32 = arith.constant 9.99999997E-7 : f32
    %71 = vector.broadcast %cst_32 : f32 to vector<128x1xf32>
    %72 = arith.addf %70, %71 : vector<128x1xf32>
    %73 = math.rsqrt %72 : vector<128x1xf32>
    %74 = vector.broadcast %73 : vector<128x1xf32> to vector<128x128xf32>
    %75 = arith.mulf %65, %74 : vector<128x128xf32>
    %c1 = arith.constant 1 : index
    %c0_33 = arith.constant 0 : index
    %c0_34 = arith.constant 0 : index
    %76 = vector.load %arg2[%c1, %c0_33, %c0_34] : memref<4x1x128xf32, #tpu.memory_space<vmem>>, vector<1x1x128xf32>
    %77 = vector.shape_cast %76 : vector<1x1x128xf32> to vector<1x128xf32>
    %78 = vector.broadcast %77 : vector<1x128xf32> to vector<128x128xf32>
    %79 = arith.mulf %75, %78 : vector<128x128xf32>
    %c1_35 = arith.constant 1 : index
    %c0_36 = arith.constant 0 : index
    %c0_37 = arith.constant 0 : index
    %80 = vector.load %arg3[%c1_35, %c0_36, %c0_37] : memref<4x1x128xf32, #tpu.memory_space<vmem>>, vector<1x1x128xf32>
    %81 = vector.shape_cast %80 : vector<1x1x128xf32> to vector<1x128xf32>
    %82 = vector.broadcast %81 : vector<1x128xf32> to vector<128x128xf32>
    %83 = arith.addf %79, %82 : vector<128x128xf32>
    %c1_38 = arith.constant 1 : index
    %c0_39 = arith.constant 0 : index
    %c0_40 = arith.constant 0 : index
    %84 = vector.load %arg4[%c1_38, %c0_39, %c0_40] : memref<4x128x3xf32, #tpu.memory_space<vmem>>, vector<1x128x3xf32>
    %85 = vector.shape_cast %84 : vector<1x128x3xf32> to vector<128x3xf32>
    %86 = vector.extract_strided_slice %85 {offsets = [0, 0], sizes = [128, 1], strides = [1, 1]} : vector<128x3xf32> to vector<128x1xf32>
    %cst_41 = arith.constant 0.000000e+00 : f32
    %87 = vector.broadcast %cst_41 : f32 to vector<128x1xf32>
    %88 = vector.extract_strided_slice %83 {offsets = [0, 0], sizes = [128, 127], strides = [1, 1]} : vector<128x128xf32> to vector<128x127xf32>
    %89 = tpu.concatenate %87, %88 in 1 : vector<128x1xf32>, vector<128x127xf32> -> vector<128x128xf32>
    %90 = vector.broadcast %86 : vector<128x1xf32> to vector<128x128xf32>
    %91 = arith.mulf %90, %89 : vector<128x128xf32>
    %92 = vector.extract_strided_slice %85 {offsets = [0, 1], sizes = [128, 1], strides = [1, 1]} : vector<128x3xf32> to vector<128x1xf32>
    %93 = vector.broadcast %92 : vector<128x1xf32> to vector<128x128xf32>
    %94 = arith.mulf %93, %83 : vector<128x128xf32>
    %95 = arith.addf %91, %94 : vector<128x128xf32>
    %96 = vector.extract_strided_slice %85 {offsets = [0, 2], sizes = [128, 1], strides = [1, 1]} : vector<128x3xf32> to vector<128x1xf32>
    %cst_42 = arith.constant 0.000000e+00 : f32
    %97 = vector.broadcast %cst_42 : f32 to vector<128x1xf32>
    %98 = vector.extract_strided_slice %83 {offsets = [0, 1], sizes = [128, 127], strides = [1, 1]} : vector<128x128xf32> to vector<128x127xf32>
    %99 = tpu.concatenate %98, %97 in 1 : vector<128x127xf32>, vector<128x1xf32> -> vector<128x128xf32>
    %100 = vector.broadcast %96 : vector<128x1xf32> to vector<128x128xf32>
    %101 = arith.mulf %100, %99 : vector<128x128xf32>
    %102 = arith.addf %95, %101 : vector<128x128xf32>
    %c1_43 = arith.constant 1 : index
    %c0_44 = arith.constant 0 : index
    %c0_45 = arith.constant 0 : index
    %103 = vector.load %arg5[%c1_43, %c0_44, %c0_45] : memref<4x128x1xf32, #tpu.memory_space<vmem>>, vector<1x128x1xf32>
    %104 = vector.shape_cast %103 : vector<1x128x1xf32> to vector<128x1xf32>
    %105 = vector.broadcast %104 : vector<128x1xf32> to vector<128x128xf32>
    %106 = arith.addf %102, %105 : vector<128x128xf32>
    %c1_46 = arith.constant 1 : index
    %c0_47 = arith.constant 0 : index
    %c0_48 = arith.constant 0 : index
    %107 = vector.load %arg6[%c1_46, %c0_47, %c0_48] : memref<4x128x128xbf16, #tpu.memory_space<vmem>>, vector<1x128x128xbf16>
    %108 = vector.shape_cast %107 : vector<1x128x128xbf16> to vector<128x128xbf16>
    %109 = arith.truncf %106 : vector<128x128xf32> to vector<128x128xbf16>
    %cst_49 = arith.constant dense<0.000000e+00> : vector<128x128xf32>
    %110 = tpu.matmul %108, %109, %cst_49 {dimension_numbers = #tpu.dot_dimension_numbers<[1], [0], [0], [1], [0, 0, 1, 1], [], []>} : vector<128x128xbf16>, vector<128x128xbf16>, vector<128x128xf32> -> vector<128x128xf32>
    %c1_50 = arith.constant 1 : index
    %c0_51 = arith.constant 0 : index
    %c0_52 = arith.constant 0 : index
    %111 = vector.load %arg7[%c1_50, %c0_51, %c0_52] : memref<4x128x1xf32, #tpu.memory_space<vmem>>, vector<1x128x1xf32>
    %112 = vector.shape_cast %111 : vector<1x128x1xf32> to vector<128x1xf32>
    %113 = vector.broadcast %112 : vector<128x1xf32> to vector<128x128xf32>
    %114 = arith.addf %110, %113 : vector<128x128xf32>
    %cst_53 = arith.constant 0.000000e+00 : f32
    %115 = vector.broadcast %cst_53 : f32 to vector<128x128xf32>
    %116 = arith.maximumf %114, %115 : vector<128x128xf32>
    %117 = arith.addf %116, %59 : vector<128x128xf32>
    %cst_54 = arith.constant dense<0.000000e+00> : vector<128xf32>
    %118 = vector.multi_reduction <add>, %117, %cst_54 [1] : vector<128x128xf32> to vector<128xf32>
    %119 = vector.shape_cast %118 : vector<128xf32> to vector<128x1xf32>
    %cst_55 = arith.constant 1.280000e+02 : f32
    %120 = vector.broadcast %cst_55 : f32 to vector<128x1xf32>
    %121 = arith.divf %119, %120 : vector<128x1xf32>
    %122 = vector.broadcast %121 : vector<128x1xf32> to vector<128x128xf32>
    %123 = arith.subf %117, %122 : vector<128x128xf32>
    %124 = arith.mulf %123, %123 : vector<128x128xf32>
    %cst_56 = arith.constant dense<0.000000e+00> : vector<128xf32>
    %125 = vector.multi_reduction <add>, %124, %cst_56 [1] : vector<128x128xf32> to vector<128xf32>
    %126 = vector.shape_cast %125 : vector<128xf32> to vector<128x1xf32>
    %cst_57 = arith.constant 1.280000e+02 : f32
    %127 = vector.broadcast %cst_57 : f32 to vector<128x1xf32>
    %128 = arith.divf %126, %127 : vector<128x1xf32>
    %cst_58 = arith.constant 9.99999997E-7 : f32
    %129 = vector.broadcast %cst_58 : f32 to vector<128x1xf32>
    %130 = arith.addf %128, %129 : vector<128x1xf32>
    %131 = math.rsqrt %130 : vector<128x1xf32>
    %132 = vector.broadcast %131 : vector<128x1xf32> to vector<128x128xf32>
    %133 = arith.mulf %123, %132 : vector<128x128xf32>
    %c2 = arith.constant 2 : index
    %c0_59 = arith.constant 0 : index
    %c0_60 = arith.constant 0 : index
    %134 = vector.load %arg2[%c2, %c0_59, %c0_60] : memref<4x1x128xf32, #tpu.memory_space<vmem>>, vector<1x1x128xf32>
    %135 = vector.shape_cast %134 : vector<1x1x128xf32> to vector<1x128xf32>
    %136 = vector.broadcast %135 : vector<1x128xf32> to vector<128x128xf32>
    %137 = arith.mulf %133, %136 : vector<128x128xf32>
    %c2_61 = arith.constant 2 : index
    %c0_62 = arith.constant 0 : index
    %c0_63 = arith.constant 0 : index
    %138 = vector.load %arg3[%c2_61, %c0_62, %c0_63] : memref<4x1x128xf32, #tpu.memory_space<vmem>>, vector<1x1x128xf32>
    %139 = vector.shape_cast %138 : vector<1x1x128xf32> to vector<1x128xf32>
    %140 = vector.broadcast %139 : vector<1x128xf32> to vector<128x128xf32>
    %141 = arith.addf %137, %140 : vector<128x128xf32>
    %c2_64 = arith.constant 2 : index
    %c0_65 = arith.constant 0 : index
    %c0_66 = arith.constant 0 : index
    %142 = vector.load %arg4[%c2_64, %c0_65, %c0_66] : memref<4x128x3xf32, #tpu.memory_space<vmem>>, vector<1x128x3xf32>
    %143 = vector.shape_cast %142 : vector<1x128x3xf32> to vector<128x3xf32>
    %144 = vector.extract_strided_slice %143 {offsets = [0, 0], sizes = [128, 1], strides = [1, 1]} : vector<128x3xf32> to vector<128x1xf32>
    %cst_67 = arith.constant 0.000000e+00 : f32
    %145 = vector.broadcast %cst_67 : f32 to vector<128x1xf32>
    %146 = vector.extract_strided_slice %141 {offsets = [0, 0], sizes = [128, 127], strides = [1, 1]} : vector<128x128xf32> to vector<128x127xf32>
    %147 = tpu.concatenate %145, %146 in 1 : vector<128x1xf32>, vector<128x127xf32> -> vector<128x128xf32>
    %148 = vector.broadcast %144 : vector<128x1xf32> to vector<128x128xf32>
    %149 = arith.mulf %148, %147 : vector<128x128xf32>
    %150 = vector.extract_strided_slice %143 {offsets = [0, 1], sizes = [128, 1], strides = [1, 1]} : vector<128x3xf32> to vector<128x1xf32>
    %151 = vector.broadcast %150 : vector<128x1xf32> to vector<128x128xf32>
    %152 = arith.mulf %151, %141 : vector<128x128xf32>
    %153 = arith.addf %149, %152 : vector<128x128xf32>
    %154 = vector.extract_strided_slice %143 {offsets = [0, 2], sizes = [128, 1], strides = [1, 1]} : vector<128x3xf32> to vector<128x1xf32>
    %cst_68 = arith.constant 0.000000e+00 : f32
    %155 = vector.broadcast %cst_68 : f32 to vector<128x1xf32>
    %156 = vector.extract_strided_slice %141 {offsets = [0, 1], sizes = [128, 127], strides = [1, 1]} : vector<128x128xf32> to vector<128x127xf32>
    %157 = tpu.concatenate %156, %155 in 1 : vector<128x127xf32>, vector<128x1xf32> -> vector<128x128xf32>
    %158 = vector.broadcast %154 : vector<128x1xf32> to vector<128x128xf32>
    %159 = arith.mulf %158, %157 : vector<128x128xf32>
    %160 = arith.addf %153, %159 : vector<128x128xf32>
    %c2_69 = arith.constant 2 : index
    %c0_70 = arith.constant 0 : index
    %c0_71 = arith.constant 0 : index
    %161 = vector.load %arg5[%c2_69, %c0_70, %c0_71] : memref<4x128x1xf32, #tpu.memory_space<vmem>>, vector<1x128x1xf32>
    %162 = vector.shape_cast %161 : vector<1x128x1xf32> to vector<128x1xf32>
    %163 = vector.broadcast %162 : vector<128x1xf32> to vector<128x128xf32>
    %164 = arith.addf %160, %163 : vector<128x128xf32>
    %c2_72 = arith.constant 2 : index
    %c0_73 = arith.constant 0 : index
    %c0_74 = arith.constant 0 : index
    %165 = vector.load %arg6[%c2_72, %c0_73, %c0_74] : memref<4x128x128xbf16, #tpu.memory_space<vmem>>, vector<1x128x128xbf16>
    %166 = vector.shape_cast %165 : vector<1x128x128xbf16> to vector<128x128xbf16>
    %167 = arith.truncf %164 : vector<128x128xf32> to vector<128x128xbf16>
    %cst_75 = arith.constant dense<0.000000e+00> : vector<128x128xf32>
    %168 = tpu.matmul %166, %167, %cst_75 {dimension_numbers = #tpu.dot_dimension_numbers<[1], [0], [0], [1], [0, 0, 1, 1], [], []>} : vector<128x128xbf16>, vector<128x128xbf16>, vector<128x128xf32> -> vector<128x128xf32>
    %c2_76 = arith.constant 2 : index
    %c0_77 = arith.constant 0 : index
    %c0_78 = arith.constant 0 : index
    %169 = vector.load %arg7[%c2_76, %c0_77, %c0_78] : memref<4x128x1xf32, #tpu.memory_space<vmem>>, vector<1x128x1xf32>
    %170 = vector.shape_cast %169 : vector<1x128x1xf32> to vector<128x1xf32>
    %171 = vector.broadcast %170 : vector<128x1xf32> to vector<128x128xf32>
    %172 = arith.addf %168, %171 : vector<128x128xf32>
    %cst_79 = arith.constant 0.000000e+00 : f32
    %173 = vector.broadcast %cst_79 : f32 to vector<128x128xf32>
    %174 = arith.maximumf %172, %173 : vector<128x128xf32>
    %175 = arith.addf %174, %117 : vector<128x128xf32>
    %cst_80 = arith.constant dense<0.000000e+00> : vector<128xf32>
    %176 = vector.multi_reduction <add>, %175, %cst_80 [1] : vector<128x128xf32> to vector<128xf32>
    %177 = vector.shape_cast %176 : vector<128xf32> to vector<128x1xf32>
    %cst_81 = arith.constant 1.280000e+02 : f32
    %178 = vector.broadcast %cst_81 : f32 to vector<128x1xf32>
    %179 = arith.divf %177, %178 : vector<128x1xf32>
    %180 = vector.broadcast %179 : vector<128x1xf32> to vector<128x128xf32>
    %181 = arith.subf %175, %180 : vector<128x128xf32>
    %182 = arith.mulf %181, %181 : vector<128x128xf32>
    %cst_82 = arith.constant dense<0.000000e+00> : vector<128xf32>
    %183 = vector.multi_reduction <add>, %182, %cst_82 [1] : vector<128x128xf32> to vector<128xf32>
    %184 = vector.shape_cast %183 : vector<128xf32> to vector<128x1xf32>
    %cst_83 = arith.constant 1.280000e+02 : f32
    %185 = vector.broadcast %cst_83 : f32 to vector<128x1xf32>
    %186 = arith.divf %184, %185 : vector<128x1xf32>
    %cst_84 = arith.constant 9.99999997E-7 : f32
    %187 = vector.broadcast %cst_84 : f32 to vector<128x1xf32>
    %188 = arith.addf %186, %187 : vector<128x1xf32>
    %189 = math.rsqrt %188 : vector<128x1xf32>
    %190 = vector.broadcast %189 : vector<128x1xf32> to vector<128x128xf32>
    %191 = arith.mulf %181, %190 : vector<128x128xf32>
    %c3 = arith.constant 3 : index
    %c0_85 = arith.constant 0 : index
    %c0_86 = arith.constant 0 : index
    %192 = vector.load %arg2[%c3, %c0_85, %c0_86] : memref<4x1x128xf32, #tpu.memory_space<vmem>>, vector<1x1x128xf32>
    %193 = vector.shape_cast %192 : vector<1x1x128xf32> to vector<1x128xf32>
    %194 = vector.broadcast %193 : vector<1x128xf32> to vector<128x128xf32>
    %195 = arith.mulf %191, %194 : vector<128x128xf32>
    %c3_87 = arith.constant 3 : index
    %c0_88 = arith.constant 0 : index
    %c0_89 = arith.constant 0 : index
    %196 = vector.load %arg3[%c3_87, %c0_88, %c0_89] : memref<4x1x128xf32, #tpu.memory_space<vmem>>, vector<1x1x128xf32>
    %197 = vector.shape_cast %196 : vector<1x1x128xf32> to vector<1x128xf32>
    %198 = vector.broadcast %197 : vector<1x128xf32> to vector<128x128xf32>
    %199 = arith.addf %195, %198 : vector<128x128xf32>
    %c3_90 = arith.constant 3 : index
    %c0_91 = arith.constant 0 : index
    %c0_92 = arith.constant 0 : index
    %200 = vector.load %arg4[%c3_90, %c0_91, %c0_92] : memref<4x128x3xf32, #tpu.memory_space<vmem>>, vector<1x128x3xf32>
    %201 = vector.shape_cast %200 : vector<1x128x3xf32> to vector<128x3xf32>
    %202 = vector.extract_strided_slice %201 {offsets = [0, 0], sizes = [128, 1], strides = [1, 1]} : vector<128x3xf32> to vector<128x1xf32>
    %cst_93 = arith.constant 0.000000e+00 : f32
    %203 = vector.broadcast %cst_93 : f32 to vector<128x1xf32>
    %204 = vector.extract_strided_slice %199 {offsets = [0, 0], sizes = [128, 127], strides = [1, 1]} : vector<128x128xf32> to vector<128x127xf32>
    %205 = tpu.concatenate %203, %204 in 1 : vector<128x1xf32>, vector<128x127xf32> -> vector<128x128xf32>
    %206 = vector.broadcast %202 : vector<128x1xf32> to vector<128x128xf32>
    %207 = arith.mulf %206, %205 : vector<128x128xf32>
    %208 = vector.extract_strided_slice %201 {offsets = [0, 1], sizes = [128, 1], strides = [1, 1]} : vector<128x3xf32> to vector<128x1xf32>
    %209 = vector.broadcast %208 : vector<128x1xf32> to vector<128x128xf32>
    %210 = arith.mulf %209, %199 : vector<128x128xf32>
    %211 = arith.addf %207, %210 : vector<128x128xf32>
    %212 = vector.extract_strided_slice %201 {offsets = [0, 2], sizes = [128, 1], strides = [1, 1]} : vector<128x3xf32> to vector<128x1xf32>
    %cst_94 = arith.constant 0.000000e+00 : f32
    %213 = vector.broadcast %cst_94 : f32 to vector<128x1xf32>
    %214 = vector.extract_strided_slice %199 {offsets = [0, 1], sizes = [128, 127], strides = [1, 1]} : vector<128x128xf32> to vector<128x127xf32>
    %215 = tpu.concatenate %214, %213 in 1 : vector<128x127xf32>, vector<128x1xf32> -> vector<128x128xf32>
    %216 = vector.broadcast %212 : vector<128x1xf32> to vector<128x128xf32>
    %217 = arith.mulf %216, %215 : vector<128x128xf32>
    %218 = arith.addf %211, %217 : vector<128x128xf32>
    %c3_95 = arith.constant 3 : index
    %c0_96 = arith.constant 0 : index
    %c0_97 = arith.constant 0 : index
    %219 = vector.load %arg5[%c3_95, %c0_96, %c0_97] : memref<4x128x1xf32, #tpu.memory_space<vmem>>, vector<1x128x1xf32>
    %220 = vector.shape_cast %219 : vector<1x128x1xf32> to vector<128x1xf32>
    %221 = vector.broadcast %220 : vector<128x1xf32> to vector<128x128xf32>
    %222 = arith.addf %218, %221 : vector<128x128xf32>
    %c3_98 = arith.constant 3 : index
    %c0_99 = arith.constant 0 : index
    %c0_100 = arith.constant 0 : index
    %223 = vector.load %arg6[%c3_98, %c0_99, %c0_100] : memref<4x128x128xbf16, #tpu.memory_space<vmem>>, vector<1x128x128xbf16>
    %224 = vector.shape_cast %223 : vector<1x128x128xbf16> to vector<128x128xbf16>
    %225 = arith.truncf %222 : vector<128x128xf32> to vector<128x128xbf16>
    %cst_101 = arith.constant dense<0.000000e+00> : vector<128x128xf32>
    %226 = tpu.matmul %224, %225, %cst_101 {dimension_numbers = #tpu.dot_dimension_numbers<[1], [0], [0], [1], [0, 0, 1, 1], [], []>} : vector<128x128xbf16>, vector<128x128xbf16>, vector<128x128xf32> -> vector<128x128xf32>
    %c3_102 = arith.constant 3 : index
    %c0_103 = arith.constant 0 : index
    %c0_104 = arith.constant 0 : index
    %227 = vector.load %arg7[%c3_102, %c0_103, %c0_104] : memref<4x128x1xf32, #tpu.memory_space<vmem>>, vector<1x128x1xf32>
    %228 = vector.shape_cast %227 : vector<1x128x1xf32> to vector<128x1xf32>
    %229 = vector.broadcast %228 : vector<128x1xf32> to vector<128x128xf32>
    %230 = arith.addf %226, %229 : vector<128x128xf32>
    %cst_105 = arith.constant 0.000000e+00 : f32
    %231 = vector.broadcast %cst_105 : f32 to vector<128x128xf32>
    %232 = arith.maximumf %230, %231 : vector<128x128xf32>
    %233 = arith.addf %232, %175 : vector<128x128xf32>
    %c0_106 = arith.constant 0 : index
    %c0_107 = arith.constant 0 : index
    %c0_108 = arith.constant 0 : index
    %234 = vector.load %arg8[%c0_106, %c0_107, %c0_108] : memref<1x128x128xf32, #tpu.memory_space<vmem>>, vector<1x128x128xf32>
    %235 = vector.shape_cast %234 : vector<1x128x128xf32> to vector<128x128xf32>
    %236 = vector.shape_cast %233 : vector<128x128xf32> to vector<1x128x128xf32>
    tpu.vector_store %arg8[%c0_106, %c0_107, %c0_108], %236 {strides = array<i32>} : memref<1x128x128xf32, #tpu.memory_space<vmem>>, vector<1x128x128xf32>,
    return
  }
  func.func @transform_0(%arg0: i32) -> (i32, i32, i32) {
    %c0_i32 = arith.constant 0 : i32
    %c0_i32_0 = arith.constant 0 : i32
    %c0_i32_1 = arith.constant 0 : i32
    return %arg0, %c0_i32, %c0_i32_0 : i32, i32, i32
  }
  func.func @transform_1(%arg0: i32) -> (i32, i32, i32) {
    %c0_i32 = arith.constant 0 : i32
    %c0_i32_0 = arith.constant 0 : i32
    %c0_i32_1 = arith.constant 0 : i32
    %c0_i32_2 = arith.constant 0 : i32
    return %c0_i32, %c0_i32_0, %c0_i32_1 : i32, i32, i32
  }
  func.func @transform_2(%arg0: i32) -> (i32, i32, i32) {
    %c0_i32 = arith.constant 0 : i32
    %c0_i32_0 = arith.constant 0 : i32
    %c0_i32_1 = arith.constant 0 : i32
    %c0_i32_2 = arith.constant 0 : i32
    return %c0_i32, %c0_i32_0, %c0_i32_1 : i32, i32, i32
  }
  func.func @transform_3(%arg0: i32) -> (i32, i32, i32) {
    %c0_i32 = arith.constant 0 : i32
    %c0_i32_0 = arith.constant 0 : i32
    %c0_i32_1 = arith.constant 0 : i32
    %c0_i32_2 = arith.constant 0 : i32
    return %c0_i32, %c0_i32_0, %c0_i32_1 : i32, i32, i32
  }
  func.func @transform_4(%arg0: i32) -> (i32, i32, i32) {
    %c0_i32 = arith.constant 0 : i32
    %c0_i32_0 = arith.constant 0 : i32
    %c0_i32_1 = arith.constant 0 : i32
    %c0_i32_2 = arith.constant 0 : i32
    return %c0_i32, %c0_i32_0, %c0_i32_1 : i32, i32, i32
  }
  func.func @transform_5(%arg0: i32) -> (i32, i32, i32) {
    %c0_i32 = arith.constant 0 : i32
    %c0_i32_0 = arith.constant 0 : i32
    %c0_i32_1 = arith.constant 0 : i32
    %c0_i32_2 = arith.constant 0 : i32
    return %c0_i32, %c0_i32_0, %c0_i32_1 : i32, i32, i32
  }
  func.func @transform_6(%arg0: i32) -> (i32, i32, i32) {
    %c0_i32 = arith.constant 0 : i32
    %c0_i32_0 = arith.constant 0 : i32
    %c0_i32_1 = arith.constant 0 : i32
    %c0_i32_2 = arith.constant 0 : i32
    return %c0_i32, %c0_i32_0, %c0_i32_1 : i32, i32, i32
  }
  func.func @transform_7(%arg0: i32) -> (i32, i32, i32) {
    %c0_i32 = arith.constant 0 : i32
    %c0_i32_0 = arith.constant 0 : i32
    %c0_i32_1 = arith.constant 0 : i32
    return %arg0, %c0_i32, %c0_i32_0 : i32, i32, i32
  }
}

</mosaic_0001>

<llo_original>
// kernel: tpu_custom_call.1
$region0: #{tpu_custom_call.1}
  #allocation0 [shape = 'u32[]', space=smem, size = 0x4, offset = 0x4, fixed_abs, tag = 'smem constant byte address 0x4 - core index']
  #allocation1 [shape = 'u32[144,128]{1,0:T(1,128)}', space=vmem, size = 0x12000, scoped, tag = 'internal scratch']
  %s0 = inlined_call_operand.vmem [shape: f32[2,128,128], index: 0, kind: input, shape index: {}]
  %s1 = inlined_call_operand.vmem [shape: f32[4,1,128], index: 1, kind: input, shape index: {}]
  %s2 = inlined_call_operand.vmem [shape: f32[4,1,128], index: 2, kind: input, shape index: {}]
  %s3 = inlined_call_operand.vmem [shape: f32[4,128,3], index: 3, kind: input, shape index: {}]
  %s4 = inlined_call_operand.vmem [shape: f32[4,128,1], index: 4, kind: input, shape index: {}]
  %s5 = inlined_call_operand.vmem [shape: bf16[4,128,128], index: 5, kind: input, shape index: {}]
  %s6 = inlined_call_operand.vmem [shape: f32[4,128,1], index: 6, kind: input, shape index: {}]
  %s7 = inlined_call_operand.hbm [shape: f32[2,128,128], index: 7, kind: output, shape index: {}]
  %s8 = sld [smem:[#allocation0]]
  $region61: #{tpu_custom_call.1} parent=0
    _
  %s10 = ssub.s32 1, %s8
  %s11 = scalar_select 0, %s10, %s8
  $region1: #{tpu_custom_call.1} parent=0
    #allocation2 [shape = 'u8[131072]{0}', space=vmem, size = 0x20000, scoped, tag = 'output window, operand 0']
    #allocation3 [shape = 's32[2]{0}', space=sflag, size = 0x8, scoped, tag = 'scoped memory for tpu_custom_call.1']
    %12 = vsyncpa [#allocation3], 0
    %s13 = scalar_lea.sflag [#allocation3], 1
    %14 = vsyncpa %s13, 0
    loop: start=0, step=1, limit=4
    $region2: #{tpu_custom_call.1} parent=1 // loop_pre_header
      _
    $region3: #{tpu_custom_call.1} parent=1 // loop_header
      %s16 = sphi 0, %s20
      %p17 = scmp.ge.s32.totalorder %s16, 4
      %s26 = sphi 0, %s28
      %s29 = sphi 0, %s26
      %s30 = sphi 0, %s29
      %s46 = sphi 0, %s30
      %s50 = sphi 0, %s50
      %s52 = sphi 0, %s50
      %s53 = sphi 0, %s52
      %s67 = sphi 0, %s53
      %s71 = sphi 0, %s71
      %s73 = sphi 0, %s71
      %s74 = sphi 0, %s73
      %s88 = sphi 0, %s74
      %s92 = sphi 0, %s92
      %s94 = sphi 0, %s92
      %s95 = sphi 0, %s94
      %s109 = sphi 0, %s95
      %s113 = sphi 0, %s113
      %s115 = sphi 0, %s113
      %s116 = sphi 0, %s115
      %s130 = sphi 0, %s116
      %s134 = sphi 0, %s134
      %s136 = sphi 0, %s134
      %s137 = sphi 0, %s136
      %s151 = sphi 0, %s137
      %s155 = sphi 0, %s155
      %s157 = sphi 0, %s155
      %s158 = sphi 0, %s157
      %s172 = sphi 0, %s158
      %s178 = sphi 0, %s180
      %s181 = sphi 0, %s178
      %s182 = sphi 0, %s181
      %s198 = sphi 0, %s182
    $region4: #{tpu_custom_call.1} parent=1 // loop_header_branch
      %19 = sbr.rel (%p17) target = $region8
    $region5: #{tpu_custom_call.1} parent=1 // loop_body
      %s21 = ssub.s32 %s16, 1
      %s22 = ssub.s32 %s16, 2
      %s23 = sadd.s32 %s16, 1
      %s24 = ssub.s32 %s16, %s23
      %p25 = scmp.eq.s32.totalorder %s24, 0
      %s27 = sadd.s32 %s26, 1
      %s28 = scalar_select %p25, %s26, %s27
      %p31 = pneg %p25
      %p32 = scmp.eq.s32.totalorder %s16, 1
      %p33 = por %p31, %p32
      %p34 = scmp.ne.s32.totalorder %s26, %s29
      %p35 = scmp.eq.s32.totalorder %s16, 0
      %p36 = por %p34, %p35
      %p37 = scmp.ne.s32.totalorder %s26, %s29
      %p38 = scmp.eq.s32.totalorder %s21, 1
      %p39 = por %p37, %p38
      %p40 = scmp.ne.s32.totalorder %s29, %s30
      %p41 = scmp.eq.s32.totalorder %s21, 0
      %p42 = por %p40, %p41
      %p43 = scmp.ne.s32.totalorder %s29, %s30
      %p44 = scmp.eq.s32.totalorder %s22, 1
      %p45 = por %p43, %p44
      %p47 = scmp.ne.s32.totalorder %s30, %s46
      %p48 = scmp.eq.s32.totalorder %s22, 0
      %p49 = por %p47, %p48
      %s51 = sadd.s32 %s50, 1
      %p54 = scmp.eq.s32.totalorder %s16, 1
      %p55 = scmp.ne.s32.totalorder %s50, %s52
      %p56 = scmp.eq.s32.totalorder %s16, 0
      %p57 = por %p55, %p56
      %p58 = scmp.ne.s32.totalorder %s50, %s52
      %p59 = scmp.eq.s32.totalorder %s21, 1
      %p60 = por %p58, %p59
      %p61 = scmp.ne.s32.totalorder %s52, %s53
      %p62 = scmp.eq.s32.totalorder %s21, 0
      %p63 = por %p61, %p62
      %p64 = scmp.ne.s32.totalorder %s52, %s53
      %p65 = scmp.eq.s32.totalorder %s22, 1
      %p66 = por %p64, %p65
      %p68 = scmp.ne.s32.totalorder %s53, %s67
      %p69 = scmp.eq.s32.totalorder %s22, 0
      %p70 = por %p68, %p69
      %s72 = sadd.s32 %s71, 1
      %p75 = scmp.eq.s32.totalorder %s16, 1
      %p76 = scmp.ne.s32.totalorder %s71, %s73
      %p77 = scmp.eq.s32.totalorder %s16, 0
      %p78 = por %p76, %p77
      %p79 = scmp.ne.s32.totalorder %s71, %s73
      %p80 = scmp.eq.s32.totalorder %s21, 1
      %p81 = por %p79, %p80
      %p82 = scmp.ne.s32.totalorder %s73, %s74
      %p83 = scmp.eq.s32.totalorder %s21, 0
      %p84 = por %p82, %p83
      %p85 = scmp.ne.s32.totalorder %s73, %s74
      %p86 = scmp.eq.s32.totalorder %s22, 1
      %p87 = por %p85, %p86
      %p89 = scmp.ne.s32.totalorder %s74, %s88
      %p90 = scmp.eq.s32.totalorder %s22, 0
      %p91 = por %p89, %p90
      %s93 = sadd.s32 %s92, 1
      %p96 = scmp.eq.s32.totalorder %s16, 1
      %p97 = scmp.ne.s32.totalorder %s92, %s94
      %p98 = scmp.eq.s32.totalorder %s16, 0
      %p99 = por %p97, %p98
      %p100 = scmp.ne.s32.totalorder %s92, %s94
      %p101 = scmp.eq.s32.totalorder %s21, 1
      %p102 = por %p100, %p101
      %p103 = scmp.ne.s32.totalorder %s94, %s95
      %p104 = scmp.eq.s32.totalorder %s21, 0
      %p105 = por %p103, %p104
      %p106 = scmp.ne.s32.totalorder %s94, %s95
      %p107 = scmp.eq.s32.totalorder %s22, 1
      %p108 = por %p106, %p107
      %p110 = scmp.ne.s32.totalorder %s95, %s109
      %p111 = scmp.eq.s32.totalorder %s22, 0
      %p112 = por %p110, %p111
      %s114 = sadd.s32 %s113, 1
      %p117 = scmp.eq.s32.totalorder %s16, 1
      %p118 = scmp.ne.s32.totalorder %s113, %s115
      %p119 = scmp.eq.s32.totalorder %s16, 0
      %p120 = por %p118, %p119
      %p121 = scmp.ne.s32.totalorder %s113, %s115
      %p122 = scmp.eq.s32.totalorder %s21, 1
      %p123 = por %p121, %p122
      %p124 = scmp.ne.s32.totalorder %s115, %s116
      %p125 = scmp.eq.s32.totalorder %s21, 0
      %p126 = por %p124, %p125
      %p127 = scmp.ne.s32.totalorder %s115, %s116
      %p128 = scmp.eq.s32.totalorder %s22, 1
      %p129 = por %p127, %p128
      %p131 = scmp.ne.s32.totalorder %s116, %s130
      %p132 = scmp.eq.s32.totalorder %s22, 0
      %p133 = por %p131, %p132
      %s135 = sadd.s32 %s134, 1
      %p138 = scmp.eq.s32.totalorder %s16, 1
      %p139 = scmp.ne.s32.totalorder %s134, %s136
      %p140 = scmp.eq.s32.totalorder %s16, 0
      %p141 = por %p139, %p140
      %p142 = scmp.ne.s32.totalorder %s134, %s136
      %p143 = scmp.eq.s32.totalorder %s21, 1
      %p144 = por %p142, %p143
      %p145 = scmp.ne.s32.totalorder %s136, %s137
      %p146 = scmp.eq.s32.totalorder %s21, 0
      %p147 = por %p145, %p146
      %p148 = scmp.ne.s32.totalorder %s136, %s137
      %p149 = scmp.eq.s32.totalorder %s22, 1
      %p150 = por %p148, %p149
      %p152 = scmp.ne.s32.totalorder %s137, %s151
      %p153 = scmp.eq.s32.totalorder %s22, 0
      %p154 = por %p152, %p153
      %s156 = sadd.s32 %s155, 1
      %p159 = scmp.eq.s32.totalorder %s16, 1
      %p160 = scmp.ne.s32.totalorder %s155, %s157
      %p161 = scmp.eq.s32.totalorder %s16, 0
      %p162 = por %p160, %p161
      %p163 = scmp.ne.s32.totalorder %s155, %s157
      %p164 = scmp.eq.s32.totalorder %s21, 1
      %p165 = por %p163, %p164
      %p166 = scmp.ne.s32.totalorder %s157, %s158
      %p167 = scmp.eq.s32.totalorder %s21, 0
      %p168 = por %p166, %p167
      %p169 = scmp.ne.s32.totalorder %s157, %s158
      %p170 = scmp.eq.s32.totalorder %s22, 1
      %p171 = por %p169, %p170
      %p173 = scmp.ne.s32.totalorder %s158, %s172
      %p174 = scmp.eq.s32.totalorder %s22, 0
      %p175 = por %p173, %p174
      %s176 = ssub.s32 %s16, %s23
      %p177 = scmp.eq.s32.totalorder %s176, 0
      %s179 = sadd.s32 %s178, 1
      %s180 = scalar_select %p177, %s178, %s179
      %p183 = pneg %p177
      %p184 = scmp.eq.s32.totalorder %s16, 1
      %p185 = por %p183, %p184
      %p186 = scmp.ne.s32.totalorder %s178, %s181
      %p187 = scmp.eq.s32.totalorder %s16, 0
      %p188 = por %p186, %p187
      %p189 = scmp.ne.s32.totalorder %s178, %s181
      %p190 = scmp.eq.s32.totalorder %s21, 1
      %p191 = por %p189, %p190
      %p192 = scmp.ne.s32.totalorder %s181, %s182
      %p193 = scmp.eq.s32.totalorder %s21, 0
      %p194 = por %p192, %p193
      %p195 = scmp.ne.s32.totalorder %s181, %s182
      %p196 = scmp.eq.s32.totalorder %s22, 1
      %p197 = por %p195, %p196
      %p199 = scmp.ne.s32.totalorder %s182, %s198
      %p200 = scmp.eq.s32.totalorder %s22, 0
      %p201 = por %p199, %p200
      %p202 = scmp.le.s32.totalorder 1, %s16
      %p203 = scmp.lt.s32.totalorder %s16, 3
      %p204 = pnand %p202, %p203
      %p205 = pneg %p204
      // Predicated region
      $region9: #{tpu_custom_call.1} parent=5 // pred_check
        _
      $region10: #{tpu_custom_call.1} parent=5 // pred_check_branch
        %207 = sbr.rel (%p204) target = $region12
      $region11: #{tpu_custom_call.1} parent=5 // pred_region
        %s208 = ssub.s32 %s16, 1
        // Predicated region
        $region13: #{tpu_custom_call.1} parent=11 // pred_check
          %p209 = pneg %p63
        $region14: #{tpu_custom_call.1} parent=11 // pred_check_branch
          %211 = sbr.rel (%p209) target = $region16
        $region15: #{tpu_custom_call.1} parent=11 // pred_region
          _
        $region16: #{tpu_custom_call.1} parent=11 // pred_fallthru
          _
        // Predicated region
        $region17: #{tpu_custom_call.1} parent=11 // pred_check
          %p212 = pneg %p84
        $region18: #{tpu_custom_call.1} parent=11 // pred_check_branch
          %214 = sbr.rel (%p212) target = $region20
        $region19: #{tpu_custom_call.1} parent=11 // pred_region
          _
        $region20: #{tpu_custom_call.1} parent=11 // pred_fallthru
          _
        // Predicated region
        $region21: #{tpu_custom_call.1} parent=11 // pred_check
          %p215 = pneg %p105
        $region22: #{tpu_custom_call.1} parent=11 // pred_check_branch
          %217 = sbr.rel (%p215) target = $region24
        $region23: #{tpu_custom_call.1} parent=11 // pred_region
          _
        $region24: #{tpu_custom_call.1} parent=11 // pred_fallthru
          _
        // Predicated region
        $region25: #{tpu_custom_call.1} parent=11 // pred_check
          %p218 = pneg %p126
        $region26: #{tpu_custom_call.1} parent=11 // pred_check_branch
          %220 = sbr.rel (%p218) target = $region28
        $region27: #{tpu_custom_call.1} parent=11 // pred_region
          _
        $region28: #{tpu_custom_call.1} parent=11 // pred_fallthru
          _
        // Predicated region
        $region29: #{tpu_custom_call.1} parent=11 // pred_check
          %p221 = pneg %p147
        $region30: #{tpu_custom_call.1} parent=11 // pred_check_branch
          %223 = sbr.rel (%p221) target = $region32
        $region31: #{tpu_custom_call.1} parent=11 // pred_region
          _
        $region32: #{tpu_custom_call.1} parent=11 // pred_fallthru
          _
        // Predicated region
        $region33: #{tpu_custom_call.1} parent=11 // pred_check
          %p224 = pneg %p168
        $region34: #{tpu_custom_call.1} parent=11 // pred_check_branch
          %226 = sbr.rel (%p224) target = $region36
        $region35: #{tpu_custom_call.1} parent=11 // pred_region
          _
        $region36: #{tpu_custom_call.1} parent=11 // pred_fallthru
          _
      $region12: #{tpu_custom_call.1} parent=5 // pred_fallthru
        _
      %p227 = scmp.lt.s32.totalorder %s16, 2
      // Predicated region
      $region37: #{tpu_custom_call.1} parent=5 // pred_check
        %p228 = pneg %p227
      $region38: #{tpu_custom_call.1} parent=5 // pred_check_branch
        %230 = sbr.rel (%p228) target = $region40
      $region39: #{tpu_custom_call.1} parent=5 // pred_region
        // Predicated region
        $region41: #{tpu_custom_call.1} parent=39 // pred_check
          %p231 = pneg %p36
        $region42: #{tpu_custom_call.1} parent=39 // pred_check_branch
          %233 = sbr.rel (%p231) target = $region44
        $region43: #{tpu_custom_call.1} parent=39 // pred_region
          %p234 = scmp.lt.s32.totalorder %s16, 1
          %s235 = scalar_select %p234, %s16, 1
          %s236 = smul.addr %s235, 16
          %s237 = smul.addr %s236, 8
          %s238 = scalar_lea.vmem %s0, %s237
        $region44: #{tpu_custom_call.1} parent=39 // pred_fallthru
          _
      $region40: #{tpu_custom_call.1} parent=5 // pred_fallthru
        _
      %p239 = scmp.le.s32.totalorder 1, %s16
      %p240 = scmp.lt.s32.totalorder %s16, 3
      %p241 = pnand %p239, %p240
      %p242 = pneg %p241
      // Predicated region
      $region45: #{tpu_custom_call.1} parent=5 // pred_check
        _
      $region46: #{tpu_custom_call.1} parent=5 // pred_check_branch
        %244 = sbr.rel (%p241) target = $region48
      $region47: #{tpu_custom_call.1} parent=5 // pred_region
        %s245 = ssub.s32 %s16, 1
        %p246 = scmp.lt.s32.totalorder %s21, 1
        %s247 = scalar_select %p246, %s21, 1
        %s248 = smul.addr %s247, 16
        %s249 = smul.addr %s248, 8
        %s250 = scalar_lea.vmem %s0, %s249
        %p251 = pneg %p42
        %p252 = pneg %p39
        %p253 = pneg %p63
        %p254 = pneg %p60
        %p255 = pneg %p84
        %p256 = pneg %p81
        %p257 = pneg %p105
        %p258 = pneg %p102
        %p259 = pneg %p126
        %p260 = pneg %p123
        %p261 = pneg %p147
        %p262 = pneg %p144
        %p263 = pneg %p168
        %p264 = pneg %p165
        %p265 = pneg %p194
        %p266 = pneg %p191
        %s267 = sand.u32 %s181, 1
        %s268 = scalar_lea.sflag [#allocation3], %s267
        %s269 = sand.u32 %s181, 1
        %s270 = smul.addr %s269, 128
        %s271 = scalar_lea.vmem [#allocation2], %s270
        %p272 = scmp.lt.s32.totalorder %s21, 1
        %s273 = scalar_select %p272, %s21, 1
        %s274 = smul.addr %s273, 16
        %s275 = smul.addr %s274, 8
        %s276 = scalar_lea.vmem %s0, %s275
        %v278 = vld [vmem:[%s276] sm:$0xff]
        %v279 = vld [vmem:[%s276 + $0x8] sm:$0xff]
        %v280 = vld [vmem:[%s276 + $0x10] sm:$0xff]
        %v281 = vld [vmem:[%s276 + $0x18] sm:$0xff]
        %v282 = vld [vmem:[%s276 + $0x20] sm:$0xff]
        %v283 = vld [vmem:[%s276 + $0x28] sm:$0xff]
        %v284 = vld [vmem:[%s276 + $0x30] sm:$0xff]
        %v285 = vld [vmem:[%s276 + $0x38] sm:$0xff]
        %v286 = vld [vmem:[%s276 + $0x40] sm:$0xff]
        %v287 = vld [vmem:[%s276 + $0x48] sm:$0xff]
        %v288 = vld [vmem:[%s276 + $0x50] sm:$0xff]
        %v289 = vld [vmem:[%s276 + $0x58] sm:$0xff]
        %v290 = vld [vmem:[%s276 + $0x60] sm:$0xff]
        %v291 = vld [vmem:[%s276 + $0x68] sm:$0xff]
        %v292 = vld [vmem:[%s276 + $0x70] sm:$0xff]
        %v293 = vld [vmem:[%s276 + $0x78] sm:$0xff]
        %294 = vadd.xlane.f32.xlu0 %v278
        %v295 = vpop.xlane.xlu0 %294
        %296 = vadd.xlane.f32.xlu0 %v279
        %v297 = vpop.xlane.xlu0 %296
        %298 = vadd.xlane.f32.xlu0 %v280
        %v299 = vpop.xlane.xlu0 %298
        %300 = vadd.xlane.f32.xlu0 %v281
        %v301 = vpop.xlane.xlu0 %300
        %302 = vadd.xlane.f32.xlu0 %v282
        %v303 = vpop.xlane.xlu0 %302
        %304 = vadd.xlane.f32.xlu0 %v283
        %v305 = vpop.xlane.xlu0 %304
        %306 = vadd.xlane.f32.xlu0 %v284
        %v307 = vpop.xlane.xlu0 %306
        %308 = vadd.xlane.f32.xlu0 %v285
        %v309 = vpop.xlane.xlu0 %308
        %310 = vadd.xlane.f32.xlu0 %v286
        %v311 = vpop.xlane.xlu0 %310
        %312 = vadd.xlane.f32.xlu0 %v287
        %v313 = vpop.xlane.xlu0 %312
        %314 = vadd.xlane.f32.xlu0 %v288
        %v315 = vpop.xlane.xlu0 %314
        %316 = vadd.xlane.f32.xlu0 %v289
        %v317 = vpop.xlane.xlu0 %316
        %318 = vadd.xlane.f32.xlu0 %v290
        %v319 = vpop.xlane.xlu0 %318
        %320 = vadd.xlane.f32.xlu0 %v291
        %v321 = vpop.xlane.xlu0 %320
        %322 = vadd.xlane.f32.xlu0 %v292
        %v323 = vpop.xlane.xlu0 %322
        %324 = vadd.xlane.f32.xlu0 %v293
        %v325 = vpop.xlane.xlu0 %324
        %v326 = vrcp.pop 128.0
        %v327 = vmul.f32 %v295, %v326
        %v328 = vmul.f32 %v297, %v326
        %v329 = vmul.f32 %v299, %v326
        %v330 = vmul.f32 %v301, %v326
        %v331 = vmul.f32 %v303, %v326
        %v332 = vmul.f32 %v305, %v326
        %v333 = vmul.f32 %v307, %v326
        %v334 = vmul.f32 %v309, %v326
        %v335 = vmul.f32 %v311, %v326
        %v336 = vmul.f32 %v313, %v326
        %v337 = vmul.f32 %v315, %v326
        %v338 = vmul.f32 %v317, %v326
        %v339 = vmul.f32 %v319, %v326
        %v340 = vmul.f32 %v321, %v326
        %v341 = vmul.f32 %v323, %v326
        %v342 = vmul.f32 %v325, %v326
        %v343 = vsub.f32 %v278, %v327
        %v344 = vsub.f32 %v279, %v328
        %v345 = vsub.f32 %v280, %v329
        %v346 = vsub.f32 %v281, %v330
        %v347 = vsub.f32 %v282, %v331
        %v348 = vsub.f32 %v283, %v332
        %v349 = vsub.f32 %v284, %v333
        %v350 = vsub.f32 %v285, %v334
        %v351 = vsub.f32 %v286, %v335
        %v352 = vsub.f32 %v287, %v336
        %v353 = vsub.f32 %v288, %v337
        %v354 = vsub.f32 %v289, %v338
        %v355 = vsub.f32 %v290, %v339
        %v356 = vsub.f32 %v291, %v340
        %v357 = vsub.f32 %v292, %v341
        %v358 = vsub.f32 %v293, %v342
        %v359 = vmul.f32 %v343, %v343
        %v360 = vmul.f32 %v344, %v344
        %v361 = vmul.f32 %v345, %v345
        %v362 = vmul.f32 %v346, %v346
        %v363 = vmul.f32 %v347, %v347
        %v364 = vmul.f32 %v348, %v348
        %v365 = vmul.f32 %v349, %v349
        %v366 = vmul.f32 %v350, %v350
        %v367 = vmul.f32 %v351, %v351
        %v368 = vmul.f32 %v352, %v352
        %v369 = vmul.f32 %v353, %v353
        %v370 = vmul.f32 %v354, %v354
        %v371 = vmul.f32 %v355, %v355
        %v372 = vmul.f32 %v356, %v356
        %v373 = vmul.f32 %v357, %v357
        %v374 = vmul.f32 %v358, %v358
        %375 = vadd.xlane.f32.xlu0 %v359
        %v376 = vpop.xlane.xlu0 %375
        %377 = vadd.xlane.f32.xlu0 %v360
        %v378 = vpop.xlane.xlu0 %377
        %379 = vadd.xlane.f32.xlu0 %v361
        %v380 = vpop.xlane.xlu0 %379
        %381 = vadd.xlane.f32.xlu0 %v362
        %v382 = vpop.xlane.xlu0 %381
        %383 = vadd.xlane.f32.xlu0 %v363
        %v384 = vpop.xlane.xlu0 %383
        %385 = vadd.xlane.f32.xlu0 %v364
        %v386 = vpop.xlane.xlu0 %385
        %387 = vadd.xlane.f32.xlu0 %v365
        %v388 = vpop.xlane.xlu0 %387
        %389 = vadd.xlane.f32.xlu0 %v366
        %v390 = vpop.xlane.xlu0 %389
        %391 = vadd.xlane.f32.xlu0 %v367
        %v392 = vpop.xlane.xlu0 %391
        %393 = vadd.xlane.f32.xlu0 %v368
        %v394 = vpop.xlane.xlu0 %393
        %395 = vadd.xlane.f32.xlu0 %v369
        %v396 = vpop.xlane.xlu0 %395
        %397 = vadd.xlane.f32.xlu0 %v370
        %v398 = vpop.xlane.xlu0 %397
        %399 = vadd.xlane.f32.xlu0 %v371
        %v400 = vpop.xlane.xlu0 %399
        %401 = vadd.xlane.f32.xlu0 %v372
        %v402 = vpop.xlane.xlu0 %401
        %403 = vadd.xlane.f32.xlu0 %v373
        %v404 = vpop.xlane.xlu0 %403
        %405 = vadd.xlane.f32.xlu0 %v374
        %v406 = vpop.xlane.xlu0 %405
        %v407 = vmul.f32 %v376, %v326
        %v408 = vmul.f32 %v378, %v326
        %v409 = vmul.f32 %v380, %v326
        %v410 = vmul.f32 %v382, %v326
        %v411 = vmul.f32 %v384, %v326
        %v412 = vmul.f32 %v386, %v326
        %v413 = vmul.f32 %v388, %v326
        %v414 = vmul.f32 %v390, %v326
        %v415 = vmul.f32 %v392, %v326
        %v416 = vmul.f32 %v394, %v326
        %v417 = vmul.f32 %v396, %v326
        %v418 = vmul.f32 %v398, %v326
        %v419 = vmul.f32 %v400, %v326
        %v420 = vmul.f32 %v402, %v326
        %v421 = vmul.f32 %v404, %v326
        %v422 = vmul.f32 %v406, %v326
        %v423 = vadd.f32 %v407, 1e-06
        %v424 = vadd.f32 %v408, 1e-06
        %v425 = vadd.f32 %v409, 1e-06
        %v426 = vadd.f32 %v410, 1e-06
        %v427 = vadd.f32 %v411, 1e-06
        %v428 = vadd.f32 %v412, 1e-06
        %v429 = vadd.f32 %v413, 1e-06
        %v430 = vadd.f32 %v414, 1e-06
        %v431 = vadd.f32 %v415, 1e-06
        %v432 = vadd.f32 %v416, 1e-06
        %v433 = vadd.f32 %v417, 1e-06
        %v434 = vadd.f32 %v418, 1e-06
        %v435 = vadd.f32 %v419, 1e-06
        %v436 = vadd.f32 %v420, 1e-06
        %v437 = vadd.f32 %v421, 1e-06
        %v438 = vadd.f32 %v422, 1e-06
        %v439 = vrsqrt.pop %v423
        %v440 = vrsqrt.pop %v424
        %v441 = vrsqrt.pop %v425
        %v442 = vrsqrt.pop %v426
        %v443 = vrsqrt.pop %v427
        %v444 = vrsqrt.pop %v428
        %v445 = vrsqrt.pop %v429
        %v446 = vrsqrt.pop %v430
        %v447 = vrsqrt.pop %v431
        %v448 = vrsqrt.pop %v432
        %v449 = vrsqrt.pop %v433
        %v450 = vrsqrt.pop %v434
        %v451 = vrsqrt.pop %v435
        %v452 = vrsqrt.pop %v436
        %v453 = vrsqrt.pop %v437
        %v454 = vrsqrt.pop %v438
        %v455 = vmul.f32 %v343, %v439
        %v456 = vmul.f32 %v344, %v440
        %v457 = vmul.f32 %v345, %v441
        %v458 = vmul.f32 %v346, %v442
        %v459 = vmul.f32 %v347, %v443
        %v460 = vmul.f32 %v348, %v444
        %v461 = vmul.f32 %v349, %v445
        %v462 = vmul.f32 %v350, %v446
        %v463 = vmul.f32 %v351, %v447
        %v464 = vmul.f32 %v352, %v448
        %v465 = vmul.f32 %v353, %v449
        %v466 = vmul.f32 %v354, %v450
        %v467 = vmul.f32 %v355, %v451
        %v468 = vmul.f32 %v356, %v452
        %v469 = vmul.f32 %v357, %v453
        %v470 = vmul.f32 %v358, %v454
        %v471 = vld [vmem:[%s1] sm:$0x1]
        %v473 = vlaneseq
        %v474 = vshrl.u32 %v473, 7
        %v475 = vsub.s32 0, %v474
        %v476 = vrot.slane %v471, %v475
        %v478 = vmul.f32 %v455, %v476
        %v479 = vmul.f32 %v456, %v476
        %v480 = vmul.f32 %v457, %v476
        %v481 = vmul.f32 %v458, %v476
        %v482 = vmul.f32 %v459, %v476
        %v483 = vmul.f32 %v460, %v476
        %v484 = vmul.f32 %v461, %v476
        %v485 = vmul.f32 %v462, %v476
        %v486 = vmul.f32 %v463, %v476
        %v487 = vmul.f32 %v464, %v476
        %v488 = vmul.f32 %v465, %v476
        %v489 = vmul.f32 %v466, %v476
        %v490 = vmul.f32 %v467, %v476
        %v491 = vmul.f32 %v468, %v476
        %v492 = vmul.f32 %v469, %v476
        %v493 = vmul.f32 %v470, %v476
        %v494 = vld [vmem:[%s2] sm:$0x1]
        %v496 = vlaneseq
        %v497 = vshrl.u32 %v496, 7
        %v498 = vsub.s32 0, %v497
        %v499 = vrot.slane %v494, %v498
        %v501 = vadd.f32 %v478, %v499
        %v502 = vadd.f32 %v479, %v499
        %v503 = vadd.f32 %v480, %v499
        %v504 = vadd.f32 %v481, %v499
        %v505 = vadd.f32 %v482, %v499
        %v506 = vadd.f32 %v483, %v499
        %v507 = vadd.f32 %v484, %v499
        %v508 = vadd.f32 %v485, %v499
        %v509 = vadd.f32 %v486, %v499
        %v510 = vadd.f32 %v487, %v499
        %v511 = vadd.f32 %v488, %v499
        %v512 = vadd.f32 %v489, %v499
        %v513 = vadd.f32 %v490, %v499
        %v514 = vadd.f32 %v491, %v499
        %v515 = vadd.f32 %v492, %v499
        %v516 = vadd.f32 %v493, %v499
        %v517 = vld [vmem:[%s3] sm:$0xff]
        %v518 = vld [vmem:[%s3 + $0x8] sm:$0xff]
        %v519 = vld [vmem:[%s3 + $0x10] sm:$0xff]
        %v520 = vld [vmem:[%s3 + $0x18] sm:$0xff]
        %v521 = vld [vmem:[%s3 + $0x20] sm:$0xff]
        %v522 = vld [vmem:[%s3 + $0x28] sm:$0xff]
        %v523 = vld [vmem:[%s3 + $0x30] sm:$0xff]
        %v524 = vld [vmem:[%s3 + $0x38] sm:$0xff]
        %v525 = vld [vmem:[%s3 + $0x40] sm:$0xff]
        %v526 = vld [vmem:[%s3 + $0x48] sm:$0xff]
        %v527 = vld [vmem:[%s3 + $0x50] sm:$0xff]
        %v528 = vld [vmem:[%s3 + $0x58] sm:$0xff]
        %v529 = vld [vmem:[%s3 + $0x60] sm:$0xff]
        %v530 = vld [vmem:[%s3 + $0x68] sm:$0xff]
        %v531 = vld [vmem:[%s3 + $0x70] sm:$0xff]
        %v532 = vld [vmem:[%s3 + $0x78] sm:$0xff]
        %549 = vrot.lane.b32.xlu0 %v501, 1
        %v550 = vpop.permute.xlu0 %549
        %551 = vrot.lane.b32.xlu0 %v502, 1
        %v552 = vpop.permute.xlu0 %551
        %553 = vrot.lane.b32.xlu0 %v503, 1
        %v554 = vpop.permute.xlu0 %553
        %555 = vrot.lane.b32.xlu0 %v504, 1
        %v556 = vpop.permute.xlu0 %555
        %557 = vrot.lane.b32.xlu0 %v505, 1
        %v558 = vpop.permute.xlu0 %557
        %559 = vrot.lane.b32.xlu0 %v506, 1
        %v560 = vpop.permute.xlu0 %559
        %561 = vrot.lane.b32.xlu0 %v507, 1
        %v562 = vpop.permute.xlu0 %561
        %563 = vrot.lane.b32.xlu0 %v508, 1
        %v564 = vpop.permute.xlu0 %563
        %565 = vrot.lane.b32.xlu0 %v509, 1
        %v566 = vpop.permute.xlu0 %565
        %567 = vrot.lane.b32.xlu0 %v510, 1
        %v568 = vpop.permute.xlu0 %567
        %569 = vrot.lane.b32.xlu0 %v511, 1
        %v570 = vpop.permute.xlu0 %569
        %571 = vrot.lane.b32.xlu0 %v512, 1
        %v572 = vpop.permute.xlu0 %571
        %573 = vrot.lane.b32.xlu0 %v513, 1
        %v574 = vpop.permute.xlu0 %573
        %575 = vrot.lane.b32.xlu0 %v514, 1
        %v576 = vpop.permute.xlu0 %575
        %577 = vrot.lane.b32.xlu0 %v515, 1
        %v578 = vpop.permute.xlu0 %577
        %579 = vrot.lane.b32.xlu0 %v516, 1
        %v580 = vpop.permute.xlu0 %579
        %vm597 = vcmask 7168
        %v598 = vsel %vm597, 0.0, %v550
        %v599 = vsel %vm597, 0.0, %v552
        %v600 = vsel %vm597, 0.0, %v554
        %v601 = vsel %vm597, 0.0, %v556
        %v602 = vsel %vm597, 0.0, %v558
        %v603 = vsel %vm597, 0.0, %v560
        %v604 = vsel %vm597, 0.0, %v562
        %v605 = vsel %vm597, 0.0, %v564
        %v606 = vsel %vm597, 0.0, %v566
        %v607 = vsel %vm597, 0.0, %v568
        %v608 = vsel %vm597, 0.0, %v570
        %v609 = vsel %vm597, 0.0, %v572
        %v610 = vsel %vm597, 0.0, %v574
        %v611 = vsel %vm597, 0.0, %v576
        %v612 = vsel %vm597, 0.0, %v578
        %v613 = vsel %vm597, 0.0, %v580
        %615 = vset.pattern.permute.xlu0 0
        %616 = vperm.xlu0 %615, %v517
        %v617 = vpop.permute.xlu0 %616
        %620 = vset.pattern.permute.xlu0 0
        %621 = vperm.xlu0 %620, %v518
        %v622 = vpop.permute.xlu0 %621
        %625 = vset.pattern.permute.xlu0 0
        %626 = vperm.xlu0 %625, %v519
        %v627 = vpop.permute.xlu0 %626
        %630 = vset.pattern.permute.xlu0 0
        %631 = vperm.xlu0 %630, %v520
        %v632 = vpop.permute.xlu0 %631
        %635 = vset.pattern.permute.xlu0 0
        %636 = vperm.xlu0 %635, %v521
        %v637 = vpop.permute.xlu0 %636
        %640 = vset.pattern.permute.xlu0 0
        %641 = vperm.xlu0 %640, %v522
        %v642 = vpop.permute.xlu0 %641
        %645 = vset.pattern.permute.xlu0 0
        %646 = vperm.xlu0 %645, %v523
        %v647 = vpop.permute.xlu0 %646
        %650 = vset.pattern.permute.xlu0 0
        %651 = vperm.xlu0 %650, %v524
        %v652 = vpop.permute.xlu0 %651
        %655 = vset.pattern.permute.xlu0 0
        %656 = vperm.xlu0 %655, %v525
        %v657 = vpop.permute.xlu0 %656
        %660 = vset.pattern.permute.xlu0 0
        %661 = vperm.xlu0 %660, %v526
        %v662 = vpop.permute.xlu0 %661
        %665 = vset.pattern.permute.xlu0 0
        %666 = vperm.xlu0 %665, %v527
        %v667 = vpop.permute.xlu0 %666
        %670 = vset.pattern.permute.xlu0 0
        %671 = vperm.xlu0 %670, %v528
        %v672 = vpop.permute.xlu0 %671
        %675 = vset.pattern.permute.xlu0 0
        %676 = vperm.xlu0 %675, %v529
        %v677 = vpop.permute.xlu0 %676
        %680 = vset.pattern.permute.xlu0 0
        %681 = vperm.xlu0 %680, %v530
        %v682 = vpop.permute.xlu0 %681
        %685 = vset.pattern.permute.xlu0 0
        %686 = vperm.xlu0 %685, %v531
        %v687 = vpop.permute.xlu0 %686
        %690 = vset.pattern.permute.xlu0 0
        %691 = vperm.xlu0 %690, %v532
        %v692 = vpop.permute.xlu0 %691
        %v694 = vmul.f32 %v617, %v598
        %v695 = vmul.f32 %v622, %v599
        %v696 = vmul.f32 %v627, %v600
        %v697 = vmul.f32 %v632, %v601
        %v698 = vmul.f32 %v637, %v602
        %v699 = vmul.f32 %v642, %v603
        %v700 = vmul.f32 %v647, %v604
        %v701 = vmul.f32 %v652, %v605
        %v702 = vmul.f32 %v657, %v606
        %v703 = vmul.f32 %v662, %v607
        %v704 = vmul.f32 %v667, %v608
        %v705 = vmul.f32 %v672, %v609
        %v706 = vmul.f32 %v677, %v610
        %v707 = vmul.f32 %v682, %v611
        %v708 = vmul.f32 %v687, %v612
        %v709 = vmul.f32 %v692, %v613
        %710 = vset.pattern.permute.xlu0 1
        %711 = vperm.xlu0 %710, %v517
        %v712 = vpop.permute.xlu0 %711
        %714 = vset.pattern.permute.xlu0 1
        %715 = vperm.xlu0 %714, %v518
        %v716 = vpop.permute.xlu0 %715
        %718 = vset.pattern.permute.xlu0 1
        %719 = vperm.xlu0 %718, %v519
        %v720 = vpop.permute.xlu0 %719
        %722 = vset.pattern.permute.xlu0 1
        %723 = vperm.xlu0 %722, %v520
        %v724 = vpop.permute.xlu0 %723
        %726 = vset.pattern.permute.xlu0 1
        %727 = vperm.xlu0 %726, %v521
        %v728 = vpop.permute.xlu0 %727
        %730 = vset.pattern.permute.xlu0 1
        %731 = vperm.xlu0 %730, %v522
        %v732 = vpop.permute.xlu0 %731
        %734 = vset.pattern.permute.xlu0 1
        %735 = vperm.xlu0 %734, %v523
        %v736 = vpop.permute.xlu0 %735
        %738 = vset.pattern.permute.xlu0 1
        %739 = vperm.xlu0 %738, %v524
        %v740 = vpop.permute.xlu0 %739
        %742 = vset.pattern.permute.xlu0 1
        %743 = vperm.xlu0 %742, %v525
        %v744 = vpop.permute.xlu0 %743
        %746 = vset.pattern.permute.xlu0 1
        %747 = vperm.xlu0 %746, %v526
        %v748 = vpop.permute.xlu0 %747
        %750 = vset.pattern.permute.xlu0 1
        %751 = vperm.xlu0 %750, %v527
        %v752 = vpop.permute.xlu0 %751
        %754 = vset.pattern.permute.xlu0 1
        %755 = vperm.xlu0 %754, %v528
        %v756 = vpop.permute.xlu0 %755
        %758 = vset.pattern.permute.xlu0 1
        %759 = vperm.xlu0 %758, %v529
        %v760 = vpop.permute.xlu0 %759
        %762 = vset.pattern.permute.xlu0 1
        %763 = vperm.xlu0 %762, %v530
        %v764 = vpop.permute.xlu0 %763
        %766 = vset.pattern.permute.xlu0 1
        %767 = vperm.xlu0 %766, %v531
        %v768 = vpop.permute.xlu0 %767
        %770 = vset.pattern.permute.xlu0 1
        %771 = vperm.xlu0 %770, %v532
        %v772 = vpop.permute.xlu0 %771
        %v774 = vmul.f32 %v712, %v501
        %v775 = vmul.f32 %v716, %v502
        %v776 = vmul.f32 %v720, %v503
        %v777 = vmul.f32 %v724, %v504
        %v778 = vmul.f32 %v728, %v505
        %v779 = vmul.f32 %v732, %v506
        %v780 = vmul.f32 %v736, %v507
        %v781 = vmul.f32 %v740, %v508
        %v782 = vmul.f32 %v744, %v509
        %v783 = vmul.f32 %v748, %v510
        %v784 = vmul.f32 %v752, %v511
        %v785 = vmul.f32 %v756, %v512
        %v786 = vmul.f32 %v760, %v513
        %v787 = vmul.f32 %v764, %v514
        %v788 = vmul.f32 %v768, %v515
        %v789 = vmul.f32 %v772, %v516
        %v790 = vadd.f32 %v694, %v774
        %v791 = vadd.f32 %v695, %v775
        %v792 = vadd.f32 %v696, %v776
        %v793 = vadd.f32 %v697, %v777
        %v794 = vadd.f32 %v698, %v778
        %v795 = vadd.f32 %v699, %v779
        %v796 = vadd.f32 %v700, %v780
        %v797 = vadd.f32 %v701, %v781
        %v798 = vadd.f32 %v702, %v782
        %v799 = vadd.f32 %v703, %v783
        %v800 = vadd.f32 %v704, %v784
        %v801 = vadd.f32 %v705, %v785
        %v802 = vadd.f32 %v706, %v786
        %v803 = vadd.f32 %v707, %v787
        %v804 = vadd.f32 %v708, %v788
        %v805 = vadd.f32 %v709, %v789
        %806 = vrot.lane.b32.xlu0 %v501, 127
        %v807 = vpop.permute.xlu0 %806
        %808 = vrot.lane.b32.xlu0 %v502, 127
        %v809 = vpop.permute.xlu0 %808
        %810 = vrot.lane.b32.xlu0 %v503, 127
        %v811 = vpop.permute.xlu0 %810
        %812 = vrot.lane.b32.xlu0 %v504, 127
        %v813 = vpop.permute.xlu0 %812
        %814 = vrot.lane.b32.xlu0 %v505, 127
        %v815 = vpop.permute.xlu0 %814
        %816 = vrot.lane.b32.xlu0 %v506, 127
        %v817 = vpop.permute.xlu0 %816
        %818 = vrot.lane.b32.xlu0 %v507, 127
        %v819 = vpop.permute.xlu0 %818
        %820 = vrot.lane.b32.xlu0 %v508, 127
        %v821 = vpop.permute.xlu0 %820
        %822 = vrot.lane.b32.xlu0 %v509, 127
        %v823 = vpop.permute.xlu0 %822
        %824 = vrot.lane.b32.xlu0 %v510, 127
        %v825 = vpop.permute.xlu0 %824
        %826 = vrot.lane.b32.xlu0 %v511, 127
        %v827 = vpop.permute.xlu0 %826
        %828 = vrot.lane.b32.xlu0 %v512, 127
        %v829 = vpop.permute.xlu0 %828
        %830 = vrot.lane.b32.xlu0 %v513, 127
        %v831 = vpop.permute.xlu0 %830
        %832 = vrot.lane.b32.xlu0 %v514, 127
        %v833 = vpop.permute.xlu0 %832
        %834 = vrot.lane.b32.xlu0 %v515, 127
        %v835 = vpop.permute.xlu0 %834
        %836 = vrot.lane.b32.xlu0 %v516, 127
        %v837 = vpop.permute.xlu0 %836
        %vm854 = vcmask 1039360
        %v855 = vsel %vm854, %v807, 0.0
        %v856 = vsel %vm854, %v809, 0.0
        %v857 = vsel %vm854, %v811, 0.0
        %v858 = vsel %vm854, %v813, 0.0
        %v859 = vsel %vm854, %v815, 0.0
        %v860 = vsel %vm854, %v817, 0.0
        %v861 = vsel %vm854, %v819, 0.0
        %v862 = vsel %vm854, %v821, 0.0
        %v863 = vsel %vm854, %v823, 0.0
        %v864 = vsel %vm854, %v825, 0.0
        %v865 = vsel %vm854, %v827, 0.0
        %v866 = vsel %vm854, %v829, 0.0
        %v867 = vsel %vm854, %v831, 0.0
        %v868 = vsel %vm854, %v833, 0.0
        %v869 = vsel %vm854, %v835, 0.0
        %v870 = vsel %vm854, %v837, 0.0
        %871 = vset.pattern.permute.xlu0 2
        %872 = vperm.xlu0 %871, %v517
        %v873 = vpop.permute.xlu0 %872
        %875 = vset.pattern.permute.xlu0 2
        %876 = vperm.xlu0 %875, %v518
        %v877 = vpop.permute.xlu0 %876
        %879 = vset.pattern.permute.xlu0 2
        %880 = vperm.xlu0 %879, %v519
        %v881 = vpop.permute.xlu0 %880
        %883 = vset.pattern.permute.xlu0 2
        %884 = vperm.xlu0 %883, %v520
        %v885 = vpop.permute.xlu0 %884
        %887 = vset.pattern.permute.xlu0 2
        %888 = vperm.xlu0 %887, %v521
        %v889 = vpop.permute.xlu0 %888
        %891 = vset.pattern.permute.xlu0 2
        %892 = vperm.xlu0 %891, %v522
        %v893 = vpop.permute.xlu0 %892
        %895 = vset.pattern.permute.xlu0 2
        %896 = vperm.xlu0 %895, %v523
        %v897 = vpop.permute.xlu0 %896
        %899 = vset.pattern.permute.xlu0 2
        %900 = vperm.xlu0 %899, %v524
        %v901 = vpop.permute.xlu0 %900
        %903 = vset.pattern.permute.xlu0 2
        %904 = vperm.xlu0 %903, %v525
        %v905 = vpop.permute.xlu0 %904
        %907 = vset.pattern.permute.xlu0 2
        %908 = vperm.xlu0 %907, %v526
        %v909 = vpop.permute.xlu0 %908
        %911 = vset.pattern.permute.xlu0 2
        %912 = vperm.xlu0 %911, %v527
        %v913 = vpop.permute.xlu0 %912
        %915 = vset.pattern.permute.xlu0 2
        %916 = vperm.xlu0 %915, %v528
        %v917 = vpop.permute.xlu0 %916
        %919 = vset.pattern.permute.xlu0 2
        %920 = vperm.xlu0 %919, %v529
        %v921 = vpop.permute.xlu0 %920
        %923 = vset.pattern.permute.xlu0 2
        %924 = vperm.xlu0 %923, %v530
        %v925 = vpop.permute.xlu0 %924
        %927 = vset.pattern.permute.xlu0 2
        %928 = vperm.xlu0 %927, %v531
        %v929 = vpop.permute.xlu0 %928
        %931 = vset.pattern.permute.xlu0 2
        %932 = vperm.xlu0 %931, %v532
        %v933 = vpop.permute.xlu0 %932
        %v935 = vmul.f32 %v873, %v855
        %v936 = vmul.f32 %v877, %v856
        %v937 = vmul.f32 %v881, %v857
        %v938 = vmul.f32 %v885, %v858
        %v939 = vmul.f32 %v889, %v859
        %v940 = vmul.f32 %v893, %v860
        %v941 = vmul.f32 %v897, %v861
        %v942 = vmul.f32 %v901, %v862
        %v943 = vmul.f32 %v905, %v863
        %v944 = vmul.f32 %v909, %v864
        %v945 = vmul.f32 %v913, %v865
        %v946 = vmul.f32 %v917, %v866
        %v947 = vmul.f32 %v921, %v867
        %v948 = vmul.f32 %v925, %v868
        %v949 = vmul.f32 %v929, %v869
        %v950 = vmul.f32 %v933, %v870
        %v951 = vadd.f32 %v790, %v935
        %v952 = vadd.f32 %v791, %v936
        %v953 = vadd.f32 %v792, %v937
        %v954 = vadd.f32 %v793, %v938
        %v955 = vadd.f32 %v794, %v939
        %v956 = vadd.f32 %v795, %v940
        %v957 = vadd.f32 %v796, %v941
        %v958 = vadd.f32 %v797, %v942
        %v959 = vadd.f32 %v798, %v943
        %v960 = vadd.f32 %v799, %v944
        %v961 = vadd.f32 %v800, %v945
        %v962 = vadd.f32 %v801, %v946
        %v963 = vadd.f32 %v802, %v947
        %v964 = vadd.f32 %v803, %v948
        %v965 = vadd.f32 %v804, %v949
        %v966 = vadd.f32 %v805, %v950
        %v967 = vld [vmem:[%s4] sm:$0xff]
        %v968 = vld [vmem:[%s4 + $0x8] sm:$0xff]
        %v969 = vld [vmem:[%s4 + $0x10] sm:$0xff]
        %v970 = vld [vmem:[%s4 + $0x18] sm:$0xff]
        %v971 = vld [vmem:[%s4 + $0x20] sm:$0xff]
        %v972 = vld [vmem:[%s4 + $0x28] sm:$0xff]
        %v973 = vld [vmem:[%s4 + $0x30] sm:$0xff]
        %v974 = vld [vmem:[%s4 + $0x38] sm:$0xff]
        %v975 = vld [vmem:[%s4 + $0x40] sm:$0xff]
        %v976 = vld [vmem:[%s4 + $0x48] sm:$0xff]
        %v977 = vld [vmem:[%s4 + $0x50] sm:$0xff]
        %v978 = vld [vmem:[%s4 + $0x58] sm:$0xff]
        %v979 = vld [vmem:[%s4 + $0x60] sm:$0xff]
        %v980 = vld [vmem:[%s4 + $0x68] sm:$0xff]
        %v981 = vld [vmem:[%s4 + $0x70] sm:$0xff]
        %v982 = vld [vmem:[%s4 + $0x78] sm:$0xff]
        %984 = vset.pattern.permute.xlu0 0
        %985 = vperm.xlu0 %984, %v967
        %v986 = vpop.permute.xlu0 %985
        %989 = vset.pattern.permute.xlu0 0
        %990 = vperm.xlu0 %989, %v968
        %v991 = vpop.permute.xlu0 %990
        %994 = vset.pattern.permute.xlu0 0
        %995 = vperm.xlu0 %994, %v969
        %v996 = vpop.permute.xlu0 %995
        %999 = vset.pattern.permute.xlu0 0
        %1000 = vperm.xlu0 %999, %v970
        %v1001 = vpop.permute.xlu0 %1000
        %1004 = vset.pattern.permute.xlu0 0
        %1005 = vperm.xlu0 %1004, %v971
        %v1006 = vpop.permute.xlu0 %1005
        %1009 = vset.pattern.permute.xlu0 0
        %1010 = vperm.xlu0 %1009, %v972
        %v1011 = vpop.permute.xlu0 %1010
        %1014 = vset.pattern.permute.xlu0 0
        %1015 = vperm.xlu0 %1014, %v973
        %v1016 = vpop.permute.xlu0 %1015
        %1019 = vset.pattern.permute.xlu0 0
        %1020 = vperm.xlu0 %1019, %v974
        %v1021 = vpop.permute.xlu0 %1020
        %1024 = vset.pattern.permute.xlu0 0
        %1025 = vperm.xlu0 %1024, %v975
        %v1026 = vpop.permute.xlu0 %1025
        %1029 = vset.pattern.permute.xlu0 0
        %1030 = vperm.xlu0 %1029, %v976
        %v1031 = vpop.permute.xlu0 %1030
        %1034 = vset.pattern.permute.xlu0 0
        %1035 = vperm.xlu0 %1034, %v977
        %v1036 = vpop.permute.xlu0 %1035
        %1039 = vset.pattern.permute.xlu0 0
        %1040 = vperm.xlu0 %1039, %v978
        %v1041 = vpop.permute.xlu0 %1040
        %1044 = vset.pattern.permute.xlu0 0
        %1045 = vperm.xlu0 %1044, %v979
        %v1046 = vpop.permute.xlu0 %1045
        %1049 = vset.pattern.permute.xlu0 0
        %1050 = vperm.xlu0 %1049, %v980
        %v1051 = vpop.permute.xlu0 %1050
        %1054 = vset.pattern.permute.xlu0 0
        %1055 = vperm.xlu0 %1054, %v981
        %v1056 = vpop.permute.xlu0 %1055
        %1059 = vset.pattern.permute.xlu0 0
        %1060 = vperm.xlu0 %1059, %v982
        %v1061 = vpop.permute.xlu0 %1060
        %v1063 = vadd.f32 %v951, %v986
        %v1064 = vadd.f32 %v952, %v991
        %v1065 = vadd.f32 %v953, %v996
        %v1066 = vadd.f32 %v954, %v1001
        %v1067 = vadd.f32 %v955, %v1006
        %v1068 = vadd.f32 %v956, %v1011
        %v1069 = vadd.f32 %v957, %v1016
        %v1070 = vadd.f32 %v958, %v1021
        %v1071 = vadd.f32 %v959, %v1026
        %v1072 = vadd.f32 %v960, %v1031
        %v1073 = vadd.f32 %v961, %v1036
        %v1074 = vadd.f32 %v962, %v1041
        %v1075 = vadd.f32 %v963, %v1046
        %v1076 = vadd.f32 %v964, %v1051
        %v1077 = vadd.f32 %v965, %v1056
        %v1078 = vadd.f32 %v966, %v1061
        %v1079 = vld [vmem:[%s5] sm:$0xf]
        %v1080 = vld [vmem:[%s5 + $0x4] sm:$0xf]
        %v1081 = vld [vmem:[%s5 + $0x8] sm:$0xf]
        %v1082 = vld [vmem:[%s5 + $0xc] sm:$0xf]
        %v1083 = vld [vmem:[%s5 + $0x10] sm:$0xf]
        %v1084 = vld [vmem:[%s5 + $0x14] sm:$0xf]
        %v1085 = vld [vmem:[%s5 + $0x18] sm:$0xf]
        %v1086 = vld [vmem:[%s5 + $0x1c] sm:$0xf]
        %v1087 = vld [vmem:[%s5 + $0x20] sm:$0xf]
        %v1088 = vld [vmem:[%s5 + $0x24] sm:$0xf]
        %v1089 = vld [vmem:[%s5 + $0x28] sm:$0xf]
        %v1090 = vld [vmem:[%s5 + $0x2c] sm:$0xf]
        %v1091 = vld [vmem:[%s5 + $0x30] sm:$0xf]
        %v1092 = vld [vmem:[%s5 + $0x34] sm:$0xf]
        %v1093 = vld [vmem:[%s5 + $0x38] sm:$0xf]
        %v1094 = vld [vmem:[%s5 + $0x3c] sm:$0xf]
        %v1095 = vpack.c.bf16 %v1064, %v1063
        %v1096 = vpack.c.bf16 %v1066, %v1065
        %v1097 = vpack.c.bf16 %v1068, %v1067
        %v1098 = vpack.c.bf16 %v1070, %v1069
        %v1099 = vpack.c.bf16 %v1072, %v1071
        %v1100 = vpack.c.bf16 %v1074, %v1073
        %v1101 = vpack.c.bf16 %v1076, %v1075
        %v1102 = vpack.c.bf16 %v1078, %v1077
        %v1103 = vld [vmem:[%s6] sm:$0xff]
        %v1104 = vld [vmem:[%s6 + $0x8] sm:$0xff]
        %v1105 = vld [vmem:[%s6 + $0x10] sm:$0xff]
        %v1106 = vld [vmem:[%s6 + $0x18] sm:$0xff]
        %v1107 = vld [vmem:[%s6 + $0x20] sm:$0xff]
        %v1108 = vld [vmem:[%s6 + $0x28] sm:$0xff]
        %v1109 = vld [vmem:[%s6 + $0x30] sm:$0xff]
        %v1110 = vld [vmem:[%s6 + $0x38] sm:$0xff]
        %v1111 = vld [vmem:[%s6 + $0x40] sm:$0xff]
        %v1112 = vld [vmem:[%s6 + $0x48] sm:$0xff]
        %v1113 = vld [vmem:[%s6 + $0x50] sm:$0xff]
        %v1114 = vld [vmem:[%s6 + $0x58] sm:$0xff]
        %v1115 = vld [vmem:[%s6 + $0x60] sm:$0xff]
        %v1116 = vld [vmem:[%s6 + $0x68] sm:$0xff]
        %v1117 = vld [vmem:[%s6 + $0x70] sm:$0xff]
        %v1118 = vld [vmem:[%s6 + $0x78] sm:$0xff]
        %1120 = vset.pattern.permute.xlu0 0
        %1121 = vperm.xlu0 %1120, %v1103
        %v1122 = vpop.permute.xlu0 %1121
        %1125 = vset.pattern.permute.xlu0 0
        %1126 = vperm.xlu0 %1125, %v1104
        %v1127 = vpop.permute.xlu0 %1126
        %1130 = vset.pattern.permute.xlu0 0
        %1131 = vperm.xlu0 %1130, %v1105
        %v1132 = vpop.permute.xlu0 %1131
        %1135 = vset.pattern.permute.xlu0 0
        %1136 = vperm.xlu0 %1135, %v1106
        %v1137 = vpop.permute.xlu0 %1136
        %1140 = vset.pattern.permute.xlu0 0
        %1141 = vperm.xlu0 %1140, %v1107
        %v1142 = vpop.permute.xlu0 %1141
        %1145 = vset.pattern.permute.xlu0 0
        %1146 = vperm.xlu0 %1145, %v1108
        %v1147 = vpop.permute.xlu0 %1146
        %1150 = vset.pattern.permute.xlu0 0
        %1151 = vperm.xlu0 %1150, %v1109
        %v1152 = vpop.permute.xlu0 %1151
        %1155 = vset.pattern.permute.xlu0 0
        %1156 = vperm.xlu0 %1155, %v1110
        %v1157 = vpop.permute.xlu0 %1156
        %1160 = vset.pattern.permute.xlu0 0
        %1161 = vperm.xlu0 %1160, %v1111
        %v1162 = vpop.permute.xlu0 %1161
        %1165 = vset.pattern.permute.xlu0 0
        %1166 = vperm.xlu0 %1165, %v1112
        %v1167 = vpop.permute.xlu0 %1166
        %1170 = vset.pattern.permute.xlu0 0
        %1171 = vperm.xlu0 %1170, %v1113
        %v1172 = vpop.permute.xlu0 %1171
        %1175 = vset.pattern.permute.xlu0 0
        %1176 = vperm.xlu0 %1175, %v1114
        %v1177 = vpop.permute.xlu0 %1176
        %1180 = vset.pattern.permute.xlu0 0
        %1181 = vperm.xlu0 %1180, %v1115
        %v1182 = vpop.permute.xlu0 %1181
        %1185 = vset.pattern.permute.xlu0 0
        %1186 = vperm.xlu0 %1185, %v1116
        %v1187 = vpop.permute.xlu0 %1186
        %1190 = vset.pattern.permute.xlu0 0
        %1191 = vperm.xlu0 %1190, %v1117
        %v1192 = vpop.permute.xlu0 %1191
        %1195 = vset.pattern.permute.xlu0 0
        %1196 = vperm.xlu0 %1195, %v1118
        %v1197 = vpop.permute.xlu0 %1196
        %v1215 = vunpack.c.l.b16 %v1079
        %v1216 = vunpack.c.l.b16 %v1080
        %v1217 = vunpack.c.l.b16 %v1081
        %v1218 = vunpack.c.l.b16 %v1082
        %v1219 = vunpack.c.l.b16 %v1083
        %v1220 = vunpack.c.l.b16 %v1084
        %v1221 = vunpack.c.l.b16 %v1085
        %v1222 = vunpack.c.l.b16 %v1086
        %v1223 = vunpack.c.l.b16 %v1087
        %v1224 = vunpack.c.l.b16 %v1088
        %v1225 = vunpack.c.l.b16 %v1089
        %v1226 = vunpack.c.l.b16 %v1090
        %v1227 = vunpack.c.l.b16 %v1091
        %v1228 = vunpack.c.l.b16 %v1092
        %v1229 = vunpack.c.l.b16 %v1093
        %v1230 = vunpack.c.l.b16 %v1094
        %v1231 = vpack.c.b16 %v1216, %v1215
        %v1232 = vpack.c.b16 %v1218, %v1217
        %v1233 = vpack.c.b16 %v1220, %v1219
        %v1234 = vpack.c.b16 %v1222, %v1221
        %v1235 = vpack.c.b16 %v1224, %v1223
        %v1236 = vpack.c.b16 %v1226, %v1225
        %v1237 = vpack.c.b16 %v1228, %v1227
        %v1238 = vpack.c.b16 %v1230, %v1229
        %1247 = vmatprep.subr.bf16.mxu0 0
        %1248 = vmatpush1.bf16.msra.mxu0 %v1102
        %1249 = vmatprep.subr.bf16.mxu0 0
        %1250 = vmatpush1.bf16.msra.mxu0 %v1101
        %1251 = vmatprep.subr.bf16.mxu0 0
        %1252 = vmatpush1.bf16.msra.mxu0 %v1100
        %1253 = vmatprep.subr.bf16.mxu0 0
        %1254 = vmatpush1.bf16.msra.mxu0 %v1099
        %1255 = vmatprep.subr.bf16.mxu0 0
        %1256 = vmatpush1.bf16.msra.mxu0 %v1098
        %1257 = vmatprep.subr.bf16.mxu0 0
        %1258 = vmatpush1.bf16.msra.mxu0 %v1097
        %1259 = vmatprep.subr.bf16.mxu0 0
        %1260 = vmatpush1.bf16.msra.mxu0 %v1096
        %1261 = vmatprep.subr.bf16.mxu0 0
        %1262 = vmatpush1.bf16.msra.mxu0 %v1095
        %1263 = vmatprep.subr.bf16.mxu0 0
        %1264 = vmatpush2.bf16.msra.mxu0 0
        %1265 = vmatprep.subr.bf16.mxu0 0
        %1266 = vmatpush2.bf16.msra.mxu0 0
        %1267 = vmatprep.subr.bf16.mxu0 0
        %1268 = vmatpush2.bf16.msra.mxu0 0
        %1269 = vmatprep.subr.bf16.mxu0 0
        %1270 = vmatpush2.bf16.msra.mxu0 0
        %1271 = vmatprep.subr.bf16.mxu0 0
        %1272 = vmatpush2.bf16.msra.mxu0 0
        %1273 = vmatprep.subr.bf16.mxu0 0
        %1274 = vmatpush2.bf16.msra.mxu0 0
        %1275 = vmatprep.subr.bf16.mxu0 0
        %1276 = vmatpush2.bf16.msra.mxu0 0
        %1277 = vmatprep.subr.bf16.mxu0 0
        %1278 = vmatpush2.bf16.msra.mxu0 0
        %1279 = vmatprep.mubr.bf16.mxu0 0
        %1280 = vmatmul.mubr.bf16.gmra.mxu0 %v1231
        %v1281 = vpop.f32.mrf.mxu0
        %v1282 = vadd.f32 %v1122, %v1281
        %v1283 = vpop.f32.mrf.mxu0
        %v1284 = vpop.f32.mrf.mxu0
        %v1285 = vadd.f32 %v1127, %v1284
        %v1286 = vpop.f32.mrf.mxu0
        %1287 = vmatprep.mubr.bf16.mxu0 0
        %1288 = vmatmul.mubr.bf16.gmra.mxu0 %v1232
        %v1289 = vpop.f32.mrf.mxu0
        %v1290 = vadd.f32 %v1132, %v1289
        %v1291 = vpop.f32.mrf.mxu0
        %v1292 = vpop.f32.mrf.mxu0
        %v1293 = vadd.f32 %v1137, %v1292
        %v1294 = vpop.f32.mrf.mxu0
        %1295 = vmatprep.mubr.bf16.mxu0 0
        %1296 = vmatmul.mubr.bf16.gmra.mxu0 %v1233
        %v1297 = vpop.f32.mrf.mxu0
        %v1298 = vadd.f32 %v1142, %v1297
        %v1299 = vpop.f32.mrf.mxu0
        %v1300 = vpop.f32.mrf.mxu0
        %v1301 = vadd.f32 %v1147, %v1300
        %v1302 = vpop.f32.mrf.mxu0
        %1303 = vmatprep.mubr.bf16.mxu0 0
        %1304 = vmatmul.mubr.bf16.gmra.mxu0 %v1234
        %v1305 = vpop.f32.mrf.mxu0
        %v1306 = vadd.f32 %v1152, %v1305
        %v1307 = vpop.f32.mrf.mxu0
        %v1308 = vpop.f32.mrf.mxu0
        %v1309 = vadd.f32 %v1157, %v1308
        %v1310 = vpop.f32.mrf.mxu0
        %1311 = vmatprep.mubr.bf16.mxu0 0
        %1312 = vmatmul.mubr.bf16.gmra.mxu0 %v1235
        %v1313 = vpop.f32.mrf.mxu0
        %v1314 = vadd.f32 %v1162, %v1313
        %v1315 = vpop.f32.mrf.mxu0
        %v1316 = vpop.f32.mrf.mxu0
        %v1317 = vadd.f32 %v1167, %v1316
        %v1318 = vpop.f32.mrf.mxu0
        %1319 = vmatprep.mubr.bf16.mxu0 0
        %1320 = vmatmul.mubr.bf16.gmra.mxu0 %v1236
        %v1321 = vpop.f32.mrf.mxu0
        %v1322 = vadd.f32 %v1172, %v1321
        %v1323 = vpop.f32.mrf.mxu0
        %v1324 = vpop.f32.mrf.mxu0
        %v1325 = vadd.f32 %v1177, %v1324
        %v1326 = vpop.f32.mrf.mxu0
        %1327 = vmatprep.mubr.bf16.mxu0 0
        %1328 = vmatmul.mubr.bf16.gmra.mxu0 %v1237
        %v1329 = vpop.f32.mrf.mxu0
        %v1330 = vadd.f32 %v1182, %v1329
        %v1331 = vpop.f32.mrf.mxu0
        %v1332 = vpop.f32.mrf.mxu0
        %v1333 = vadd.f32 %v1187, %v1332
        %v1334 = vpop.f32.mrf.mxu0
        %1335 = vmatprep.mubr.bf16.mxu0 0
        %1336 = vmatmul.mubr.bf16.gmra.mxu0 %v1238
        %v1337 = vpop.f32.mrf.mxu0
        %v1338 = vadd.f32 %v1192, %v1337
        %v1339 = vpop.f32.mrf.mxu0
        %v1340 = vpop.f32.mrf.mxu0
        %v1341 = vadd.f32 %v1197, %v1340
        %v1342 = vpop.f32.mrf.mxu0
        %1343 = vdwg.mxu0
        %v1344 = vmax.f32 %v1282, 0.0
        %v1345 = vmax.f32 %v1285, 0.0
        %v1346 = vmax.f32 %v1290, 0.0
        %v1347 = vmax.f32 %v1293, 0.0
        %v1348 = vmax.f32 %v1298, 0.0
        %v1349 = vmax.f32 %v1301, 0.0
        %v1350 = vmax.f32 %v1306, 0.0
        %v1351 = vmax.f32 %v1309, 0.0
        %v1352 = vmax.f32 %v1314, 0.0
        %v1353 = vmax.f32 %v1317, 0.0
        %v1354 = vmax.f32 %v1322, 0.0
        %v1355 = vmax.f32 %v1325, 0.0
        %v1356 = vmax.f32 %v1330, 0.0
        %v1357 = vmax.f32 %v1333, 0.0
        %v1358 = vmax.f32 %v1338, 0.0
        %v1359 = vmax.f32 %v1341, 0.0
        %v1360 = vadd.f32 %v1344, %v278
        %v1361 = vadd.f32 %v1345, %v279
        %v1362 = vadd.f32 %v1346, %v280
        %v1363 = vadd.f32 %v1347, %v281
        %v1364 = vadd.f32 %v1348, %v282
        %v1365 = vadd.f32 %v1349, %v283
        %v1366 = vadd.f32 %v1350, %v284
        %v1367 = vadd.f32 %v1351, %v285
        %v1368 = vadd.f32 %v1352, %v286
        %v1369 = vadd.f32 %v1353, %v287
        %v1370 = vadd.f32 %v1354, %v288
        %v1371 = vadd.f32 %v1355, %v289
        %v1372 = vadd.f32 %v1356, %v290
        %v1373 = vadd.f32 %v1357, %v291
        %v1374 = vadd.f32 %v1358, %v292
        %v1375 = vadd.f32 %v1359, %v293
        %1376 = vadd.xlane.f32.xlu0 %v1360
        %v1377 = vpop.xlane.xlu0 %1376
        %1378 = vadd.xlane.f32.xlu0 %v1361
        %v1379 = vpop.xlane.xlu0 %1378
        %1380 = vadd.xlane.f32.xlu0 %v1362
        %v1381 = vpop.xlane.xlu0 %1380
        %1382 = vadd.xlane.f32.xlu0 %v1363
        %v1383 = vpop.xlane.xlu0 %1382
        %1384 = vadd.xlane.f32.xlu0 %v1364
        %v1385 = vpop.xlane.xlu0 %1384
        %1386 = vadd.xlane.f32.xlu0 %v1365
        %v1387 = vpop.xlane.xlu0 %1386
        %1388 = vadd.xlane.f32.xlu0 %v1366
        %v1389 = vpop.xlane.xlu0 %1388
        %1390 = vadd.xlane.f32.xlu0 %v1367
        %v1391 = vpop.xlane.xlu0 %1390
        %1392 = vadd.xlane.f32.xlu0 %v1368
        %v1393 = vpop.xlane.xlu0 %1392
        %1394 = vadd.xlane.f32.xlu0 %v1369
        %v1395 = vpop.xlane.xlu0 %1394
        %1396 = vadd.xlane.f32.xlu0 %v1370
        %v1397 = vpop.xlane.xlu0 %1396
        %1398 = vadd.xlane.f32.xlu0 %v1371
        %v1399 = vpop.xlane.xlu0 %1398
        %1400 = vadd.xlane.f32.xlu0 %v1372
        %v1401 = vpop.xlane.xlu0 %1400
        %1402 = vadd.xlane.f32.xlu0 %v1373
        %v1403 = vpop.xlane.xlu0 %1402
        %1404 = vadd.xlane.f32.xlu0 %v1374
        %v1405 = vpop.xlane.xlu0 %1404
        %1406 = vadd.xlane.f32.xlu0 %v1375
        %v1407 = vpop.xlane.xlu0 %1406
        %v1408 = vmul.f32 %v1377, %v326
        %v1409 = vmul.f32 %v1379, %v326
        %v1410 = vmul.f32 %v1381, %v326
        %v1411 = vmul.f32 %v1383, %v326
        %v1412 = vmul.f32 %v1385, %v326
        %v1413 = vmul.f32 %v1387, %v326
        %v1414 = vmul.f32 %v1389, %v326
        %v1415 = vmul.f32 %v1391, %v326
        %v1416 = vmul.f32 %v1393, %v326
        %v1417 = vmul.f32 %v1395, %v326
        %v1418 = vmul.f32 %v1397, %v326
        %v1419 = vmul.f32 %v1399, %v326
        %v1420 = vmul.f32 %v1401, %v326
        %v1421 = vmul.f32 %v1403, %v326
        %v1422 = vmul.f32 %v1405, %v326
        %v1423 = vmul.f32 %v1407, %v326
        %v1424 = vsub.f32 %v1360, %v1408
        %v1425 = vsub.f32 %v1361, %v1409
        %v1426 = vsub.f32 %v1362, %v1410
        %v1427 = vsub.f32 %v1363, %v1411
        %v1428 = vsub.f32 %v1364, %v1412
        %v1429 = vsub.f32 %v1365, %v1413
        %v1430 = vsub.f32 %v1366, %v1414
        %v1431 = vsub.f32 %v1367, %v1415
        %v1432 = vsub.f32 %v1368, %v1416
        %v1433 = vsub.f32 %v1369, %v1417
        %v1434 = vsub.f32 %v1370, %v1418
        %v1435 = vsub.f32 %v1371, %v1419
        %v1436 = vsub.f32 %v1372, %v1420
        %v1437 = vsub.f32 %v1373, %v1421
        %v1438 = vsub.f32 %v1374, %v1422
        %v1439 = vsub.f32 %v1375, %v1423
        %v1440 = vmul.f32 %v1424, %v1424
        %v1441 = vmul.f32 %v1425, %v1425
        %v1442 = vmul.f32 %v1426, %v1426
        %v1443 = vmul.f32 %v1427, %v1427
        %v1444 = vmul.f32 %v1428, %v1428
        %v1445 = vmul.f32 %v1429, %v1429
        %v1446 = vmul.f32 %v1430, %v1430
        %v1447 = vmul.f32 %v1431, %v1431
        %v1448 = vmul.f32 %v1432, %v1432
        %v1449 = vmul.f32 %v1433, %v1433
        %v1450 = vmul.f32 %v1434, %v1434
        %v1451 = vmul.f32 %v1435, %v1435
        %v1452 = vmul.f32 %v1436, %v1436
        %v1453 = vmul.f32 %v1437, %v1437
        %v1454 = vmul.f32 %v1438, %v1438
        %v1455 = vmul.f32 %v1439, %v1439
        %1456 = vadd.xlane.f32.xlu0 %v1440
        %v1457 = vpop.xlane.xlu0 %1456
        %1458 = vadd.xlane.f32.xlu0 %v1441
        %v1459 = vpop.xlane.xlu0 %1458
        %1460 = vadd.xlane.f32.xlu0 %v1442
        %v1461 = vpop.xlane.xlu0 %1460
        %1462 = vadd.xlane.f32.xlu0 %v1443
        %v1463 = vpop.xlane.xlu0 %1462
        %1464 = vadd.xlane.f32.xlu0 %v1444
        %v1465 = vpop.xlane.xlu0 %1464
        %1466 = vadd.xlane.f32.xlu0 %v1445
        %v1467 = vpop.xlane.xlu0 %1466
        %1468 = vadd.xlane.f32.xlu0 %v1446
        %v1469 = vpop.xlane.xlu0 %1468
        %1470 = vadd.xlane.f32.xlu0 %v1447
        %v1471 = vpop.xlane.xlu0 %1470
        %1472 = vadd.xlane.f32.xlu0 %v1448
        %v1473 = vpop.xlane.xlu0 %1472
        %1474 = vadd.xlane.f32.xlu0 %v1449
        %v1475 = vpop.xlane.xlu0 %1474
        %1476 = vadd.xlane.f32.xlu0 %v1450
        %v1477 = vpop.xlane.xlu0 %1476
        %1478 = vadd.xlane.f32.xlu0 %v1451
        %v1479 = vpop.xlane.xlu0 %1478
        %1480 = vadd.xlane.f32.xlu0 %v1452
        %v1481 = vpop.xlane.xlu0 %1480
        %1482 = vadd.xlane.f32.xlu0 %v1453
        %v1483 = vpop.xlane.xlu0 %1482
        %1484 = vadd.xlane.f32.xlu0 %v1454
        %v1485 = vpop.xlane.xlu0 %1484
        %1486 = vadd.xlane.f32.xlu0 %v1455
        %v1487 = vpop.xlane.xlu0 %1486
        %v1488 = vmul.f32 %v1457, %v326
        %v1489 = vmul.f32 %v1459, %v326
        %v1490 = vmul.f32 %v1461, %v326
        %v1491 = vmul.f32 %v1463, %v326
        %v1492 = vmul.f32 %v1465, %v326
        %v1493 = vmul.f32 %v1467, %v326
        %v1494 = vmul.f32 %v1469, %v326
        %v1495 = vmul.f32 %v1471, %v326
        %v1496 = vmul.f32 %v1473, %v326
        %v1497 = vmul.f32 %v1475, %v326
        %v1498 = vmul.f32 %v1477, %v326
        %v1499 = vmul.f32 %v1479, %v326
        %v1500 = vmul.f32 %v1481, %v326
        %v1501 = vmul.f32 %v1483, %v326
        %v1502 = vmul.f32 %v1485, %v326
        %v1503 = vmul.f32 %v1487, %v326
        %v1504 = vadd.f32 %v1488, 1e-06
        %v1505 = vadd.f32 %v1489, 1e-06
        %v1506 = vadd.f32 %v1490, 1e-06
        %v1507 = vadd.f32 %v1491, 1e-06
        %v1508 = vadd.f32 %v1492, 1e-06
        %v1509 = vadd.f32 %v1493, 1e-06
        %v1510 = vadd.f32 %v1494, 1e-06
        %v1511 = vadd.f32 %v1495, 1e-06
        %v1512 = vadd.f32 %v1496, 1e-06
        %v1513 = vadd.f32 %v1497, 1e-06
        %v1514 = vadd.f32 %v1498, 1e-06
        %v1515 = vadd.f32 %v1499, 1e-06
        %v1516 = vadd.f32 %v1500, 1e-06
        %v1517 = vadd.f32 %v1501, 1e-06
        %v1518 = vadd.f32 %v1502, 1e-06
        %v1519 = vadd.f32 %v1503, 1e-06
        %v1520 = vrsqrt.pop %v1504
        %v1521 = vrsqrt.pop %v1505
        %v1522 = vrsqrt.pop %v1506
        %v1523 = vrsqrt.pop %v1507
        %v1524 = vrsqrt.pop %v1508
        %v1525 = vrsqrt.pop %v1509
        %v1526 = vrsqrt.pop %v1510
        %v1527 = vrsqrt.pop %v1511
        %v1528 = vrsqrt.pop %v1512
        %v1529 = vrsqrt.pop %v1513
        %v1530 = vrsqrt.pop %v1514
        %v1531 = vrsqrt.pop %v1515
        %v1532 = vrsqrt.pop %v1516
        %v1533 = vrsqrt.pop %v1517
        %v1534 = vrsqrt.pop %v1518
        %v1535 = vrsqrt.pop %v1519
        %v1536 = vmul.f32 %v1424, %v1520
        %v1537 = vmul.f32 %v1425, %v1521
        %v1538 = vmul.f32 %v1426, %v1522
        %v1539 = vmul.f32 %v1427, %v1523
        %v1540 = vmul.f32 %v1428, %v1524
        %v1541 = vmul.f32 %v1429, %v1525
        %v1542 = vmul.f32 %v1430, %v1526
        %v1543 = vmul.f32 %v1431, %v1527
        %v1544 = vmul.f32 %v1432, %v1528
        %v1545 = vmul.f32 %v1433, %v1529
        %v1546 = vmul.f32 %v1434, %v1530
        %v1547 = vmul.f32 %v1435, %v1531
        %v1548 = vmul.f32 %v1436, %v1532
        %v1549 = vmul.f32 %v1437, %v1533
        %v1550 = vmul.f32 %v1438, %v1534
        %v1551 = vmul.f32 %v1439, %v1535
        %s1552 = scalar_lea.vmem %s1, 1
        %v1553 = vld [vmem:[%s1552] sm:$0x1]
        %v1555 = vlaneseq
        %v1556 = vshrl.u32 %v1555, 7
        %v1557 = vsub.s32 0, %v1556
        %v1558 = vrot.slane %v1553, %v1557
        %v1560 = vmul.f32 %v1536, %v1558
        %v1561 = vmul.f32 %v1537, %v1558
        %v1562 = vmul.f32 %v1538, %v1558
        %v1563 = vmul.f32 %v1539, %v1558
        %v1564 = vmul.f32 %v1540, %v1558
        %v1565 = vmul.f32 %v1541, %v1558
        %v1566 = vmul.f32 %v1542, %v1558
        %v1567 = vmul.f32 %v1543, %v1558
        %v1568 = vmul.f32 %v1544, %v1558
        %v1569 = vmul.f32 %v1545, %v1558
        %v1570 = vmul.f32 %v1546, %v1558
        %v1571 = vmul.f32 %v1547, %v1558
        %v1572 = vmul.f32 %v1548, %v1558
        %v1573 = vmul.f32 %v1549, %v1558
        %v1574 = vmul.f32 %v1550, %v1558
        %v1575 = vmul.f32 %v1551, %v1558
        %s1576 = scalar_lea.vmem %s2, 1
        %v1577 = vld [vmem:[%s1576] sm:$0x1]
        %v1579 = vlaneseq
        %v1580 = vshrl.u32 %v1579, 7
        %v1581 = vsub.s32 0, %v1580
        %v1582 = vrot.slane %v1577, %v1581
        %v1584 = vadd.f32 %v1560, %v1582
        %v1585 = vadd.f32 %v1561, %v1582
        %v1586 = vadd.f32 %v1562, %v1582
        %v1587 = vadd.f32 %v1563, %v1582
        %v1588 = vadd.f32 %v1564, %v1582
        %v1589 = vadd.f32 %v1565, %v1582
        %v1590 = vadd.f32 %v1566, %v1582
        %v1591 = vadd.f32 %v1567, %v1582
        %v1592 = vadd.f32 %v1568, %v1582
        %v1593 = vadd.f32 %v1569, %v1582
        %v1594 = vadd.f32 %v1570, %v1582
        %v1595 = vadd.f32 %v1571, %v1582
        %v1596 = vadd.f32 %v1572, %v1582
        %v1597 = vadd.f32 %v1573, %v1582
        %v1598 = vadd.f32 %v1574, %v1582
        %v1599 = vadd.f32 %v1575, %v1582
        %s1600 = scalar_lea.vmem %s3, 128
        %v1601 = vld [vmem:[%s1600] sm:$0xff]
        %v1602 = vld [vmem:[%s1600 + $0x8] sm:$0xff]
        %v1603 = vld [vmem:[%s1600 + $0x10] sm:$0xff]
        %v1604 = vld [vmem:[%s1600 + $0x18] sm:$0xff]
        %v1605 = vld [vmem:[%s1600 + $0x20] sm:$0xff]
        %v1606 = vld [vmem:[%s1600 + $0x28] sm:$0xff]
        %v1607 = vld [vmem:[%s1600 + $0x30] sm:$0xff]
        %v1608 = vld [vmem:[%s1600 + $0x38] sm:$0xff]
        %v1609 = vld [vmem:[%s1600 + $0x40] sm:$0xff]
        %v1610 = vld [vmem:[%s1600 + $0x48] sm:$0xff]
        %v1611 = vld [vmem:[%s1600 + $0x50] sm:$0xff]
        %v1612 = vld [vmem:[%s1600 + $0x58] sm:$0xff]
        %v1613 = vld [vmem:[%s1600 + $0x60] sm:$0xff]
        %v1614 = vld [vmem:[%s1600 + $0x68] sm:$0xff]
        %v1615 = vld [vmem:[%s1600 + $0x70] sm:$0xff]
        %v1616 = vld [vmem:[%s1600 + $0x78] sm:$0xff]
        %1633 = vrot.lane.b32.xlu0 %v1584, 1
        %v1634 = vpop.permute.xlu0 %1633
        %1635 = vrot.lane.b32.xlu0 %v1585, 1
        %v1636 = vpop.permute.xlu0 %1635
        %1637 = vrot.lane.b32.xlu0 %v1586, 1
        %v1638 = vpop.permute.xlu0 %1637
        %1639 = vrot.lane.b32.xlu0 %v1587, 1
        %v1640 = vpop.permute.xlu0 %1639
        %1641 = vrot.lane.b32.xlu0 %v1588, 1
        %v1642 = vpop.permute.xlu0 %1641
        %1643 = vrot.lane.b32.xlu0 %v1589, 1
        %v1644 = vpop.permute.xlu0 %1643
        %1645 = vrot.lane.b32.xlu0 %v1590, 1
        %v1646 = vpop.permute.xlu0 %1645
        %1647 = vrot.lane.b32.xlu0 %v1591, 1
        %v1648 = vpop.permute.xlu0 %1647
        %1649 = vrot.lane.b32.xlu0 %v1592, 1
        %v1650 = vpop.permute.xlu0 %1649
        %1651 = vrot.lane.b32.xlu0 %v1593, 1
        %v1652 = vpop.permute.xlu0 %1651
        %1653 = vrot.lane.b32.xlu0 %v1594, 1
        %v1654 = vpop.permute.xlu0 %1653
        %1655 = vrot.lane.b32.xlu0 %v1595, 1
        %v1656 = vpop.permute.xlu0 %1655
        %1657 = vrot.lane.b32.xlu0 %v1596, 1
        %v1658 = vpop.permute.xlu0 %1657
        %1659 = vrot.lane.b32.xlu0 %v1597, 1
        %v1660 = vpop.permute.xlu0 %1659
        %1661 = vrot.lane.b32.xlu0 %v1598, 1
        %v1662 = vpop.permute.xlu0 %1661
        %1663 = vrot.lane.b32.xlu0 %v1599, 1
        %v1664 = vpop.permute.xlu0 %1663
        %v1681 = vsel %vm597, 0.0, %v1634
        %v1682 = vsel %vm597, 0.0, %v1636
        %v1683 = vsel %vm597, 0.0, %v1638
        %v1684 = vsel %vm597, 0.0, %v1640
        %v1685 = vsel %vm597, 0.0, %v1642
        %v1686 = vsel %vm597, 0.0, %v1644
        %v1687 = vsel %vm597, 0.0, %v1646
        %v1688 = vsel %vm597, 0.0, %v1648
        %v1689 = vsel %vm597, 0.0, %v1650
        %v1690 = vsel %vm597, 0.0, %v1652
        %v1691 = vsel %vm597, 0.0, %v1654
        %v1692 = vsel %vm597, 0.0, %v1656
        %v1693 = vsel %vm597, 0.0, %v1658
        %v1694 = vsel %vm597, 0.0, %v1660
        %v1695 = vsel %vm597, 0.0, %v1662
        %v1696 = vsel %vm597, 0.0, %v1664
        %1698 = vset.pattern.permute.xlu0 0
        %1699 = vperm.xlu0 %1698, %v1601
        %v1700 = vpop.permute.xlu0 %1699
        %1703 = vset.pattern.permute.xlu0 0
        %1704 = vperm.xlu0 %1703, %v1602
        %v1705 = vpop.permute.xlu0 %1704
        %1708 = vset.pattern.permute.xlu0 0
        %1709 = vperm.xlu0 %1708, %v1603
        %v1710 = vpop.permute.xlu0 %1709
        %1713 = vset.pattern.permute.xlu0 0
        %1714 = vperm.xlu0 %1713, %v1604
        %v1715 = vpop.permute.xlu0 %1714
        %1718 = vset.pattern.permute.xlu0 0
        %1719 = vperm.xlu0 %1718, %v1605
        %v1720 = vpop.permute.xlu0 %1719
        %1723 = vset.pattern.permute.xlu0 0
        %1724 = vperm.xlu0 %1723, %v1606
        %v1725 = vpop.permute.xlu0 %1724
        %1728 = vset.pattern.permute.xlu0 0
        %1729 = vperm.xlu0 %1728, %v1607
        %v1730 = vpop.permute.xlu0 %1729
        %1733 = vset.pattern.permute.xlu0 0
        %1734 = vperm.xlu0 %1733, %v1608
        %v1735 = vpop.permute.xlu0 %1734
        %1738 = vset.pattern.permute.xlu0 0
        %1739 = vperm.xlu0 %1738, %v1609
        %v1740 = vpop.permute.xlu0 %1739
        %1743 = vset.pattern.permute.xlu0 0
        %1744 = vperm.xlu0 %1743, %v1610
        %v1745 = vpop.permute.xlu0 %1744
        %1748 = vset.pattern.permute.xlu0 0
        %1749 = vperm.xlu0 %1748, %v1611
        %v1750 = vpop.permute.xlu0 %1749
        %1753 = vset.pattern.permute.xlu0 0
        %1754 = vperm.xlu0 %1753, %v1612
        %v1755 = vpop.permute.xlu0 %1754
        %1758 = vset.pattern.permute.xlu0 0
        %1759 = vperm.xlu0 %1758, %v1613
        %v1760 = vpop.permute.xlu0 %1759
        %1763 = vset.pattern.permute.xlu0 0
        %1764 = vperm.xlu0 %1763, %v1614
        %v1765 = vpop.permute.xlu0 %1764
        %1768 = vset.pattern.permute.xlu0 0
        %1769 = vperm.xlu0 %1768, %v1615
        %v1770 = vpop.permute.xlu0 %1769
        %1773 = vset.pattern.permute.xlu0 0
        %1774 = vperm.xlu0 %1773, %v1616
        %v1775 = vpop.permute.xlu0 %1774
        %v1777 = vmul.f32 %v1700, %v1681
        %v1778 = vmul.f32 %v1705, %v1682
        %v1779 = vmul.f32 %v1710, %v1683
        %v1780 = vmul.f32 %v1715, %v1684
        %v1781 = vmul.f32 %v1720, %v1685
        %v1782 = vmul.f32 %v1725, %v1686
        %v1783 = vmul.f32 %v1730, %v1687
        %v1784 = vmul.f32 %v1735, %v1688
        %v1785 = vmul.f32 %v1740, %v1689
        %v1786 = vmul.f32 %v1745, %v1690
        %v1787 = vmul.f32 %v1750, %v1691
        %v1788 = vmul.f32 %v1755, %v1692
        %v1789 = vmul.f32 %v1760, %v1693
        %v1790 = vmul.f32 %v1765, %v1694
        %v1791 = vmul.f32 %v1770, %v1695
        %v1792 = vmul.f32 %v1775, %v1696
        %1793 = vset.pattern.permute.xlu0 1
        %1794 = vperm.xlu0 %1793, %v1601
        %v1795 = vpop.permute.xlu0 %1794
        %1797 = vset.pattern.permute.xlu0 1
        %1798 = vperm.xlu0 %1797, %v1602
        %v1799 = vpop.permute.xlu0 %1798
        %1801 = vset.pattern.permute.xlu0 1
        %1802 = vperm.xlu0 %1801, %v1603
        %v1803 = vpop.permute.xlu0 %1802
        %1805 = vset.pattern.permute.xlu0 1
        %1806 = vperm.xlu0 %1805, %v1604
        %v1807 = vpop.permute.xlu0 %1806
        %1809 = vset.pattern.permute.xlu0 1
        %1810 = vperm.xlu0 %1809, %v1605
        %v1811 = vpop.permute.xlu0 %1810
        %1813 = vset.pattern.permute.xlu0 1
        %1814 = vperm.xlu0 %1813, %v1606
        %v1815 = vpop.permute.xlu0 %1814
        %1817 = vset.pattern.permute.xlu0 1
        %1818 = vperm.xlu0 %1817, %v1607
        %v1819 = vpop.permute.xlu0 %1818
        %1821 = vset.pattern.permute.xlu0 1
        %1822 = vperm.xlu0 %1821, %v1608
        %v1823 = vpop.permute.xlu0 %1822
        %1825 = vset.pattern.permute.xlu0 1
        %1826 = vperm.xlu0 %1825, %v1609
        %v1827 = vpop.permute.xlu0 %1826
        %1829 = vset.pattern.permute.xlu0 1
        %1830 = vperm.xlu0 %1829, %v1610
        %v1831 = vpop.permute.xlu0 %1830
        %1833 = vset.pattern.permute.xlu0 1
        %1834 = vperm.xlu0 %1833, %v1611
        %v1835 = vpop.permute.xlu0 %1834
        %1837 = vset.pattern.permute.xlu0 1
        %1838 = vperm.xlu0 %1837, %v1612
        %v1839 = vpop.permute.xlu0 %1838
        %1841 = vset.pattern.permute.xlu0 1
        %1842 = vperm.xlu0 %1841, %v1613
        %v1843 = vpop.permute.xlu0 %1842
        %1845 = vset.pattern.permute.xlu0 1
        %1846 = vperm.xlu0 %1845, %v1614
        %v1847 = vpop.permute.xlu0 %1846
        %1849 = vset.pattern.permute.xlu0 1
        %1850 = vperm.xlu0 %1849, %v1615
        %v1851 = vpop.permute.xlu0 %1850
        %1853 = vset.pattern.permute.xlu0 1
        %1854 = vperm.xlu0 %1853, %v1616
        %v1855 = vpop.permute.xlu0 %1854
        %v1857 = vmul.f32 %v1795, %v1584
        %v1858 = vmul.f32 %v1799, %v1585
        %v1859 = vmul.f32 %v1803, %v1586
        %v1860 = vmul.f32 %v1807, %v1587
        %v1861 = vmul.f32 %v1811, %v1588
        %v1862 = vmul.f32 %v1815, %v1589
        %v1863 = vmul.f32 %v1819, %v1590
        %v1864 = vmul.f32 %v1823, %v1591
        %v1865 = vmul.f32 %v1827, %v1592
        %v1866 = vmul.f32 %v1831, %v1593
        %v1867 = vmul.f32 %v1835, %v1594
        %v1868 = vmul.f32 %v1839, %v1595
        %v1869 = vmul.f32 %v1843, %v1596
        %v1870 = vmul.f32 %v1847, %v1597
        %v1871 = vmul.f32 %v1851, %v1598
        %v1872 = vmul.f32 %v1855, %v1599
        %v1873 = vadd.f32 %v1777, %v1857
        %v1874 = vadd.f32 %v1778, %v1858
        %v1875 = vadd.f32 %v1779, %v1859
        %v1876 = vadd.f32 %v1780, %v1860
        %v1877 = vadd.f32 %v1781, %v1861
        %v1878 = vadd.f32 %v1782, %v1862
        %v1879 = vadd.f32 %v1783, %v1863
        %v1880 = vadd.f32 %v1784, %v1864
        %v1881 = vadd.f32 %v1785, %v1865
        %v1882 = vadd.f32 %v1786, %v1866
        %v1883 = vadd.f32 %v1787, %v1867
        %v1884 = vadd.f32 %v1788, %v1868
        %v1885 = vadd.f32 %v1789, %v1869
        %v1886 = vadd.f32 %v1790, %v1870
        %v1887 = vadd.f32 %v1791, %v1871
        %v1888 = vadd.f32 %v1792, %v1872
        %1889 = vrot.lane.b32.xlu0 %v1584, 127
        %v1890 = vpop.permute.xlu0 %1889
        %1891 = vrot.lane.b32.xlu0 %v1585, 127
        %v1892 = vpop.permute.xlu0 %1891
        %1893 = vrot.lane.b32.xlu0 %v1586, 127
        %v1894 = vpop.permute.xlu0 %1893
        %1895 = vrot.lane.b32.xlu0 %v1587, 127
        %v1896 = vpop.permute.xlu0 %1895
        %1897 = vrot.lane.b32.xlu0 %v1588, 127
        %v1898 = vpop.permute.xlu0 %1897
        %1899 = vrot.lane.b32.xlu0 %v1589, 127
        %v1900 = vpop.permute.xlu0 %1899
        %1901 = vrot.lane.b32.xlu0 %v1590, 127
        %v1902 = vpop.permute.xlu0 %1901
        %1903 = vrot.lane.b32.xlu0 %v1591, 127
        %v1904 = vpop.permute.xlu0 %1903
        %1905 = vrot.lane.b32.xlu0 %v1592, 127
        %v1906 = vpop.permute.xlu0 %1905
        %1907 = vrot.lane.b32.xlu0 %v1593, 127
        %v1908 = vpop.permute.xlu0 %1907
        %1909 = vrot.lane.b32.xlu0 %v1594, 127
        %v1910 = vpop.permute.xlu0 %1909
        %1911 = vrot.lane.b32.xlu0 %v1595, 127
        %v1912 = vpop.permute.xlu0 %1911
        %1913 = vrot.lane.b32.xlu0 %v1596, 127
        %v1914 = vpop.permute.xlu0 %1913
        %1915 = vrot.lane.b32.xlu0 %v1597, 127
        %v1916 = vpop.permute.xlu0 %1915
        %1917 = vrot.lane.b32.xlu0 %v1598, 127
        %v1918 = vpop.permute.xlu0 %1917
        %1919 = vrot.lane.b32.xlu0 %v1599, 127
        %v1920 = vpop.permute.xlu0 %1919
        %v1937 = vsel %vm854, %v1890, 0.0
        %v1938 = vsel %vm854, %v1892, 0.0
        %v1939 = vsel %vm854, %v1894, 0.0
        %v1940 = vsel %vm854, %v1896, 0.0
        %v1941 = vsel %vm854, %v1898, 0.0
        %v1942 = vsel %vm854, %v1900, 0.0
        %v1943 = vsel %vm854, %v1902, 0.0
        %v1944 = vsel %vm854, %v1904, 0.0
        %v1945 = vsel %vm854, %v1906, 0.0
        %v1946 = vsel %vm854, %v1908, 0.0
        %v1947 = vsel %vm854, %v1910, 0.0
        %v1948 = vsel %vm854, %v1912, 0.0
        %v1949 = vsel %vm854, %v1914, 0.0
        %v1950 = vsel %vm854, %v1916, 0.0
        %v1951 = vsel %vm854, %v1918, 0.0
        %v1952 = vsel %vm854, %v1920, 0.0
        %1953 = vset.pattern.permute.xlu0 2
        %1954 = vperm.xlu0 %1953, %v1601
        %v1955 = vpop.permute.xlu0 %1954
        %1957 = vset.pattern.permute.xlu0 2
        %1958 = vperm.xlu0 %1957, %v1602
        %v1959 = vpop.permute.xlu0 %1958
        %1961 = vset.pattern.permute.xlu0 2
        %1962 = vperm.xlu0 %1961, %v1603
        %v1963 = vpop.permute.xlu0 %1962
        %1965 = vset.pattern.permute.xlu0 2
        %1966 = vperm.xlu0 %1965, %v1604
        %v1967 = vpop.permute.xlu0 %1966
        %1969 = vset.pattern.permute.xlu0 2
        %1970 = vperm.xlu0 %1969, %v1605
        %v1971 = vpop.permute.xlu0 %1970
        %1973 = vset.pattern.permute.xlu0 2
        %1974 = vperm.xlu0 %1973, %v1606
        %v1975 = vpop.permute.xlu0 %1974
        %1977 = vset.pattern.permute.xlu0 2
        %1978 = vperm.xlu0 %1977, %v1607
        %v1979 = vpop.permute.xlu0 %1978
        %1981 = vset.pattern.permute.xlu0 2
        %1982 = vperm.xlu0 %1981, %v1608
        %v1983 = vpop.permute.xlu0 %1982
        %1985 = vset.pattern.permute.xlu0 2
        %1986 = vperm.xlu0 %1985, %v1609
        %v1987 = vpop.permute.xlu0 %1986
        %1989 = vset.pattern.permute.xlu0 2
        %1990 = vperm.xlu0 %1989, %v1610
        %v1991 = vpop.permute.xlu0 %1990
        %1993 = vset.pattern.permute.xlu0 2
        %1994 = vperm.xlu0 %1993, %v1611
        %v1995 = vpop.permute.xlu0 %1994
        %1997 = vset.pattern.permute.xlu0 2
        %1998 = vperm.xlu0 %1997, %v1612
        %v1999 = vpop.permute.xlu0 %1998
        %2001 = vset.pattern.permute.xlu0 2
        %2002 = vperm.xlu0 %2001, %v1613
        %v2003 = vpop.permute.xlu0 %2002
        %2005 = vset.pattern.permute.xlu0 2
        %2006 = vperm.xlu0 %2005, %v1614
        %v2007 = vpop.permute.xlu0 %2006
        %2009 = vset.pattern.permute.xlu0 2
        %2010 = vperm.xlu0 %2009, %v1615
        %v2011 = vpop.permute.xlu0 %2010
        %2013 = vset.pattern.permute.xlu0 2
        %2014 = vperm.xlu0 %2013, %v1616
        %v2015 = vpop.permute.xlu0 %2014
        %v2017 = vmul.f32 %v1955, %v1937
        %v2018 = vmul.f32 %v1959, %v1938
        %v2019 = vmul.f32 %v1963, %v1939
        %v2020 = vmul.f32 %v1967, %v1940
        %v2021 = vmul.f32 %v1971, %v1941
        %v2022 = vmul.f32 %v1975, %v1942
        %v2023 = vmul.f32 %v1979, %v1943
        %v2024 = vmul.f32 %v1983, %v1944
        %v2025 = vmul.f32 %v1987, %v1945
        %v2026 = vmul.f32 %v1991, %v1946
        %v2027 = vmul.f32 %v1995, %v1947
        %v2028 = vmul.f32 %v1999, %v1948
        %v2029 = vmul.f32 %v2003, %v1949
        %v2030 = vmul.f32 %v2007, %v1950
        %v2031 = vmul.f32 %v2011, %v1951
        %v2032 = vmul.f32 %v2015, %v1952
        %v2033 = vadd.f32 %v1873, %v2017
        %v2034 = vadd.f32 %v1874, %v2018
        %v2035 = vadd.f32 %v1875, %v2019
        %v2036 = vadd.f32 %v1876, %v2020
        %v2037 = vadd.f32 %v1877, %v2021
        %v2038 = vadd.f32 %v1878, %v2022
        %v2039 = vadd.f32 %v1879, %v2023
        %v2040 = vadd.f32 %v1880, %v2024
        %v2041 = vadd.f32 %v1881, %v2025
        %v2042 = vadd.f32 %v1882, %v2026
        %v2043 = vadd.f32 %v1883, %v2027
        %v2044 = vadd.f32 %v1884, %v2028
        %v2045 = vadd.f32 %v1885, %v2029
        %v2046 = vadd.f32 %v1886, %v2030
        %v2047 = vadd.f32 %v1887, %v2031
        %v2048 = vadd.f32 %v1888, %v2032
        %s2049 = scalar_lea.vmem %s4, 128
        %v2050 = vld [vmem:[%s2049] sm:$0xff]
        %v2051 = vld [vmem:[%s2049 + $0x8] sm:$0xff]
        %v2052 = vld [vmem:[%s2049 + $0x10] sm:$0xff]
        %v2053 = vld [vmem:[%s2049 + $0x18] sm:$0xff]
        %v2054 = vld [vmem:[%s2049 + $0x20] sm:$0xff]
        %v2055 = vld [vmem:[%s2049 + $0x28] sm:$0xff]
        %v2056 = vld [vmem:[%s2049 + $0x30] sm:$0xff]
        %v2057 = vld [vmem:[%s2049 + $0x38] sm:$0xff]
        %v2058 = vld [vmem:[%s2049 + $0x40] sm:$0xff]
        %v2059 = vld [vmem:[%s2049 + $0x48] sm:$0xff]
        %v2060 = vld [vmem:[%s2049 + $0x50] sm:$0xff]
        %v2061 = vld [vmem:[%s2049 + $0x58] sm:$0xff]
        %v2062 = vld [vmem:[%s2049 + $0x60] sm:$0xff]
        %v2063 = vld [vmem:[%s2049 + $0x68] sm:$0xff]
        %v2064 = vld [vmem:[%s2049 + $0x70] sm:$0xff]
        %v2065 = vld [vmem:[%s2049 + $0x78] sm:$0xff]
        %2067 = vset.pattern.permute.xlu0 0
        %2068 = vperm.xlu0 %2067, %v2050
        %v2069 = vpop.permute.xlu0 %2068
        %2072 = vset.pattern.permute.xlu0 0
        %2073 = vperm.xlu0 %2072, %v2051
        %v2074 = vpop.permute.xlu0 %2073
        %2077 = vset.pattern.permute.xlu0 0
        %2078 = vperm.xlu0 %2077, %v2052
        %v2079 = vpop.permute.xlu0 %2078
        %2082 = vset.pattern.permute.xlu0 0
        %2083 = vperm.xlu0 %2082, %v2053
        %v2084 = vpop.permute.xlu0 %2083
        %2087 = vset.pattern.permute.xlu0 0
        %2088 = vperm.xlu0 %2087, %v2054
        %v2089 = vpop.permute.xlu0 %2088
        %2092 = vset.pattern.permute.xlu0 0
        %2093 = vperm.xlu0 %2092, %v2055
        %v2094 = vpop.permute.xlu0 %2093
        %2097 = vset.pattern.permute.xlu0 0
        %2098 = vperm.xlu0 %2097, %v2056
        %v2099 = vpop.permute.xlu0 %2098
        %2102 = vset.pattern.permute.xlu0 0
        %2103 = vperm.xlu0 %2102, %v2057
        %v2104 = vpop.permute.xlu0 %2103
        %2107 = vset.pattern.permute.xlu0 0
        %2108 = vperm.xlu0 %2107, %v2058
        %v2109 = vpop.permute.xlu0 %2108
        %2112 = vset.pattern.permute.xlu0 0
        %2113 = vperm.xlu0 %2112, %v2059
        %v2114 = vpop.permute.xlu0 %2113
        %2117 = vset.pattern.permute.xlu0 0
        %2118 = vperm.xlu0 %2117, %v2060
        %v2119 = vpop.permute.xlu0 %2118
        %2122 = vset.pattern.permute.xlu0 0
        %2123 = vperm.xlu0 %2122, %v2061
        %v2124 = vpop.permute.xlu0 %2123
        %2127 = vset.pattern.permute.xlu0 0
        %2128 = vperm.xlu0 %2127, %v2062
        %v2129 = vpop.permute.xlu0 %2128
        %2132 = vset.pattern.permute.xlu0 0
        %2133 = vperm.xlu0 %2132, %v2063
        %v2134 = vpop.permute.xlu0 %2133
        %2137 = vset.pattern.permute.xlu0 0
        %2138 = vperm.xlu0 %2137, %v2064
        %v2139 = vpop.permute.xlu0 %2138
        %2142 = vset.pattern.permute.xlu0 0
        %2143 = vperm.xlu0 %2142, %v2065
        %v2144 = vpop.permute.xlu0 %2143
        %v2146 = vadd.f32 %v2033, %v2069
        %v2147 = vadd.f32 %v2034, %v2074
        %v2148 = vadd.f32 %v2035, %v2079
        %v2149 = vadd.f32 %v2036, %v2084
        %v2150 = vadd.f32 %v2037, %v2089
        %v2151 = vadd.f32 %v2038, %v2094
        %v2152 = vadd.f32 %v2039, %v2099
        %v2153 = vadd.f32 %v2040, %v2104
        %v2154 = vadd.f32 %v2041, %v2109
        %v2155 = vadd.f32 %v2042, %v2114
        %v2156 = vadd.f32 %v2043, %v2119
        %v2157 = vadd.f32 %v2044, %v2124
        %v2158 = vadd.f32 %v2045, %v2129
        %v2159 = vadd.f32 %v2046, %v2134
        %v2160 = vadd.f32 %v2047, %v2139
        %v2161 = vadd.f32 %v2048, %v2144
        %s2162 = scalar_lea.vmem %s5, 64
        %v2163 = vld [vmem:[%s2162] sm:$0xf]
        %v2164 = vld [vmem:[%s2162 + $0x4] sm:$0xf]
        %v2165 = vld [vmem:[%s2162 + $0x8] sm:$0xf]
        %v2166 = vld [vmem:[%s2162 + $0xc] sm:$0xf]
        %v2167 = vld [vmem:[%s2162 + $0x10] sm:$0xf]
        %v2168 = vld [vmem:[%s2162 + $0x14] sm:$0xf]
        %v2169 = vld [vmem:[%s2162 + $0x18] sm:$0xf]
        %v2170 = vld [vmem:[%s2162 + $0x1c] sm:$0xf]
        %v2171 = vld [vmem:[%s2162 + $0x20] sm:$0xf]
        %v2172 = vld [vmem:[%s2162 + $0x24] sm:$0xf]
        %v2173 = vld [vmem:[%s2162 + $0x28] sm:$0xf]
        %v2174 = vld [vmem:[%s2162 + $0x2c] sm:$0xf]
        %v2175 = vld [vmem:[%s2162 + $0x30] sm:$0xf]
        %v2176 = vld [vmem:[%s2162 + $0x34] sm:$0xf]
        %v2177 = vld [vmem:[%s2162 + $0x38] sm:$0xf]
        %v2178 = vld [vmem:[%s2162 + $0x3c] sm:$0xf]
        %v2179 = vpack.c.bf16 %v2147, %v2146
        %v2180 = vpack.c.bf16 %v2149, %v2148
        %v2181 = vpack.c.bf16 %v2151, %v2150
        %v2182 = vpack.c.bf16 %v2153, %v2152
        %v2183 = vpack.c.bf16 %v2155, %v2154
        %v2184 = vpack.c.bf16 %v2157, %v2156
        %v2185 = vpack.c.bf16 %v2159, %v2158
        %v2186 = vpack.c.bf16 %v2161, %v2160
        %s2187 = scalar_lea.vmem %s6, 128
        %v2188 = vld [vmem:[%s2187] sm:$0xff]
        %v2189 = vld [vmem:[%s2187 + $0x8] sm:$0xff]
        %v2190 = vld [vmem:[%s2187 + $0x10] sm:$0xff]
        %v2191 = vld [vmem:[%s2187 + $0x18] sm:$0xff]
        %v2192 = vld [vmem:[%s2187 + $0x20] sm:$0xff]
        %v2193 = vld [vmem:[%s2187 + $0x28] sm:$0xff]
        %v2194 = vld [vmem:[%s2187 + $0x30] sm:$0xff]
        %v2195 = vld [vmem:[%s2187 + $0x38] sm:$0xff]
        %v2196 = vld [vmem:[%s2187 + $0x40] sm:$0xff]
        %v2197 = vld [vmem:[%s2187 + $0x48] sm:$0xff]
        %v2198 = vld [vmem:[%s2187 + $0x50] sm:$0xff]
        %v2199 = vld [vmem:[%s2187 + $0x58] sm:$0xff]
        %v2200 = vld [vmem:[%s2187 + $0x60] sm:$0xff]
        %v2201 = vld [vmem:[%s2187 + $0x68] sm:$0xff]
        %v2202 = vld [vmem:[%s2187 + $0x70] sm:$0xff]
        %v2203 = vld [vmem:[%s2187 + $0x78] sm:$0xff]
        %2205 = vset.pattern.permute.xlu0 0
        %2206 = vperm.xlu0 %2205, %v2188
        %v2207 = vpop.permute.xlu0 %2206
        %2210 = vset.pattern.permute.xlu0 0
        %2211 = vperm.xlu0 %2210, %v2189
        %v2212 = vpop.permute.xlu0 %2211
        %2215 = vset.pattern.permute.xlu0 0
        %2216 = vperm.xlu0 %2215, %v2190
        %v2217 = vpop.permute.xlu0 %2216
        %2220 = vset.pattern.permute.xlu0 0
        %2221 = vperm.xlu0 %2220, %v2191
        %v2222 = vpop.permute.xlu0 %2221
        %2225 = vset.pattern.permute.xlu0 0
        %2226 = vperm.xlu0 %2225, %v2192
        %v2227 = vpop.permute.xlu0 %2226
        %2230 = vset.pattern.permute.xlu0 0
        %2231 = vperm.xlu0 %2230, %v2193
        %v2232 = vpop.permute.xlu0 %2231
        %2235 = vset.pattern.permute.xlu0 0
        %2236 = vperm.xlu0 %2235, %v2194
        %v2237 = vpop.permute.xlu0 %2236
        %2240 = vset.pattern.permute.xlu0 0
        %2241 = vperm.xlu0 %2240, %v2195
        %v2242 = vpop.permute.xlu0 %2241
        %2245 = vset.pattern.permute.xlu0 0
        %2246 = vperm.xlu0 %2245, %v2196
        %v2247 = vpop.permute.xlu0 %2246
        %2250 = vset.pattern.permute.xlu0 0
        %2251 = vperm.xlu0 %2250, %v2197
        %v2252 = vpop.permute.xlu0 %2251
        %2255 = vset.pattern.permute.xlu0 0
        %2256 = vperm.xlu0 %2255, %v2198
        %v2257 = vpop.permute.xlu0 %2256
        %2260 = vset.pattern.permute.xlu0 0
        %2261 = vperm.xlu0 %2260, %v2199
        %v2262 = vpop.permute.xlu0 %2261
        %2265 = vset.pattern.permute.xlu0 0
        %2266 = vperm.xlu0 %2265, %v2200
        %v2267 = vpop.permute.xlu0 %2266
        %2270 = vset.pattern.permute.xlu0 0
        %2271 = vperm.xlu0 %2270, %v2201
        %v2272 = vpop.permute.xlu0 %2271
        %2275 = vset.pattern.permute.xlu0 0
        %2276 = vperm.xlu0 %2275, %v2202
        %v2277 = vpop.permute.xlu0 %2276
        %2280 = vset.pattern.permute.xlu0 0
        %2281 = vperm.xlu0 %2280, %v2203
        %v2282 = vpop.permute.xlu0 %2281
        %v2300 = vunpack.c.l.b16 %v2163
        %v2301 = vunpack.c.l.b16 %v2164
        %v2302 = vunpack.c.l.b16 %v2165
        %v2303 = vunpack.c.l.b16 %v2166
        %v2304 = vunpack.c.l.b16 %v2167
        %v2305 = vunpack.c.l.b16 %v2168
        %v2306 = vunpack.c.l.b16 %v2169
        %v2307 = vunpack.c.l.b16 %v2170
        %v2308 = vunpack.c.l.b16 %v2171
        %v2309 = vunpack.c.l.b16 %v2172
        %v2310 = vunpack.c.l.b16 %v2173
        %v2311 = vunpack.c.l.b16 %v2174
        %v2312 = vunpack.c.l.b16 %v2175
        %v2313 = vunpack.c.l.b16 %v2176
        %v2314 = vunpack.c.l.b16 %v2177
        %v2315 = vunpack.c.l.b16 %v2178
        %v2316 = vpack.c.b16 %v2301, %v2300
        %v2317 = vpack.c.b16 %v2303, %v2302
        %v2318 = vpack.c.b16 %v2305, %v2304
        %v2319 = vpack.c.b16 %v2307, %v2306
        %v2320 = vpack.c.b16 %v2309, %v2308
        %v2321 = vpack.c.b16 %v2311, %v2310
        %v2322 = vpack.c.b16 %v2313, %v2312
        %v2323 = vpack.c.b16 %v2315, %v2314
        %2332 = vmatprep.subr.bf16.mxu0 0
        %2333 = vmatpush1.bf16.msra.mxu0 %v2186
        %2334 = vmatprep.subr.bf16.mxu0 0
        %2335 = vmatpush1.bf16.msra.mxu0 %v2185
        %2336 = vmatprep.subr.bf16.mxu0 0
        %2337 = vmatpush1.bf16.msra.mxu0 %v2184
        %2338 = vmatprep.subr.bf16.mxu0 0
        %2339 = vmatpush1.bf16.msra.mxu0 %v2183
        %2340 = vmatprep.subr.bf16.mxu0 0
        %2341 = vmatpush1.bf16.msra.mxu0 %v2182
        %2342 = vmatprep.subr.bf16.mxu0 0
        %2343 = vmatpush1.bf16.msra.mxu0 %v2181
        %2344 = vmatprep.subr.bf16.mxu0 0
        %2345 = vmatpush1.bf16.msra.mxu0 %v2180
        %2346 = vmatprep.subr.bf16.mxu0 0
        %2347 = vmatpush1.bf16.msra.mxu0 %v2179
        %2348 = vmatprep.subr.bf16.mxu0 0
        %2349 = vmatpush2.bf16.msra.mxu0 0
        %2350 = vmatprep.subr.bf16.mxu0 0
        %2351 = vmatpush2.bf16.msra.mxu0 0
        %2352 = vmatprep.subr.bf16.mxu0 0
        %2353 = vmatpush2.bf16.msra.mxu0 0
        %2354 = vmatprep.subr.bf16.mxu0 0
        %2355 = vmatpush2.bf16.msra.mxu0 0
        %2356 = vmatprep.subr.bf16.mxu0 0
        %2357 = vmatpush2.bf16.msra.mxu0 0
        %2358 = vmatprep.subr.bf16.mxu0 0
        %2359 = vmatpush2.bf16.msra.mxu0 0
        %2360 = vmatprep.subr.bf16.mxu0 0
        %2361 = vmatpush2.bf16.msra.mxu0 0
        %2362 = vmatprep.subr.bf16.mxu0 0
        %2363 = vmatpush2.bf16.msra.mxu0 0
        %2364 = vmatprep.mubr.bf16.mxu0 0
        %2365 = vmatmul.mubr.bf16.gmra.mxu0 %v2316
        %v2366 = vpop.f32.mrf.mxu0
        %v2367 = vadd.f32 %v2207, %v2366
        %v2368 = vpop.f32.mrf.mxu0
        %v2369 = vpop.f32.mrf.mxu0
        %v2370 = vadd.f32 %v2212, %v2369
        %v2371 = vpop.f32.mrf.mxu0
        %2372 = vmatprep.mubr.bf16.mxu0 0
        %2373 = vmatmul.mubr.bf16.gmra.mxu0 %v2317
        %v2374 = vpop.f32.mrf.mxu0
        %v2375 = vadd.f32 %v2217, %v2374
        %v2376 = vpop.f32.mrf.mxu0
        %v2377 = vpop.f32.mrf.mxu0
        %v2378 = vadd.f32 %v2222, %v2377
        %v2379 = vpop.f32.mrf.mxu0
        %2380 = vmatprep.mubr.bf16.mxu0 0
        %2381 = vmatmul.mubr.bf16.gmra.mxu0 %v2318
        %v2382 = vpop.f32.mrf.mxu0
        %v2383 = vadd.f32 %v2227, %v2382
        %v2384 = vpop.f32.mrf.mxu0
        %v2385 = vpop.f32.mrf.mxu0
        %v2386 = vadd.f32 %v2232, %v2385
        %v2387 = vpop.f32.mrf.mxu0
        %2388 = vmatprep.mubr.bf16.mxu0 0
        %2389 = vmatmul.mubr.bf16.gmra.mxu0 %v2319
        %v2390 = vpop.f32.mrf.mxu0
        %v2391 = vadd.f32 %v2237, %v2390
        %v2392 = vpop.f32.mrf.mxu0
        %v2393 = vpop.f32.mrf.mxu0
        %v2394 = vadd.f32 %v2242, %v2393
        %v2395 = vpop.f32.mrf.mxu0
        %2396 = vmatprep.mubr.bf16.mxu0 0
        %2397 = vmatmul.mubr.bf16.gmra.mxu0 %v2320
        %v2398 = vpop.f32.mrf.mxu0
        %v2399 = vadd.f32 %v2247, %v2398
        %v2400 = vpop.f32.mrf.mxu0
        %v2401 = vpop.f32.mrf.mxu0
        %v2402 = vadd.f32 %v2252, %v2401
        %v2403 = vpop.f32.mrf.mxu0
        %2404 = vmatprep.mubr.bf16.mxu0 0
        %2405 = vmatmul.mubr.bf16.gmra.mxu0 %v2321
        %v2406 = vpop.f32.mrf.mxu0
        %v2407 = vadd.f32 %v2257, %v2406
        %v2408 = vpop.f32.mrf.mxu0
        %v2409 = vpop.f32.mrf.mxu0
        %v2410 = vadd.f32 %v2262, %v2409
        %v2411 = vpop.f32.mrf.mxu0
        %2412 = vmatprep.mubr.bf16.mxu0 0
        %2413 = vmatmul.mubr.bf16.gmra.mxu0 %v2322
        %v2414 = vpop.f32.mrf.mxu0
        %v2415 = vadd.f32 %v2267, %v2414
        %v2416 = vpop.f32.mrf.mxu0
        %v2417 = vpop.f32.mrf.mxu0
        %v2418 = vadd.f32 %v2272, %v2417
        %v2419 = vpop.f32.mrf.mxu0
        %2420 = vmatprep.mubr.bf16.mxu0 0
        %2421 = vmatmul.mubr.bf16.gmra.mxu0 %v2323
        %v2422 = vpop.f32.mrf.mxu0
        %v2423 = vadd.f32 %v2277, %v2422
        %v2424 = vpop.f32.mrf.mxu0
        %v2425 = vpop.f32.mrf.mxu0
        %v2426 = vadd.f32 %v2282, %v2425
        %v2427 = vpop.f32.mrf.mxu0
        %2428 = vdwg.mxu0
        %v2429 = vmax.f32 %v2367, 0.0
        %v2430 = vmax.f32 %v2370, 0.0
        %v2431 = vmax.f32 %v2375, 0.0
        %v2432 = vmax.f32 %v2378, 0.0
        %v2433 = vmax.f32 %v2383, 0.0
        %v2434 = vmax.f32 %v2386, 0.0
        %v2435 = vmax.f32 %v2391, 0.0
        %v2436 = vmax.f32 %v2394, 0.0
        %v2437 = vmax.f32 %v2399, 0.0
        %v2438 = vmax.f32 %v2402, 0.0
        %v2439 = vmax.f32 %v2407, 0.0
        %v2440 = vmax.f32 %v2410, 0.0
        %v2441 = vmax.f32 %v2415, 0.0
        %v2442 = vmax.f32 %v2418, 0.0
        %v2443 = vmax.f32 %v2423, 0.0
        %v2444 = vmax.f32 %v2426, 0.0
        %v2445 = vadd.f32 %v2429, %v1360
        %v2446 = vadd.f32 %v2430, %v1361
        %v2447 = vadd.f32 %v2431, %v1362
        %v2448 = vadd.f32 %v2432, %v1363
        %v2449 = vadd.f32 %v2433, %v1364
        %v2450 = vadd.f32 %v2434, %v1365
        %v2451 = vadd.f32 %v2435, %v1366
        %v2452 = vadd.f32 %v2436, %v1367
        %v2453 = vadd.f32 %v2437, %v1368
        %v2454 = vadd.f32 %v2438, %v1369
        %v2455 = vadd.f32 %v2439, %v1370
        %v2456 = vadd.f32 %v2440, %v1371
        %v2457 = vadd.f32 %v2441, %v1372
        %v2458 = vadd.f32 %v2442, %v1373
        %v2459 = vadd.f32 %v2443, %v1374
        %v2460 = vadd.f32 %v2444, %v1375
        %2461 = vadd.xlane.f32.xlu0 %v2445
        %v2462 = vpop.xlane.xlu0 %2461
        %2463 = vadd.xlane.f32.xlu0 %v2446
        %v2464 = vpop.xlane.xlu0 %2463
        %2465 = vadd.xlane.f32.xlu0 %v2447
        %v2466 = vpop.xlane.xlu0 %2465
        %2467 = vadd.xlane.f32.xlu0 %v2448
        %v2468 = vpop.xlane.xlu0 %2467
        %2469 = vadd.xlane.f32.xlu0 %v2449
        %v2470 = vpop.xlane.xlu0 %2469
        %2471 = vadd.xlane.f32.xlu0 %v2450
        %v2472 = vpop.xlane.xlu0 %2471
        %2473 = vadd.xlane.f32.xlu0 %v2451
        %v2474 = vpop.xlane.xlu0 %2473
        %2475 = vadd.xlane.f32.xlu0 %v2452
        %v2476 = vpop.xlane.xlu0 %2475
        %2477 = vadd.xlane.f32.xlu0 %v2453
        %v2478 = vpop.xlane.xlu0 %2477
        %2479 = vadd.xlane.f32.xlu0 %v2454
        %v2480 = vpop.xlane.xlu0 %2479
        %2481 = vadd.xlane.f32.xlu0 %v2455
        %v2482 = vpop.xlane.xlu0 %2481
        %2483 = vadd.xlane.f32.xlu0 %v2456
        %v2484 = vpop.xlane.xlu0 %2483
        %2485 = vadd.xlane.f32.xlu0 %v2457
        %v2486 = vpop.xlane.xlu0 %2485
        %2487 = vadd.xlane.f32.xlu0 %v2458
        %v2488 = vpop.xlane.xlu0 %2487
        %2489 = vadd.xlane.f32.xlu0 %v2459
        %v2490 = vpop.xlane.xlu0 %2489
        %2491 = vadd.xlane.f32.xlu0 %v2460
        %v2492 = vpop.xlane.xlu0 %2491
        %v2493 = vmul.f32 %v2462, %v326
        %v2494 = vmul.f32 %v2464, %v326
        %v2495 = vmul.f32 %v2466, %v326
        %v2496 = vmul.f32 %v2468, %v326
        %v2497 = vmul.f32 %v2470, %v326
        %v2498 = vmul.f32 %v2472, %v326
        %v2499 = vmul.f32 %v2474, %v326
        %v2500 = vmul.f32 %v2476, %v326
        %v2501 = vmul.f32 %v2478, %v326
        %v2502 = vmul.f32 %v2480, %v326
        %v2503 = vmul.f32 %v2482, %v326
        %v2504 = vmul.f32 %v2484, %v326
        %v2505 = vmul.f32 %v2486, %v326
        %v2506 = vmul.f32 %v2488, %v326
        %v2507 = vmul.f32 %v2490, %v326
        %v2508 = vmul.f32 %v2492, %v326
        %v2509 = vsub.f32 %v2445, %v2493
        %v2510 = vsub.f32 %v2446, %v2494
        %v2511 = vsub.f32 %v2447, %v2495
        %v2512 = vsub.f32 %v2448, %v2496
        %v2513 = vsub.f32 %v2449, %v2497
        %v2514 = vsub.f32 %v2450, %v2498
        %v2515 = vsub.f32 %v2451, %v2499
        %v2516 = vsub.f32 %v2452, %v2500
        %v2517 = vsub.f32 %v2453, %v2501
        %v2518 = vsub.f32 %v2454, %v2502
        %v2519 = vsub.f32 %v2455, %v2503
        %v2520 = vsub.f32 %v2456, %v2504
        %v2521 = vsub.f32 %v2457, %v2505
        %v2522 = vsub.f32 %v2458, %v2506
        %v2523 = vsub.f32 %v2459, %v2507
        %v2524 = vsub.f32 %v2460, %v2508
        %v2525 = vmul.f32 %v2509, %v2509
        %v2526 = vmul.f32 %v2510, %v2510
        %v2527 = vmul.f32 %v2511, %v2511
        %v2528 = vmul.f32 %v2512, %v2512
        %v2529 = vmul.f32 %v2513, %v2513
        %v2530 = vmul.f32 %v2514, %v2514
        %v2531 = vmul.f32 %v2515, %v2515
        %v2532 = vmul.f32 %v2516, %v2516
        %v2533 = vmul.f32 %v2517, %v2517
        %v2534 = vmul.f32 %v2518, %v2518
        %v2535 = vmul.f32 %v2519, %v2519
        %v2536 = vmul.f32 %v2520, %v2520
        %v2537 = vmul.f32 %v2521, %v2521
        %v2538 = vmul.f32 %v2522, %v2522
        %v2539 = vmul.f32 %v2523, %v2523
        %v2540 = vmul.f32 %v2524, %v2524
        %2541 = vadd.xlane.f32.xlu0 %v2525
        %v2542 = vpop.xlane.xlu0 %2541
        %2543 = vadd.xlane.f32.xlu0 %v2526
        %v2544 = vpop.xlane.xlu0 %2543
        %2545 = vadd.xlane.f32.xlu0 %v2527
        %v2546 = vpop.xlane.xlu0 %2545
        %2547 = vadd.xlane.f32.xlu0 %v2528
        %v2548 = vpop.xlane.xlu0 %2547
        %2549 = vadd.xlane.f32.xlu0 %v2529
        %v2550 = vpop.xlane.xlu0 %2549
        %2551 = vadd.xlane.f32.xlu0 %v2530
        %v2552 = vpop.xlane.xlu0 %2551
        %2553 = vadd.xlane.f32.xlu0 %v2531
        %v2554 = vpop.xlane.xlu0 %2553
        %2555 = vadd.xlane.f32.xlu0 %v2532
        %v2556 = vpop.xlane.xlu0 %2555
        %2557 = vadd.xlane.f32.xlu0 %v2533
        %v2558 = vpop.xlane.xlu0 %2557
        %2559 = vadd.xlane.f32.xlu0 %v2534
        %v2560 = vpop.xlane.xlu0 %2559
        %2561 = vadd.xlane.f32.xlu0 %v2535
        %v2562 = vpop.xlane.xlu0 %2561
        %2563 = vadd.xlane.f32.xlu0 %v2536
        %v2564 = vpop.xlane.xlu0 %2563
        %2565 = vadd.xlane.f32.xlu0 %v2537
        %v2566 = vpop.xlane.xlu0 %2565
        %2567 = vadd.xlane.f32.xlu0 %v2538
        %v2568 = vpop.xlane.xlu0 %2567
        %2569 = vadd.xlane.f32.xlu0 %v2539
        %v2570 = vpop.xlane.xlu0 %2569
        %2571 = vadd.xlane.f32.xlu0 %v2540
        %v2572 = vpop.xlane.xlu0 %2571
        %v2573 = vmul.f32 %v2542, %v326
        %v2574 = vmul.f32 %v2544, %v326
        %v2575 = vmul.f32 %v2546, %v326
        %v2576 = vmul.f32 %v2548, %v326
        %v2577 = vmul.f32 %v2550, %v326
        %v2578 = vmul.f32 %v2552, %v326
        %v2579 = vmul.f32 %v2554, %v326
        %v2580 = vmul.f32 %v2556, %v326
        %v2581 = vmul.f32 %v2558, %v326
        %v2582 = vmul.f32 %v2560, %v326
        %v2583 = vmul.f32 %v2562, %v326
        %v2584 = vmul.f32 %v2564, %v326
        %v2585 = vmul.f32 %v2566, %v326
        %v2586 = vmul.f32 %v2568, %v326
        %v2587 = vmul.f32 %v2570, %v326
        %v2588 = vmul.f32 %v2572, %v326
        %v2589 = vadd.f32 %v2573, 1e-06
        %v2590 = vadd.f32 %v2574, 1e-06
        %v2591 = vadd.f32 %v2575, 1e-06
        %v2592 = vadd.f32 %v2576, 1e-06
        %v2593 = vadd.f32 %v2577, 1e-06
        %v2594 = vadd.f32 %v2578, 1e-06
        %v2595 = vadd.f32 %v2579, 1e-06
        %v2596 = vadd.f32 %v2580, 1e-06
        %v2597 = vadd.f32 %v2581, 1e-06
        %v2598 = vadd.f32 %v2582, 1e-06
        %v2599 = vadd.f32 %v2583, 1e-06
        %v2600 = vadd.f32 %v2584, 1e-06
        %v2601 = vadd.f32 %v2585, 1e-06
        %v2602 = vadd.f32 %v2586, 1e-06
        %v2603 = vadd.f32 %v2587, 1e-06
        %v2604 = vadd.f32 %v2588, 1e-06
        %v2605 = vrsqrt.pop %v2589
        %v2606 = vrsqrt.pop %v2590
        %v2607 = vrsqrt.pop %v2591
        %v2608 = vrsqrt.pop %v2592
        %v2609 = vrsqrt.pop %v2593
        %v2610 = vrsqrt.pop %v2594
        %v2611 = vrsqrt.pop %v2595
        %v2612 = vrsqrt.pop %v2596
        %v2613 = vrsqrt.pop %v2597
        %v2614 = vrsqrt.pop %v2598
        %v2615 = vrsqrt.pop %v2599
        %v2616 = vrsqrt.pop %v2600
        %v2617 = vrsqrt.pop %v2601
        %v2618 = vrsqrt.pop %v2602
        %v2619 = vrsqrt.pop %v2603
        %v2620 = vrsqrt.pop %v2604
        %v2621 = vmul.f32 %v2509, %v2605
        %v2622 = vmul.f32 %v2510, %v2606
        %v2623 = vmul.f32 %v2511, %v2607
        %v2624 = vmul.f32 %v2512, %v2608
        %v2625 = vmul.f32 %v2513, %v2609
        %v2626 = vmul.f32 %v2514, %v2610
        %v2627 = vmul.f32 %v2515, %v2611
        %v2628 = vmul.f32 %v2516, %v2612
        %v2629 = vmul.f32 %v2517, %v2613
        %v2630 = vmul.f32 %v2518, %v2614
        %v2631 = vmul.f32 %v2519, %v2615
        %v2632 = vmul.f32 %v2520, %v2616
        %v2633 = vmul.f32 %v2521, %v2617
        %v2634 = vmul.f32 %v2522, %v2618
        %v2635 = vmul.f32 %v2523, %v2619
        %v2636 = vmul.f32 %v2524, %v2620
        %s2637 = scalar_lea.vmem %s1, 2
        %v2638 = vld [vmem:[%s2637] sm:$0x1]
        %v2640 = vlaneseq
        %v2641 = vshrl.u32 %v2640, 7
        %v2642 = vsub.s32 0, %v2641
        %v2643 = vrot.slane %v2638, %v2642
        %v2645 = vmul.f32 %v2621, %v2643
        %v2646 = vmul.f32 %v2622, %v2643
        %v2647 = vmul.f32 %v2623, %v2643
        %v2648 = vmul.f32 %v2624, %v2643
        %v2649 = vmul.f32 %v2625, %v2643
        %v2650 = vmul.f32 %v2626, %v2643
        %v2651 = vmul.f32 %v2627, %v2643
        %v2652 = vmul.f32 %v2628, %v2643
        %v2653 = vmul.f32 %v2629, %v2643
        %v2654 = vmul.f32 %v2630, %v2643
        %v2655 = vmul.f32 %v2631, %v2643
        %v2656 = vmul.f32 %v2632, %v2643
        %v2657 = vmul.f32 %v2633, %v2643
        %v2658 = vmul.f32 %v2634, %v2643
        %v2659 = vmul.f32 %v2635, %v2643
        %v2660 = vmul.f32 %v2636, %v2643
        %s2661 = scalar_lea.vmem %s2, 2
        %v2662 = vld [vmem:[%s2661] sm:$0x1]
        %v2664 = vlaneseq
        %v2665 = vshrl.u32 %v2664, 7
        %v2666 = vsub.s32 0, %v2665
        %v2667 = vrot.slane %v2662, %v2666
        %v2669 = vadd.f32 %v2645, %v2667
        %v2670 = vadd.f32 %v2646, %v2667
        %v2671 = vadd.f32 %v2647, %v2667
        %v2672 = vadd.f32 %v2648, %v2667
        %v2673 = vadd.f32 %v2649, %v2667
        %v2674 = vadd.f32 %v2650, %v2667
        %v2675 = vadd.f32 %v2651, %v2667
        %v2676 = vadd.f32 %v2652, %v2667
        %v2677 = vadd.f32 %v2653, %v2667
        %v2678 = vadd.f32 %v2654, %v2667
        %v2679 = vadd.f32 %v2655, %v2667
        %v2680 = vadd.f32 %v2656, %v2667
        %v2681 = vadd.f32 %v2657, %v2667
        %v2682 = vadd.f32 %v2658, %v2667
        %v2683 = vadd.f32 %v2659, %v2667
        %v2684 = vadd.f32 %v2660, %v2667
        %s2685 = scalar_lea.vmem %s3, 256
        %v2686 = vld [vmem:[%s2685] sm:$0xff]
        %v2687 = vld [vmem:[%s2685 + $0x8] sm:$0xff]
        %v2688 = vld [vmem:[%s2685 + $0x10] sm:$0xff]
        %v2689 = vld [vmem:[%s2685 + $0x18] sm:$0xff]
        %v2690 = vld [vmem:[%s2685 + $0x20] sm:$0xff]
        %v2691 = vld [vmem:[%s2685 + $0x28] sm:$0xff]
        %v2692 = vld [vmem:[%s2685 + $0x30] sm:$0xff]
        %v2693 = vld [vmem:[%s2685 + $0x38] sm:$0xff]
        %v2694 = vld [vmem:[%s2685 + $0x40] sm:$0xff]
        %v2695 = vld [vmem:[%s2685 + $0x48] sm:$0xff]
        %v2696 = vld [vmem:[%s2685 + $0x50] sm:$0xff]
        %v2697 = vld [vmem:[%s2685 + $0x58] sm:$0xff]
        %v2698 = vld [vmem:[%s2685 + $0x60] sm:$0xff]
        %v2699 = vld [vmem:[%s2685 + $0x68] sm:$0xff]
        %v2700 = vld [vmem:[%s2685 + $0x70] sm:$0xff]
        %v2701 = vld [vmem:[%s2685 + $0x78] sm:$0xff]
        %2718 = vrot.lane.b32.xlu0 %v2669, 1
        %v2719 = vpop.permute.xlu0 %2718
        %2720 = vrot.lane.b32.xlu0 %v2670, 1
        %v2721 = vpop.permute.xlu0 %2720
        %2722 = vrot.lane.b32.xlu0 %v2671, 1
        %v2723 = vpop.permute.xlu0 %2722
        %2724 = vrot.lane.b32.xlu0 %v2672, 1
        %v2725 = vpop.permute.xlu0 %2724
        %2726 = vrot.lane.b32.xlu0 %v2673, 1
        %v2727 = vpop.permute.xlu0 %2726
        %2728 = vrot.lane.b32.xlu0 %v2674, 1
        %v2729 = vpop.permute.xlu0 %2728
        %2730 = vrot.lane.b32.xlu0 %v2675, 1
        %v2731 = vpop.permute.xlu0 %2730
        %2732 = vrot.lane.b32.xlu0 %v2676, 1
        %v2733 = vpop.permute.xlu0 %2732
        %2734 = vrot.lane.b32.xlu0 %v2677, 1
        %v2735 = vpop.permute.xlu0 %2734
        %2736 = vrot.lane.b32.xlu0 %v2678, 1
        %v2737 = vpop.permute.xlu0 %2736
        %2738 = vrot.lane.b32.xlu0 %v2679, 1
        %v2739 = vpop.permute.xlu0 %2738
        %2740 = vrot.lane.b32.xlu0 %v2680, 1
        %v2741 = vpop.permute.xlu0 %2740
        %2742 = vrot.lane.b32.xlu0 %v2681, 1
        %v2743 = vpop.permute.xlu0 %2742
        %2744 = vrot.lane.b32.xlu0 %v2682, 1
        %v2745 = vpop.permute.xlu0 %2744
        %2746 = vrot.lane.b32.xlu0 %v2683, 1
        %v2747 = vpop.permute.xlu0 %2746
        %2748 = vrot.lane.b32.xlu0 %v2684, 1
        %v2749 = vpop.permute.xlu0 %2748
        %v2766 = vsel %vm597, 0.0, %v2719
        %v2767 = vsel %vm597, 0.0, %v2721
        %v2768 = vsel %vm597, 0.0, %v2723
        %v2769 = vsel %vm597, 0.0, %v2725
        %v2770 = vsel %vm597, 0.0, %v2727
        %v2771 = vsel %vm597, 0.0, %v2729
        %v2772 = vsel %vm597, 0.0, %v2731
        %v2773 = vsel %vm597, 0.0, %v2733
        %v2774 = vsel %vm597, 0.0, %v2735
        %v2775 = vsel %vm597, 0.0, %v2737
        %v2776 = vsel %vm597, 0.0, %v2739
        %v2777 = vsel %vm597, 0.0, %v2741
        %v2778 = vsel %vm597, 0.0, %v2743
        %v2779 = vsel %vm597, 0.0, %v2745
        %v2780 = vsel %vm597, 0.0, %v2747
        %v2781 = vsel %vm597, 0.0, %v2749
        %2783 = vset.pattern.permute.xlu0 0
        %2784 = vperm.xlu0 %2783, %v2686
        %v2785 = vpop.permute.xlu0 %2784
        %2788 = vset.pattern.permute.xlu0 0
        %2789 = vperm.xlu0 %2788, %v2687
        %v2790 = vpop.permute.xlu0 %2789
        %2793 = vset.pattern.permute.xlu0 0
        %2794 = vperm.xlu0 %2793, %v2688
        %v2795 = vpop.permute.xlu0 %2794
        %2798 = vset.pattern.permute.xlu0 0
        %2799 = vperm.xlu0 %2798, %v2689
        %v2800 = vpop.permute.xlu0 %2799
        %2803 = vset.pattern.permute.xlu0 0
        %2804 = vperm.xlu0 %2803, %v2690
        %v2805 = vpop.permute.xlu0 %2804
        %2808 = vset.pattern.permute.xlu0 0
        %2809 = vperm.xlu0 %2808, %v2691
        %v2810 = vpop.permute.xlu0 %2809
        %2813 = vset.pattern.permute.xlu0 0
        %2814 = vperm.xlu0 %2813, %v2692
        %v2815 = vpop.permute.xlu0 %2814
        %2818 = vset.pattern.permute.xlu0 0
        %2819 = vperm.xlu0 %2818, %v2693
        %v2820 = vpop.permute.xlu0 %2819
        %2823 = vset.pattern.permute.xlu0 0
        %2824 = vperm.xlu0 %2823, %v2694
        %v2825 = vpop.permute.xlu0 %2824
        %2828 = vset.pattern.permute.xlu0 0
        %2829 = vperm.xlu0 %2828, %v2695
        %v2830 = vpop.permute.xlu0 %2829
        %2833 = vset.pattern.permute.xlu0 0
        %2834 = vperm.xlu0 %2833, %v2696
        %v2835 = vpop.permute.xlu0 %2834
        %2838 = vset.pattern.permute.xlu0 0
        %2839 = vperm.xlu0 %2838, %v2697
        %v2840 = vpop.permute.xlu0 %2839
        %2843 = vset.pattern.permute.xlu0 0
        %2844 = vperm.xlu0 %2843, %v2698
        %v2845 = vpop.permute.xlu0 %2844
        %2848 = vset.pattern.permute.xlu0 0
        %2849 = vperm.xlu0 %2848, %v2699
        %v2850 = vpop.permute.xlu0 %2849
        %2853 = vset.pattern.permute.xlu0 0
        %2854 = vperm.xlu0 %2853, %v2700
        %v2855 = vpop.permute.xlu0 %2854
        %2858 = vset.pattern.permute.xlu0 0
        %2859 = vperm.xlu0 %2858, %v2701
        %v2860 = vpop.permute.xlu0 %2859
        %v2862 = vmul.f32 %v2785, %v2766
        %v2863 = vmul.f32 %v2790, %v2767
        %v2864 = vmul.f32 %v2795, %v2768
        %v2865 = vmul.f32 %v2800, %v2769
        %v2866 = vmul.f32 %v2805, %v2770
        %v2867 = vmul.f32 %v2810, %v2771
        %v2868 = vmul.f32 %v2815, %v2772
        %v2869 = vmul.f32 %v2820, %v2773
        %v2870 = vmul.f32 %v2825, %v2774
        %v2871 = vmul.f32 %v2830, %v2775
        %v2872 = vmul.f32 %v2835, %v2776
        %v2873 = vmul.f32 %v2840, %v2777
        %v2874 = vmul.f32 %v2845, %v2778
        %v2875 = vmul.f32 %v2850, %v2779
        %v2876 = vmul.f32 %v2855, %v2780
        %v2877 = vmul.f32 %v2860, %v2781
        %2878 = vset.pattern.permute.xlu0 1
        %2879 = vperm.xlu0 %2878, %v2686
        %v2880 = vpop.permute.xlu0 %2879
        %2882 = vset.pattern.permute.xlu0 1
        %2883 = vperm.xlu0 %2882, %v2687
        %v2884 = vpop.permute.xlu0 %2883
        %2886 = vset.pattern.permute.xlu0 1
        %2887 = vperm.xlu0 %2886, %v2688
        %v2888 = vpop.permute.xlu0 %2887
        %2890 = vset.pattern.permute.xlu0 1
        %2891 = vperm.xlu0 %2890, %v2689
        %v2892 = vpop.permute.xlu0 %2891
        %2894 = vset.pattern.permute.xlu0 1
        %2895 = vperm.xlu0 %2894, %v2690
        %v2896 = vpop.permute.xlu0 %2895
        %2898 = vset.pattern.permute.xlu0 1
        %2899 = vperm.xlu0 %2898, %v2691
        %v2900 = vpop.permute.xlu0 %2899
        %2902 = vset.pattern.permute.xlu0 1
        %2903 = vperm.xlu0 %2902, %v2692
        %v2904 = vpop.permute.xlu0 %2903
        %2906 = vset.pattern.permute.xlu0 1
        %2907 = vperm.xlu0 %2906, %v2693
        %v2908 = vpop.permute.xlu0 %2907
        %2910 = vset.pattern.permute.xlu0 1
        %2911 = vperm.xlu0 %2910, %v2694
        %v2912 = vpop.permute.xlu0 %2911
        %2914 = vset.pattern.permute.xlu0 1
        %2915 = vperm.xlu0 %2914, %v2695
        %v2916 = vpop.permute.xlu0 %2915
        %2918 = vset.pattern.permute.xlu0 1
        %2919 = vperm.xlu0 %2918, %v2696
        %v2920 = vpop.permute.xlu0 %2919
        %2922 = vset.pattern.permute.xlu0 1
        %2923 = vperm.xlu0 %2922, %v2697
        %v2924 = vpop.permute.xlu0 %2923
        %2926 = vset.pattern.permute.xlu0 1
        %2927 = vperm.xlu0 %2926, %v2698
        %v2928 = vpop.permute.xlu0 %2927
        %2930 = vset.pattern.permute.xlu0 1
        %2931 = vperm.xlu0 %2930, %v2699
        %v2932 = vpop.permute.xlu0 %2931
        %2934 = vset.pattern.permute.xlu0 1
        %2935 = vperm.xlu0 %2934, %v2700
        %v2936 = vpop.permute.xlu0 %2935
        %2938 = vset.pattern.permute.xlu0 1
        %2939 = vperm.xlu0 %2938, %v2701
        %v2940 = vpop.permute.xlu0 %2939
        %v2942 = vmul.f32 %v2880, %v2669
        %v2943 = vmul.f32 %v2884, %v2670
        %v2944 = vmul.f32 %v2888, %v2671
        %v2945 = vmul.f32 %v2892, %v2672
        %v2946 = vmul.f32 %v2896, %v2673
        %v2947 = vmul.f32 %v2900, %v2674
        %v2948 = vmul.f32 %v2904, %v2675
        %v2949 = vmul.f32 %v2908, %v2676
        %v2950 = vmul.f32 %v2912, %v2677
        %v2951 = vmul.f32 %v2916, %v2678
        %v2952 = vmul.f32 %v2920, %v2679
        %v2953 = vmul.f32 %v2924, %v2680
        %v2954 = vmul.f32 %v2928, %v2681
        %v2955 = vmul.f32 %v2932, %v2682
        %v2956 = vmul.f32 %v2936, %v2683
        %v2957 = vmul.f32 %v2940, %v2684
        %v2958 = vadd.f32 %v2862, %v2942
        %v2959 = vadd.f32 %v2863, %v2943
        %v2960 = vadd.f32 %v2864, %v2944
        %v2961 = vadd.f32 %v2865, %v2945
        %v2962 = vadd.f32 %v2866, %v2946
        %v2963 = vadd.f32 %v2867, %v2947
        %v2964 = vadd.f32 %v2868, %v2948
        %v2965 = vadd.f32 %v2869, %v2949
        %v2966 = vadd.f32 %v2870, %v2950
        %v2967 = vadd.f32 %v2871, %v2951
        %v2968 = vadd.f32 %v2872, %v2952
        %v2969 = vadd.f32 %v2873, %v2953
        %v2970 = vadd.f32 %v2874, %v2954
        %v2971 = vadd.f32 %v2875, %v2955
        %v2972 = vadd.f32 %v2876, %v2956
        %v2973 = vadd.f32 %v2877, %v2957
        %2974 = vrot.lane.b32.xlu0 %v2669, 127
        %v2975 = vpop.permute.xlu0 %2974
        %2976 = vrot.lane.b32.xlu0 %v2670, 127
        %v2977 = vpop.permute.xlu0 %2976
        %2978 = vrot.lane.b32.xlu0 %v2671, 127
        %v2979 = vpop.permute.xlu0 %2978
        %2980 = vrot.lane.b32.xlu0 %v2672, 127
        %v2981 = vpop.permute.xlu0 %2980
        %2982 = vrot.lane.b32.xlu0 %v2673, 127
        %v2983 = vpop.permute.xlu0 %2982
        %2984 = vrot.lane.b32.xlu0 %v2674, 127
        %v2985 = vpop.permute.xlu0 %2984
        %2986 = vrot.lane.b32.xlu0 %v2675, 127
        %v2987 = vpop.permute.xlu0 %2986
        %2988 = vrot.lane.b32.xlu0 %v2676, 127
        %v2989 = vpop.permute.xlu0 %2988
        %2990 = vrot.lane.b32.xlu0 %v2677, 127
        %v2991 = vpop.permute.xlu0 %2990
        %2992 = vrot.lane.b32.xlu0 %v2678, 127
        %v2993 = vpop.permute.xlu0 %2992
        %2994 = vrot.lane.b32.xlu0 %v2679, 127
        %v2995 = vpop.permute.xlu0 %2994
        %2996 = vrot.lane.b32.xlu0 %v2680, 127
        %v2997 = vpop.permute.xlu0 %2996
        %2998 = vrot.lane.b32.xlu0 %v2681, 127
        %v2999 = vpop.permute.xlu0 %2998
        %3000 = vrot.lane.b32.xlu0 %v2682, 127
        %v3001 = vpop.permute.xlu0 %3000
        %3002 = vrot.lane.b32.xlu0 %v2683, 127
        %v3003 = vpop.permute.xlu0 %3002
        %3004 = vrot.lane.b32.xlu0 %v2684, 127
        %v3005 = vpop.permute.xlu0 %3004
        %v3022 = vsel %vm854, %v2975, 0.0
        %v3023 = vsel %vm854, %v2977, 0.0
        %v3024 = vsel %vm854, %v2979, 0.0
        %v3025 = vsel %vm854, %v2981, 0.0
        %v3026 = vsel %vm854, %v2983, 0.0
        %v3027 = vsel %vm854, %v2985, 0.0
        %v3028 = vsel %vm854, %v2987, 0.0
        %v3029 = vsel %vm854, %v2989, 0.0
        %v3030 = vsel %vm854, %v2991, 0.0
        %v3031 = vsel %vm854, %v2993, 0.0
        %v3032 = vsel %vm854, %v2995, 0.0
        %v3033 = vsel %vm854, %v2997, 0.0
        %v3034 = vsel %vm854, %v2999, 0.0
        %v3035 = vsel %vm854, %v3001, 0.0
        %v3036 = vsel %vm854, %v3003, 0.0
        %v3037 = vsel %vm854, %v3005, 0.0
        %3038 = vset.pattern.permute.xlu0 2
        %3039 = vperm.xlu0 %3038, %v2686
        %v3040 = vpop.permute.xlu0 %3039
        %3042 = vset.pattern.permute.xlu0 2
        %3043 = vperm.xlu0 %3042, %v2687
        %v3044 = vpop.permute.xlu0 %3043
        %3046 = vset.pattern.permute.xlu0 2
        %3047 = vperm.xlu0 %3046, %v2688
        %v3048 = vpop.permute.xlu0 %3047
        %3050 = vset.pattern.permute.xlu0 2
        %3051 = vperm.xlu0 %3050, %v2689
        %v3052 = vpop.permute.xlu0 %3051
        %3054 = vset.pattern.permute.xlu0 2
        %3055 = vperm.xlu0 %3054, %v2690
        %v3056 = vpop.permute.xlu0 %3055
        %3058 = vset.pattern.permute.xlu0 2
        %3059 = vperm.xlu0 %3058, %v2691
        %v3060 = vpop.permute.xlu0 %3059
        %3062 = vset.pattern.permute.xlu0 2
        %3063 = vperm.xlu0 %3062, %v2692
        %v3064 = vpop.permute.xlu0 %3063
        %3066 = vset.pattern.permute.xlu0 2
        %3067 = vperm.xlu0 %3066, %v2693
        %v3068 = vpop.permute.xlu0 %3067
        %3070 = vset.pattern.permute.xlu0 2
        %3071 = vperm.xlu0 %3070, %v2694
        %v3072 = vpop.permute.xlu0 %3071
        %3074 = vset.pattern.permute.xlu0 2
        %3075 = vperm.xlu0 %3074, %v2695
        %v3076 = vpop.permute.xlu0 %3075
        %3078 = vset.pattern.permute.xlu0 2
        %3079 = vperm.xlu0 %3078, %v2696
        %v3080 = vpop.permute.xlu0 %3079
        %3082 = vset.pattern.permute.xlu0 2
        %3083 = vperm.xlu0 %3082, %v2697
        %v3084 = vpop.permute.xlu0 %3083
        %3086 = vset.pattern.permute.xlu0 2
        %3087 = vperm.xlu0 %3086, %v2698
        %v3088 = vpop.permute.xlu0 %3087
        %3090 = vset.pattern.permute.xlu0 2
        %3091 = vperm.xlu0 %3090, %v2699
        %v3092 = vpop.permute.xlu0 %3091
        %3094 = vset.pattern.permute.xlu0 2
        %3095 = vperm.xlu0 %3094, %v2700
        %v3096 = vpop.permute.xlu0 %3095
        %3098 = vset.pattern.permute.xlu0 2
        %3099 = vperm.xlu0 %3098, %v2701
        %v3100 = vpop.permute.xlu0 %3099
        %v3102 = vmul.f32 %v3040, %v3022
        %v3103 = vmul.f32 %v3044, %v3023
        %v3104 = vmul.f32 %v3048, %v3024
        %v3105 = vmul.f32 %v3052, %v3025
        %v3106 = vmul.f32 %v3056, %v3026
        %v3107 = vmul.f32 %v3060, %v3027
        %v3108 = vmul.f32 %v3064, %v3028
        %v3109 = vmul.f32 %v3068, %v3029
        %v3110 = vmul.f32 %v3072, %v3030
        %v3111 = vmul.f32 %v3076, %v3031
        %v3112 = vmul.f32 %v3080, %v3032
        %v3113 = vmul.f32 %v3084, %v3033
        %v3114 = vmul.f32 %v3088, %v3034
        %v3115 = vmul.f32 %v3092, %v3035
        %v3116 = vmul.f32 %v3096, %v3036
        %v3117 = vmul.f32 %v3100, %v3037
        %v3118 = vadd.f32 %v2958, %v3102
        %v3119 = vadd.f32 %v2959, %v3103
        %v3120 = vadd.f32 %v2960, %v3104
        %v3121 = vadd.f32 %v2961, %v3105
        %v3122 = vadd.f32 %v2962, %v3106
        %v3123 = vadd.f32 %v2963, %v3107
        %v3124 = vadd.f32 %v2964, %v3108
        %v3125 = vadd.f32 %v2965, %v3109
        %v3126 = vadd.f32 %v2966, %v3110
        %v3127 = vadd.f32 %v2967, %v3111
        %v3128 = vadd.f32 %v2968, %v3112
        %v3129 = vadd.f32 %v2969, %v3113
        %v3130 = vadd.f32 %v2970, %v3114
        %v3131 = vadd.f32 %v2971, %v3115
        %v3132 = vadd.f32 %v2972, %v3116
        %v3133 = vadd.f32 %v2973, %v3117
        %s3134 = scalar_lea.vmem %s4, 256
        %v3135 = vld [vmem:[%s3134] sm:$0xff]
        %v3136 = vld [vmem:[%s3134 + $0x8] sm:$0xff]
        %v3137 = vld [vmem:[%s3134 + $0x10] sm:$0xff]
        %v3138 = vld [vmem:[%s3134 + $0x18] sm:$0xff]
        %v3139 = vld [vmem:[%s3134 + $0x20] sm:$0xff]
        %v3140 = vld [vmem:[%s3134 + $0x28] sm:$0xff]
        %v3141 = vld [vmem:[%s3134 + $0x30] sm:$0xff]
        %v3142 = vld [vmem:[%s3134 + $0x38] sm:$0xff]
        %v3143 = vld [vmem:[%s3134 + $0x40] sm:$0xff]
        %v3144 = vld [vmem:[%s3134 + $0x48] sm:$0xff]
        %v3145 = vld [vmem:[%s3134 + $0x50] sm:$0xff]
        %v3146 = vld [vmem:[%s3134 + $0x58] sm:$0xff]
        %v3147 = vld [vmem:[%s3134 + $0x60] sm:$0xff]
        %v3148 = vld [vmem:[%s3134 + $0x68] sm:$0xff]
        %v3149 = vld [vmem:[%s3134 + $0x70] sm:$0xff]
        %v3150 = vld [vmem:[%s3134 + $0x78] sm:$0xff]
        %3152 = vset.pattern.permute.xlu0 0
        %3153 = vperm.xlu0 %3152, %v3135
        %v3154 = vpop.permute.xlu0 %3153
        %3157 = vset.pattern.permute.xlu0 0
        %3158 = vperm.xlu0 %3157, %v3136
        %v3159 = vpop.permute.xlu0 %3158
        %3162 = vset.pattern.permute.xlu0 0
        %3163 = vperm.xlu0 %3162, %v3137
        %v3164 = vpop.permute.xlu0 %3163
        %3167 = vset.pattern.permute.xlu0 0
        %3168 = vperm.xlu0 %3167, %v3138
        %v3169 = vpop.permute.xlu0 %3168
        %3172 = vset.pattern.permute.xlu0 0
        %3173 = vperm.xlu0 %3172, %v3139
        %v3174 = vpop.permute.xlu0 %3173
        %3177 = vset.pattern.permute.xlu0 0
        %3178 = vperm.xlu0 %3177, %v3140
        %v3179 = vpop.permute.xlu0 %3178
        %3182 = vset.pattern.permute.xlu0 0
        %3183 = vperm.xlu0 %3182, %v3141
        %v3184 = vpop.permute.xlu0 %3183
        %3187 = vset.pattern.permute.xlu0 0
        %3188 = vperm.xlu0 %3187, %v3142
        %v3189 = vpop.permute.xlu0 %3188
        %3192 = vset.pattern.permute.xlu0 0
        %3193 = vperm.xlu0 %3192, %v3143
        %v3194 = vpop.permute.xlu0 %3193
        %3197 = vset.pattern.permute.xlu0 0
        %3198 = vperm.xlu0 %3197, %v3144
        %v3199 = vpop.permute.xlu0 %3198
        %3202 = vset.pattern.permute.xlu0 0
        %3203 = vperm.xlu0 %3202, %v3145
        %v3204 = vpop.permute.xlu0 %3203
        %3207 = vset.pattern.permute.xlu0 0
        %3208 = vperm.xlu0 %3207, %v3146
        %v3209 = vpop.permute.xlu0 %3208
        %3212 = vset.pattern.permute.xlu0 0
        %3213 = vperm.xlu0 %3212, %v3147
        %v3214 = vpop.permute.xlu0 %3213
        %3217 = vset.pattern.permute.xlu0 0
        %3218 = vperm.xlu0 %3217, %v3148
        %v3219 = vpop.permute.xlu0 %3218
        %3222 = vset.pattern.permute.xlu0 0
        %3223 = vperm.xlu0 %3222, %v3149
        %v3224 = vpop.permute.xlu0 %3223
        %3227 = vset.pattern.permute.xlu0 0
        %3228 = vperm.xlu0 %3227, %v3150
        %v3229 = vpop.permute.xlu0 %3228
        %v3231 = vadd.f32 %v3118, %v3154
        %v3232 = vadd.f32 %v3119, %v3159
        %v3233 = vadd.f32 %v3120, %v3164
        %v3234 = vadd.f32 %v3121, %v3169
        %v3235 = vadd.f32 %v3122, %v3174
        %v3236 = vadd.f32 %v3123, %v3179
        %v3237 = vadd.f32 %v3124, %v3184
        %v3238 = vadd.f32 %v3125, %v3189
        %v3239 = vadd.f32 %v3126, %v3194
        %v3240 = vadd.f32 %v3127, %v3199
        %v3241 = vadd.f32 %v3128, %v3204
        %v3242 = vadd.f32 %v3129, %v3209
        %v3243 = vadd.f32 %v3130, %v3214
        %v3244 = vadd.f32 %v3131, %v3219
        %v3245 = vadd.f32 %v3132, %v3224
        %v3246 = vadd.f32 %v3133, %v3229
        %s3247 = scalar_lea.vmem %s5, 128
        %v3248 = vld [vmem:[%s3247] sm:$0xf]
        %v3249 = vld [vmem:[%s3247 + $0x4] sm:$0xf]
        %v3250 = vld [vmem:[%s3247 + $0x8] sm:$0xf]
        %v3251 = vld [vmem:[%s3247 + $0xc] sm:$0xf]
        %v3252 = vld [vmem:[%s3247 + $0x10] sm:$0xf]
        %v3253 = vld [vmem:[%s3247 + $0x14] sm:$0xf]
        %v3254 = vld [vmem:[%s3247 + $0x18] sm:$0xf]
        %v3255 = vld [vmem:[%s3247 + $0x1c] sm:$0xf]
        %v3256 = vld [vmem:[%s3247 + $0x20] sm:$0xf]
        %v3257 = vld [vmem:[%s3247 + $0x24] sm:$0xf]
        %v3258 = vld [vmem:[%s3247 + $0x28] sm:$0xf]
        %v3259 = vld [vmem:[%s3247 + $0x2c] sm:$0xf]
        %v3260 = vld [vmem:[%s3247 + $0x30] sm:$0xf]
        %v3261 = vld [vmem:[%s3247 + $0x34] sm:$0xf]
        %v3262 = vld [vmem:[%s3247 + $0x38] sm:$0xf]
        %v3263 = vld [vmem:[%s3247 + $0x3c] sm:$0xf]
        %v3264 = vpack.c.bf16 %v3232, %v3231
        %v3265 = vpack.c.bf16 %v3234, %v3233
        %v3266 = vpack.c.bf16 %v3236, %v3235
        %v3267 = vpack.c.bf16 %v3238, %v3237
        %v3268 = vpack.c.bf16 %v3240, %v3239
        %v3269 = vpack.c.bf16 %v3242, %v3241
        %v3270 = vpack.c.bf16 %v3244, %v3243
        %v3271 = vpack.c.bf16 %v3246, %v3245
        %s3272 = scalar_lea.vmem %s6, 256
        %v3273 = vld [vmem:[%s3272] sm:$0xff]
        %v3274 = vld [vmem:[%s3272 + $0x8] sm:$0xff]
        %v3275 = vld [vmem:[%s3272 + $0x10] sm:$0xff]
        %v3276 = vld [vmem:[%s3272 + $0x18] sm:$0xff]
        %v3277 = vld [vmem:[%s3272 + $0x20] sm:$0xff]
        %v3278 = vld [vmem:[%s3272 + $0x28] sm:$0xff]
        %v3279 = vld [vmem:[%s3272 + $0x30] sm:$0xff]
        %v3280 = vld [vmem:[%s3272 + $0x38] sm:$0xff]
        %v3281 = vld [vmem:[%s3272 + $0x40] sm:$0xff]
        %v3282 = vld [vmem:[%s3272 + $0x48] sm:$0xff]
        %v3283 = vld [vmem:[%s3272 + $0x50] sm:$0xff]
        %v3284 = vld [vmem:[%s3272 + $0x58] sm:$0xff]
        %v3285 = vld [vmem:[%s3272 + $0x60] sm:$0xff]
        %v3286 = vld [vmem:[%s3272 + $0x68] sm:$0xff]
        %v3287 = vld [vmem:[%s3272 + $0x70] sm:$0xff]
        %v3288 = vld [vmem:[%s3272 + $0x78] sm:$0xff]
        %3290 = vset.pattern.permute.xlu0 0
        %3291 = vperm.xlu0 %3290, %v3273
        %v3292 = vpop.permute.xlu0 %3291
        %3295 = vset.pattern.permute.xlu0 0
        %3296 = vperm.xlu0 %3295, %v3274
        %v3297 = vpop.permute.xlu0 %3296
        %3300 = vset.pattern.permute.xlu0 0
        %3301 = vperm.xlu0 %3300, %v3275
        %v3302 = vpop.permute.xlu0 %3301
        %3305 = vset.pattern.permute.xlu0 0
        %3306 = vperm.xlu0 %3305, %v3276
        %v3307 = vpop.permute.xlu0 %3306
        %3310 = vset.pattern.permute.xlu0 0
        %3311 = vperm.xlu0 %3310, %v3277
        %v3312 = vpop.permute.xlu0 %3311
        %3315 = vset.pattern.permute.xlu0 0
        %3316 = vperm.xlu0 %3315, %v3278
        %v3317 = vpop.permute.xlu0 %3316
        %3320 = vset.pattern.permute.xlu0 0
        %3321 = vperm.xlu0 %3320, %v3279
        %v3322 = vpop.permute.xlu0 %3321
        %3325 = vset.pattern.permute.xlu0 0
        %3326 = vperm.xlu0 %3325, %v3280
        %v3327 = vpop.permute.xlu0 %3326
        %3330 = vset.pattern.permute.xlu0 0
        %3331 = vperm.xlu0 %3330, %v3281
        %v3332 = vpop.permute.xlu0 %3331
        %3335 = vset.pattern.permute.xlu0 0
        %3336 = vperm.xlu0 %3335, %v3282
        %v3337 = vpop.permute.xlu0 %3336
        %3340 = vset.pattern.permute.xlu0 0
        %3341 = vperm.xlu0 %3340, %v3283
        %v3342 = vpop.permute.xlu0 %3341
        %3345 = vset.pattern.permute.xlu0 0
        %3346 = vperm.xlu0 %3345, %v3284
        %v3347 = vpop.permute.xlu0 %3346
        %3350 = vset.pattern.permute.xlu0 0
        %3351 = vperm.xlu0 %3350, %v3285
        %v3352 = vpop.permute.xlu0 %3351
        %3355 = vset.pattern.permute.xlu0 0
        %3356 = vperm.xlu0 %3355, %v3286
        %v3357 = vpop.permute.xlu0 %3356
        %3360 = vset.pattern.permute.xlu0 0
        %3361 = vperm.xlu0 %3360, %v3287
        %v3362 = vpop.permute.xlu0 %3361
        %3365 = vset.pattern.permute.xlu0 0
        %3366 = vperm.xlu0 %3365, %v3288
        %v3367 = vpop.permute.xlu0 %3366
        %v3385 = vunpack.c.l.b16 %v3248
        %v3386 = vunpack.c.l.b16 %v3249
        %v3387 = vunpack.c.l.b16 %v3250
        %v3388 = vunpack.c.l.b16 %v3251
        %v3389 = vunpack.c.l.b16 %v3252
        %v3390 = vunpack.c.l.b16 %v3253
        %v3391 = vunpack.c.l.b16 %v3254
        %v3392 = vunpack.c.l.b16 %v3255
        %v3393 = vunpack.c.l.b16 %v3256
        %v3394 = vunpack.c.l.b16 %v3257
        %v3395 = vunpack.c.l.b16 %v3258
        %v3396 = vunpack.c.l.b16 %v3259
        %v3397 = vunpack.c.l.b16 %v3260
        %v3398 = vunpack.c.l.b16 %v3261
        %v3399 = vunpack.c.l.b16 %v3262
        %v3400 = vunpack.c.l.b16 %v3263
        %v3401 = vpack.c.b16 %v3386, %v3385
        %v3402 = vpack.c.b16 %v3388, %v3387
        %v3403 = vpack.c.b16 %v3390, %v3389
        %v3404 = vpack.c.b16 %v3392, %v3391
        %v3405 = vpack.c.b16 %v3394, %v3393
        %v3406 = vpack.c.b16 %v3396, %v3395
        %v3407 = vpack.c.b16 %v3398, %v3397
        %v3408 = vpack.c.b16 %v3400, %v3399
        %3417 = vmatprep.subr.bf16.mxu0 0
        %3418 = vmatpush1.bf16.msra.mxu0 %v3271
        %3419 = vmatprep.subr.bf16.mxu0 0
        %3420 = vmatpush1.bf16.msra.mxu0 %v3270
        %3421 = vmatprep.subr.bf16.mxu0 0
        %3422 = vmatpush1.bf16.msra.mxu0 %v3269
        %3423 = vmatprep.subr.bf16.mxu0 0
        %3424 = vmatpush1.bf16.msra.mxu0 %v3268
        %3425 = vmatprep.subr.bf16.mxu0 0
        %3426 = vmatpush1.bf16.msra.mxu0 %v3267
        %3427 = vmatprep.subr.bf16.mxu0 0
        %3428 = vmatpush1.bf16.msra.mxu0 %v3266
        %3429 = vmatprep.subr.bf16.mxu0 0
        %3430 = vmatpush1.bf16.msra.mxu0 %v3265
        %3431 = vmatprep.subr.bf16.mxu0 0
        %3432 = vmatpush1.bf16.msra.mxu0 %v3264
        %3433 = vmatprep.subr.bf16.mxu0 0
        %3434 = vmatpush2.bf16.msra.mxu0 0
        %3435 = vmatprep.subr.bf16.mxu0 0
        %3436 = vmatpush2.bf16.msra.mxu0 0
        %3437 = vmatprep.subr.bf16.mxu0 0
        %3438 = vmatpush2.bf16.msra.mxu0 0
        %3439 = vmatprep.subr.bf16.mxu0 0
        %3440 = vmatpush2.bf16.msra.mxu0 0
        %3441 = vmatprep.subr.bf16.mxu0 0
        %3442 = vmatpush2.bf16.msra.mxu0 0
        %3443 = vmatprep.subr.bf16.mxu0 0
        %3444 = vmatpush2.bf16.msra.mxu0 0
        %3445 = vmatprep.subr.bf16.mxu0 0
        %3446 = vmatpush2.bf16.msra.mxu0 0
        %3447 = vmatprep.subr.bf16.mxu0 0
        %3448 = vmatpush2.bf16.msra.mxu0 0
        %3449 = vmatprep.mubr.bf16.mxu0 0
        %3450 = vmatmul.mubr.bf16.gmra.mxu0 %v3401
        %v3451 = vpop.f32.mrf.mxu0
        %v3452 = vadd.f32 %v3292, %v3451
        %v3453 = vpop.f32.mrf.mxu0
        %v3454 = vpop.f32.mrf.mxu0
        %v3455 = vadd.f32 %v3297, %v3454
        %v3456 = vpop.f32.mrf.mxu0
        %3457 = vmatprep.mubr.bf16.mxu0 0
        %3458 = vmatmul.mubr.bf16.gmra.mxu0 %v3402
        %v3459 = vpop.f32.mrf.mxu0
        %v3460 = vadd.f32 %v3302, %v3459
        %v3461 = vpop.f32.mrf.mxu0
        %v3462 = vpop.f32.mrf.mxu0
        %v3463 = vadd.f32 %v3307, %v3462
        %v3464 = vpop.f32.mrf.mxu0
        %3465 = vmatprep.mubr.bf16.mxu0 0
        %3466 = vmatmul.mubr.bf16.gmra.mxu0 %v3403
        %v3467 = vpop.f32.mrf.mxu0
        %v3468 = vadd.f32 %v3312, %v3467
        %v3469 = vpop.f32.mrf.mxu0
        %v3470 = vpop.f32.mrf.mxu0
        %v3471 = vadd.f32 %v3317, %v3470
        %v3472 = vpop.f32.mrf.mxu0
        %3473 = vmatprep.mubr.bf16.mxu0 0
        %3474 = vmatmul.mubr.bf16.gmra.mxu0 %v3404
        %v3475 = vpop.f32.mrf.mxu0
        %v3476 = vadd.f32 %v3322, %v3475
        %v3477 = vpop.f32.mrf.mxu0
        %v3478 = vpop.f32.mrf.mxu0
        %v3479 = vadd.f32 %v3327, %v3478
        %v3480 = vpop.f32.mrf.mxu0
        %3481 = vmatprep.mubr.bf16.mxu0 0
        %3482 = vmatmul.mubr.bf16.gmra.mxu0 %v3405
        %v3483 = vpop.f32.mrf.mxu0
        %v3484 = vadd.f32 %v3332, %v3483
        %v3485 = vpop.f32.mrf.mxu0
        %v3486 = vpop.f32.mrf.mxu0
        %v3487 = vadd.f32 %v3337, %v3486
        %v3488 = vpop.f32.mrf.mxu0
        %3489 = vmatprep.mubr.bf16.mxu0 0
        %3490 = vmatmul.mubr.bf16.gmra.mxu0 %v3406
        %v3491 = vpop.f32.mrf.mxu0
        %v3492 = vadd.f32 %v3342, %v3491
        %v3493 = vpop.f32.mrf.mxu0
        %v3494 = vpop.f32.mrf.mxu0
        %v3495 = vadd.f32 %v3347, %v3494
        %v3496 = vpop.f32.mrf.mxu0
        %3497 = vmatprep.mubr.bf16.mxu0 0
        %3498 = vmatmul.mubr.bf16.gmra.mxu0 %v3407
        %v3499 = vpop.f32.mrf.mxu0
        %v3500 = vadd.f32 %v3352, %v3499
        %v3501 = vpop.f32.mrf.mxu0
        %v3502 = vpop.f32.mrf.mxu0
        %v3503 = vadd.f32 %v3357, %v3502
        %v3504 = vpop.f32.mrf.mxu0
        %3505 = vmatprep.mubr.bf16.mxu0 0
        %3506 = vmatmul.mubr.bf16.gmra.mxu0 %v3408
        %v3507 = vpop.f32.mrf.mxu0
        %v3508 = vadd.f32 %v3362, %v3507
        %v3509 = vpop.f32.mrf.mxu0
        %v3510 = vpop.f32.mrf.mxu0
        %v3511 = vadd.f32 %v3367, %v3510
        %v3512 = vpop.f32.mrf.mxu0
        %3513 = vdwg.mxu0
        %v3514 = vmax.f32 %v3452, 0.0
        %v3515 = vmax.f32 %v3455, 0.0
        %v3516 = vmax.f32 %v3460, 0.0
        %v3517 = vmax.f32 %v3463, 0.0
        %v3518 = vmax.f32 %v3468, 0.0
        %v3519 = vmax.f32 %v3471, 0.0
        %v3520 = vmax.f32 %v3476, 0.0
        %v3521 = vmax.f32 %v3479, 0.0
        %v3522 = vmax.f32 %v3484, 0.0
        %v3523 = vmax.f32 %v3487, 0.0
        %v3524 = vmax.f32 %v3492, 0.0
        %v3525 = vmax.f32 %v3495, 0.0
        %v3526 = vmax.f32 %v3500, 0.0
        %v3527 = vmax.f32 %v3503, 0.0
        %v3528 = vmax.f32 %v3508, 0.0
        %v3529 = vmax.f32 %v3511, 0.0
        %v3530 = vadd.f32 %v3514, %v2445
        %v3531 = vadd.f32 %v3515, %v2446
        %v3532 = vadd.f32 %v3516, %v2447
        %v3533 = vadd.f32 %v3517, %v2448
        %v3534 = vadd.f32 %v3518, %v2449
        %v3535 = vadd.f32 %v3519, %v2450
        %v3536 = vadd.f32 %v3520, %v2451
        %v3537 = vadd.f32 %v3521, %v2452
        %v3538 = vadd.f32 %v3522, %v2453
        %v3539 = vadd.f32 %v3523, %v2454
        %v3540 = vadd.f32 %v3524, %v2455
        %v3541 = vadd.f32 %v3525, %v2456
        %v3542 = vadd.f32 %v3526, %v2457
        %v3543 = vadd.f32 %v3527, %v2458
        %v3544 = vadd.f32 %v3528, %v2459
        %v3545 = vadd.f32 %v3529, %v2460
        %3546 = vadd.xlane.f32.xlu0 %v3530
        %v3547 = vpop.xlane.xlu0 %3546
        %3548 = vadd.xlane.f32.xlu0 %v3531
        %v3549 = vpop.xlane.xlu0 %3548
        %3550 = vadd.xlane.f32.xlu0 %v3532
        %v3551 = vpop.xlane.xlu0 %3550
        %3552 = vadd.xlane.f32.xlu0 %v3533
        %v3553 = vpop.xlane.xlu0 %3552
        %3554 = vadd.xlane.f32.xlu0 %v3534
        %v3555 = vpop.xlane.xlu0 %3554
        %3556 = vadd.xlane.f32.xlu0 %v3535
        %v3557 = vpop.xlane.xlu0 %3556
        %3558 = vadd.xlane.f32.xlu0 %v3536
        %v3559 = vpop.xlane.xlu0 %3558
        %3560 = vadd.xlane.f32.xlu0 %v3537
        %v3561 = vpop.xlane.xlu0 %3560
        %3562 = vadd.xlane.f32.xlu0 %v3538
        %v3563 = vpop.xlane.xlu0 %3562
        %3564 = vadd.xlane.f32.xlu0 %v3539
        %v3565 = vpop.xlane.xlu0 %3564
        %3566 = vadd.xlane.f32.xlu0 %v3540
        %v3567 = vpop.xlane.xlu0 %3566
        %3568 = vadd.xlane.f32.xlu0 %v3541
        %v3569 = vpop.xlane.xlu0 %3568
        %3570 = vadd.xlane.f32.xlu0 %v3542
        %v3571 = vpop.xlane.xlu0 %3570
        %3572 = vadd.xlane.f32.xlu0 %v3543
        %v3573 = vpop.xlane.xlu0 %3572
        %3574 = vadd.xlane.f32.xlu0 %v3544
        %v3575 = vpop.xlane.xlu0 %3574
        %3576 = vadd.xlane.f32.xlu0 %v3545
        %v3577 = vpop.xlane.xlu0 %3576
        %v3578 = vmul.f32 %v3547, %v326
        %v3579 = vmul.f32 %v3549, %v326
        %v3580 = vmul.f32 %v3551, %v326
        %v3581 = vmul.f32 %v3553, %v326
        %v3582 = vmul.f32 %v3555, %v326
        %v3583 = vmul.f32 %v3557, %v326
        %v3584 = vmul.f32 %v3559, %v326
        %v3585 = vmul.f32 %v3561, %v326
        %v3586 = vmul.f32 %v3563, %v326
        %v3587 = vmul.f32 %v3565, %v326
        %v3588 = vmul.f32 %v3567, %v326
        %v3589 = vmul.f32 %v3569, %v326
        %v3590 = vmul.f32 %v3571, %v326
        %v3591 = vmul.f32 %v3573, %v326
        %v3592 = vmul.f32 %v3575, %v326
        %v3593 = vmul.f32 %v3577, %v326
        %v3594 = vsub.f32 %v3530, %v3578
        %v3595 = vsub.f32 %v3531, %v3579
        %v3596 = vsub.f32 %v3532, %v3580
        %v3597 = vsub.f32 %v3533, %v3581
        %v3598 = vsub.f32 %v3534, %v3582
        %v3599 = vsub.f32 %v3535, %v3583
        %v3600 = vsub.f32 %v3536, %v3584
        %v3601 = vsub.f32 %v3537, %v3585
        %v3602 = vsub.f32 %v3538, %v3586
        %v3603 = vsub.f32 %v3539, %v3587
        %v3604 = vsub.f32 %v3540, %v3588
        %v3605 = vsub.f32 %v3541, %v3589
        %v3606 = vsub.f32 %v3542, %v3590
        %v3607 = vsub.f32 %v3543, %v3591
        %v3608 = vsub.f32 %v3544, %v3592
        %v3609 = vsub.f32 %v3545, %v3593
        %v3610 = vmul.f32 %v3594, %v3594
        %v3611 = vmul.f32 %v3595, %v3595
        %v3612 = vmul.f32 %v3596, %v3596
        %v3613 = vmul.f32 %v3597, %v3597
        %v3614 = vmul.f32 %v3598, %v3598
        %v3615 = vmul.f32 %v3599, %v3599
        %v3616 = vmul.f32 %v3600, %v3600
        %v3617 = vmul.f32 %v3601, %v3601
        %v3618 = vmul.f32 %v3602, %v3602
        %v3619 = vmul.f32 %v3603, %v3603
        %v3620 = vmul.f32 %v3604, %v3604
        %v3621 = vmul.f32 %v3605, %v3605
        %v3622 = vmul.f32 %v3606, %v3606
        %v3623 = vmul.f32 %v3607, %v3607
        %v3624 = vmul.f32 %v3608, %v3608
        %v3625 = vmul.f32 %v3609, %v3609
        %3626 = vadd.xlane.f32.xlu0 %v3610
        %v3627 = vpop.xlane.xlu0 %3626
        %3628 = vadd.xlane.f32.xlu0 %v3611
        %v3629 = vpop.xlane.xlu0 %3628
        %3630 = vadd.xlane.f32.xlu0 %v3612
        %v3631 = vpop.xlane.xlu0 %3630
        %3632 = vadd.xlane.f32.xlu0 %v3613
        %v3633 = vpop.xlane.xlu0 %3632
        %3634 = vadd.xlane.f32.xlu0 %v3614
        %v3635 = vpop.xlane.xlu0 %3634
        %3636 = vadd.xlane.f32.xlu0 %v3615
        %v3637 = vpop.xlane.xlu0 %3636
        %3638 = vadd.xlane.f32.xlu0 %v3616
        %v3639 = vpop.xlane.xlu0 %3638
        %3640 = vadd.xlane.f32.xlu0 %v3617
        %v3641 = vpop.xlane.xlu0 %3640
        %3642 = vadd.xlane.f32.xlu0 %v3618
        %v3643 = vpop.xlane.xlu0 %3642
        %3644 = vadd.xlane.f32.xlu0 %v3619
        %v3645 = vpop.xlane.xlu0 %3644
        %3646 = vadd.xlane.f32.xlu0 %v3620
        %v3647 = vpop.xlane.xlu0 %3646
        %3648 = vadd.xlane.f32.xlu0 %v3621
        %v3649 = vpop.xlane.xlu0 %3648
        %3650 = vadd.xlane.f32.xlu0 %v3622
        %v3651 = vpop.xlane.xlu0 %3650
        %3652 = vadd.xlane.f32.xlu0 %v3623
        %v3653 = vpop.xlane.xlu0 %3652
        %3654 = vadd.xlane.f32.xlu0 %v3624
        %v3655 = vpop.xlane.xlu0 %3654
        %3656 = vadd.xlane.f32.xlu0 %v3625
        %v3657 = vpop.xlane.xlu0 %3656
        %v3658 = vmul.f32 %v3627, %v326
        %v3659 = vmul.f32 %v3629, %v326
        %v3660 = vmul.f32 %v3631, %v326
        %v3661 = vmul.f32 %v3633, %v326
        %v3662 = vmul.f32 %v3635, %v326
        %v3663 = vmul.f32 %v3637, %v326
        %v3664 = vmul.f32 %v3639, %v326
        %v3665 = vmul.f32 %v3641, %v326
        %v3666 = vmul.f32 %v3643, %v326
        %v3667 = vmul.f32 %v3645, %v326
        %v3668 = vmul.f32 %v3647, %v326
        %v3669 = vmul.f32 %v3649, %v326
        %v3670 = vmul.f32 %v3651, %v326
        %v3671 = vmul.f32 %v3653, %v326
        %v3672 = vmul.f32 %v3655, %v326
        %v3673 = vmul.f32 %v3657, %v326
        %v3674 = vadd.f32 %v3658, 1e-06
        %v3675 = vadd.f32 %v3659, 1e-06
        %v3676 = vadd.f32 %v3660, 1e-06
        %v3677 = vadd.f32 %v3661, 1e-06
        %v3678 = vadd.f32 %v3662, 1e-06
        %v3679 = vadd.f32 %v3663, 1e-06
        %v3680 = vadd.f32 %v3664, 1e-06
        %v3681 = vadd.f32 %v3665, 1e-06
        %v3682 = vadd.f32 %v3666, 1e-06
        %v3683 = vadd.f32 %v3667, 1e-06
        %v3684 = vadd.f32 %v3668, 1e-06
        %v3685 = vadd.f32 %v3669, 1e-06
        %v3686 = vadd.f32 %v3670, 1e-06
        %v3687 = vadd.f32 %v3671, 1e-06
        %v3688 = vadd.f32 %v3672, 1e-06
        %v3689 = vadd.f32 %v3673, 1e-06
        %v3690 = vrsqrt.pop %v3674
        %v3691 = vrsqrt.pop %v3675
        %v3692 = vrsqrt.pop %v3676
        %v3693 = vrsqrt.pop %v3677
        %v3694 = vrsqrt.pop %v3678
        %v3695 = vrsqrt.pop %v3679
        %v3696 = vrsqrt.pop %v3680
        %v3697 = vrsqrt.pop %v3681
        %v3698 = vrsqrt.pop %v3682
        %v3699 = vrsqrt.pop %v3683
        %v3700 = vrsqrt.pop %v3684
        %v3701 = vrsqrt.pop %v3685
        %v3702 = vrsqrt.pop %v3686
        %v3703 = vrsqrt.pop %v3687
        %v3704 = vrsqrt.pop %v3688
        %v3705 = vrsqrt.pop %v3689
        %v3706 = vmul.f32 %v3594, %v3690
        %v3707 = vmul.f32 %v3595, %v3691
        %v3708 = vmul.f32 %v3596, %v3692
        %v3709 = vmul.f32 %v3597, %v3693
        %v3710 = vmul.f32 %v3598, %v3694
        %v3711 = vmul.f32 %v3599, %v3695
        %v3712 = vmul.f32 %v3600, %v3696
        %v3713 = vmul.f32 %v3601, %v3697
        %v3714 = vmul.f32 %v3602, %v3698
        %v3715 = vmul.f32 %v3603, %v3699
        %v3716 = vmul.f32 %v3604, %v3700
        %v3717 = vmul.f32 %v3605, %v3701
        %v3718 = vmul.f32 %v3606, %v3702
        %v3719 = vmul.f32 %v3607, %v3703
        %v3720 = vmul.f32 %v3608, %v3704
        %v3721 = vmul.f32 %v3609, %v3705
        %s3722 = scalar_lea.vmem %s1, 3
        %v3723 = vld [vmem:[%s3722] sm:$0x1]
        %v3725 = vlaneseq
        %v3726 = vshrl.u32 %v3725, 7
        %v3727 = vsub.s32 0, %v3726
        %v3728 = vrot.slane %v3723, %v3727
        %v3730 = vmul.f32 %v3706, %v3728
        %v3731 = vmul.f32 %v3707, %v3728
        %v3732 = vmul.f32 %v3708, %v3728
        %v3733 = vmul.f32 %v3709, %v3728
        %v3734 = vmul.f32 %v3710, %v3728
        %v3735 = vmul.f32 %v3711, %v3728
        %v3736 = vmul.f32 %v3712, %v3728
        %v3737 = vmul.f32 %v3713, %v3728
        %v3738 = vmul.f32 %v3714, %v3728
        %v3739 = vmul.f32 %v3715, %v3728
        %v3740 = vmul.f32 %v3716, %v3728
        %v3741 = vmul.f32 %v3717, %v3728
        %v3742 = vmul.f32 %v3718, %v3728
        %v3743 = vmul.f32 %v3719, %v3728
        %v3744 = vmul.f32 %v3720, %v3728
        %v3745 = vmul.f32 %v3721, %v3728
        %s3746 = scalar_lea.vmem %s2, 3
        %v3747 = vld [vmem:[%s3746] sm:$0x1]
        %v3749 = vlaneseq
        %v3750 = vshrl.u32 %v3749, 7
        %v3751 = vsub.s32 0, %v3750
        %v3752 = vrot.slane %v3747, %v3751
        %v3754 = vadd.f32 %v3730, %v3752
        %v3755 = vadd.f32 %v3731, %v3752
        %v3756 = vadd.f32 %v3732, %v3752
        %v3757 = vadd.f32 %v3733, %v3752
        %v3758 = vadd.f32 %v3734, %v3752
        %v3759 = vadd.f32 %v3735, %v3752
        %v3760 = vadd.f32 %v3736, %v3752
        %v3761 = vadd.f32 %v3737, %v3752
        %v3762 = vadd.f32 %v3738, %v3752
        %v3763 = vadd.f32 %v3739, %v3752
        %v3764 = vadd.f32 %v3740, %v3752
        %v3765 = vadd.f32 %v3741, %v3752
        %v3766 = vadd.f32 %v3742, %v3752
        %v3767 = vadd.f32 %v3743, %v3752
        %v3768 = vadd.f32 %v3744, %v3752
        %v3769 = vadd.f32 %v3745, %v3752
        %s3770 = scalar_lea.vmem %s3, 384
        %v3771 = vld [vmem:[%s3770] sm:$0xff]
        %v3772 = vld [vmem:[%s3770 + $0x8] sm:$0xff]
        %v3773 = vld [vmem:[%s3770 + $0x10] sm:$0xff]
        %v3774 = vld [vmem:[%s3770 + $0x18] sm:$0xff]
        %v3775 = vld [vmem:[%s3770 + $0x20] sm:$0xff]
        %v3776 = vld [vmem:[%s3770 + $0x28] sm:$0xff]
        %v3777 = vld [vmem:[%s3770 + $0x30] sm:$0xff]
        %v3778 = vld [vmem:[%s3770 + $0x38] sm:$0xff]
        %v3779 = vld [vmem:[%s3770 + $0x40] sm:$0xff]
        %v3780 = vld [vmem:[%s3770 + $0x48] sm:$0xff]
        %v3781 = vld [vmem:[%s3770 + $0x50] sm:$0xff]
        %v3782 = vld [vmem:[%s3770 + $0x58] sm:$0xff]
        %v3783 = vld [vmem:[%s3770 + $0x60] sm:$0xff]
        %v3784 = vld [vmem:[%s3770 + $0x68] sm:$0xff]
        %v3785 = vld [vmem:[%s3770 + $0x70] sm:$0xff]
        %v3786 = vld [vmem:[%s3770 + $0x78] sm:$0xff]
        %3803 = vrot.lane.b32.xlu0 %v3754, 1
        %v3804 = vpop.permute.xlu0 %3803
        %3805 = vrot.lane.b32.xlu0 %v3755, 1
        %v3806 = vpop.permute.xlu0 %3805
        %3807 = vrot.lane.b32.xlu0 %v3756, 1
        %v3808 = vpop.permute.xlu0 %3807
        %3809 = vrot.lane.b32.xlu0 %v3757, 1
        %v3810 = vpop.permute.xlu0 %3809
        %3811 = vrot.lane.b32.xlu0 %v3758, 1
        %v3812 = vpop.permute.xlu0 %3811
        %3813 = vrot.lane.b32.xlu0 %v3759, 1
        %v3814 = vpop.permute.xlu0 %3813
        %3815 = vrot.lane.b32.xlu0 %v3760, 1
        %v3816 = vpop.permute.xlu0 %3815
        %3817 = vrot.lane.b32.xlu0 %v3761, 1
        %v3818 = vpop.permute.xlu0 %3817
        %3819 = vrot.lane.b32.xlu0 %v3762, 1
        %v3820 = vpop.permute.xlu0 %3819
        %3821 = vrot.lane.b32.xlu0 %v3763, 1
        %v3822 = vpop.permute.xlu0 %3821
        %3823 = vrot.lane.b32.xlu0 %v3764, 1
        %v3824 = vpop.permute.xlu0 %3823
        %3825 = vrot.lane.b32.xlu0 %v3765, 1
        %v3826 = vpop.permute.xlu0 %3825
        %3827 = vrot.lane.b32.xlu0 %v3766, 1
        %v3828 = vpop.permute.xlu0 %3827
        %3829 = vrot.lane.b32.xlu0 %v3767, 1
        %v3830 = vpop.permute.xlu0 %3829
        %3831 = vrot.lane.b32.xlu0 %v3768, 1
        %v3832 = vpop.permute.xlu0 %3831
        %3833 = vrot.lane.b32.xlu0 %v3769, 1
        %v3834 = vpop.permute.xlu0 %3833
        %v3851 = vsel %vm597, 0.0, %v3804
        %v3852 = vsel %vm597, 0.0, %v3806
        %v3853 = vsel %vm597, 0.0, %v3808
        %v3854 = vsel %vm597, 0.0, %v3810
        %v3855 = vsel %vm597, 0.0, %v3812
        %v3856 = vsel %vm597, 0.0, %v3814
        %v3857 = vsel %vm597, 0.0, %v3816
        %v3858 = vsel %vm597, 0.0, %v3818
        %v3859 = vsel %vm597, 0.0, %v3820
        %v3860 = vsel %vm597, 0.0, %v3822
        %v3861 = vsel %vm597, 0.0, %v3824
        %v3862 = vsel %vm597, 0.0, %v3826
        %v3863 = vsel %vm597, 0.0, %v3828
        %v3864 = vsel %vm597, 0.0, %v3830
        %v3865 = vsel %vm597, 0.0, %v3832
        %v3866 = vsel %vm597, 0.0, %v3834
        %3868 = vset.pattern.permute.xlu0 0
        %3869 = vperm.xlu0 %3868, %v3771
        %v3870 = vpop.permute.xlu0 %3869
        %3873 = vset.pattern.permute.xlu0 0
        %3874 = vperm.xlu0 %3873, %v3772
        %v3875 = vpop.permute.xlu0 %3874
        %3878 = vset.pattern.permute.xlu0 0
        %3879 = vperm.xlu0 %3878, %v3773
        %v3880 = vpop.permute.xlu0 %3879
        %3883 = vset.pattern.permute.xlu0 0
        %3884 = vperm.xlu0 %3883, %v3774
        %v3885 = vpop.permute.xlu0 %3884
        %3888 = vset.pattern.permute.xlu0 0
        %3889 = vperm.xlu0 %3888, %v3775
        %v3890 = vpop.permute.xlu0 %3889
        %3893 = vset.pattern.permute.xlu0 0
        %3894 = vperm.xlu0 %3893, %v3776
        %v3895 = vpop.permute.xlu0 %3894
        %3898 = vset.pattern.permute.xlu0 0
        %3899 = vperm.xlu0 %3898, %v3777
        %v3900 = vpop.permute.xlu0 %3899
        %3903 = vset.pattern.permute.xlu0 0
        %3904 = vperm.xlu0 %3903, %v3778
        %v3905 = vpop.permute.xlu0 %3904
        %3908 = vset.pattern.permute.xlu0 0
        %3909 = vperm.xlu0 %3908, %v3779
        %v3910 = vpop.permute.xlu0 %3909
        %3913 = vset.pattern.permute.xlu0 0
        %3914 = vperm.xlu0 %3913, %v3780
        %v3915 = vpop.permute.xlu0 %3914
        %3918 = vset.pattern.permute.xlu0 0
        %3919 = vperm.xlu0 %3918, %v3781
        %v3920 = vpop.permute.xlu0 %3919
        %3923 = vset.pattern.permute.xlu0 0
        %3924 = vperm.xlu0 %3923, %v3782
        %v3925 = vpop.permute.xlu0 %3924
        %3928 = vset.pattern.permute.xlu0 0
        %3929 = vperm.xlu0 %3928, %v3783
        %v3930 = vpop.permute.xlu0 %3929
        %3933 = vset.pattern.permute.xlu0 0
        %3934 = vperm.xlu0 %3933, %v3784
        %v3935 = vpop.permute.xlu0 %3934
        %3938 = vset.pattern.permute.xlu0 0
        %3939 = vperm.xlu0 %3938, %v3785
        %v3940 = vpop.permute.xlu0 %3939
        %3943 = vset.pattern.permute.xlu0 0
        %3944 = vperm.xlu0 %3943, %v3786
        %v3945 = vpop.permute.xlu0 %3944
        %v3947 = vmul.f32 %v3870, %v3851
        %v3948 = vmul.f32 %v3875, %v3852
        %v3949 = vmul.f32 %v3880, %v3853
        %v3950 = vmul.f32 %v3885, %v3854
        %v3951 = vmul.f32 %v3890, %v3855
        %v3952 = vmul.f32 %v3895, %v3856
        %v3953 = vmul.f32 %v3900, %v3857
        %v3954 = vmul.f32 %v3905, %v3858
        %v3955 = vmul.f32 %v3910, %v3859
        %v3956 = vmul.f32 %v3915, %v3860
        %v3957 = vmul.f32 %v3920, %v3861
        %v3958 = vmul.f32 %v3925, %v3862
        %v3959 = vmul.f32 %v3930, %v3863
        %v3960 = vmul.f32 %v3935, %v3864
        %v3961 = vmul.f32 %v3940, %v3865
        %v3962 = vmul.f32 %v3945, %v3866
        %3963 = vset.pattern.permute.xlu0 1
        %3964 = vperm.xlu0 %3963, %v3771
        %v3965 = vpop.permute.xlu0 %3964
        %3967 = vset.pattern.permute.xlu0 1
        %3968 = vperm.xlu0 %3967, %v3772
        %v3969 = vpop.permute.xlu0 %3968
        %3971 = vset.pattern.permute.xlu0 1
        %3972 = vperm.xlu0 %3971, %v3773
        %v3973 = vpop.permute.xlu0 %3972
        %3975 = vset.pattern.permute.xlu0 1
        %3976 = vperm.xlu0 %3975, %v3774
        %v3977 = vpop.permute.xlu0 %3976
        %3979 = vset.pattern.permute.xlu0 1
        %3980 = vperm.xlu0 %3979, %v3775
        %v3981 = vpop.permute.xlu0 %3980
        %3983 = vset.pattern.permute.xlu0 1
        %3984 = vperm.xlu0 %3983, %v3776
        %v3985 = vpop.permute.xlu0 %3984
        %3987 = vset.pattern.permute.xlu0 1
        %3988 = vperm.xlu0 %3987, %v3777
        %v3989 = vpop.permute.xlu0 %3988
        %3991 = vset.pattern.permute.xlu0 1
        %3992 = vperm.xlu0 %3991, %v3778
        %v3993 = vpop.permute.xlu0 %3992
        %3995 = vset.pattern.permute.xlu0 1
        %3996 = vperm.xlu0 %3995, %v3779
        %v3997 = vpop.permute.xlu0 %3996
        %3999 = vset.pattern.permute.xlu0 1
        %4000 = vperm.xlu0 %3999, %v3780
        %v4001 = vpop.permute.xlu0 %4000
        %4003 = vset.pattern.permute.xlu0 1
        %4004 = vperm.xlu0 %4003, %v3781
        %v4005 = vpop.permute.xlu0 %4004
        %4007 = vset.pattern.permute.xlu0 1
        %4008 = vperm.xlu0 %4007, %v3782
        %v4009 = vpop.permute.xlu0 %4008
        %4011 = vset.pattern.permute.xlu0 1
        %4012 = vperm.xlu0 %4011, %v3783
        %v4013 = vpop.permute.xlu0 %4012
        %4015 = vset.pattern.permute.xlu0 1
        %4016 = vperm.xlu0 %4015, %v3784
        %v4017 = vpop.permute.xlu0 %4016
        %4019 = vset.pattern.permute.xlu0 1
        %4020 = vperm.xlu0 %4019, %v3785
        %v4021 = vpop.permute.xlu0 %4020
        %4023 = vset.pattern.permute.xlu0 1
        %4024 = vperm.xlu0 %4023, %v3786
        %v4025 = vpop.permute.xlu0 %4024
        %v4027 = vmul.f32 %v3965, %v3754
        %v4028 = vmul.f32 %v3969, %v3755
        %v4029 = vmul.f32 %v3973, %v3756
        %v4030 = vmul.f32 %v3977, %v3757
        %v4031 = vmul.f32 %v3981, %v3758
        %v4032 = vmul.f32 %v3985, %v3759
        %v4033 = vmul.f32 %v3989, %v3760
        %v4034 = vmul.f32 %v3993, %v3761
        %v4035 = vmul.f32 %v3997, %v3762
        %v4036 = vmul.f32 %v4001, %v3763
        %v4037 = vmul.f32 %v4005, %v3764
        %v4038 = vmul.f32 %v4009, %v3765
        %v4039 = vmul.f32 %v4013, %v3766
        %v4040 = vmul.f32 %v4017, %v3767
        %v4041 = vmul.f32 %v4021, %v3768
        %v4042 = vmul.f32 %v4025, %v3769
        %v4043 = vadd.f32 %v3947, %v4027
        %v4044 = vadd.f32 %v3948, %v4028
        %v4045 = vadd.f32 %v3949, %v4029
        %v4046 = vadd.f32 %v3950, %v4030
        %v4047 = vadd.f32 %v3951, %v4031
        %v4048 = vadd.f32 %v3952, %v4032
        %v4049 = vadd.f32 %v3953, %v4033
        %v4050 = vadd.f32 %v3954, %v4034
        %v4051 = vadd.f32 %v3955, %v4035
        %v4052 = vadd.f32 %v3956, %v4036
        %v4053 = vadd.f32 %v3957, %v4037
        %v4054 = vadd.f32 %v3958, %v4038
        %v4055 = vadd.f32 %v3959, %v4039
        %v4056 = vadd.f32 %v3960, %v4040
        %v4057 = vadd.f32 %v3961, %v4041
        %v4058 = vadd.f32 %v3962, %v4042
        %4059 = vrot.lane.b32.xlu0 %v3754, 127
        %v4060 = vpop.permute.xlu0 %4059
        %4061 = vrot.lane.b32.xlu0 %v3755, 127
        %v4062 = vpop.permute.xlu0 %4061
        %4063 = vrot.lane.b32.xlu0 %v3756, 127
        %v4064 = vpop.permute.xlu0 %4063
        %4065 = vrot.lane.b32.xlu0 %v3757, 127
        %v4066 = vpop.permute.xlu0 %4065
        %4067 = vrot.lane.b32.xlu0 %v3758, 127
        %v4068 = vpop.permute.xlu0 %4067
        %4069 = vrot.lane.b32.xlu0 %v3759, 127
        %v4070 = vpop.permute.xlu0 %4069
        %4071 = vrot.lane.b32.xlu0 %v3760, 127
        %v4072 = vpop.permute.xlu0 %4071
        %4073 = vrot.lane.b32.xlu0 %v3761, 127
        %v4074 = vpop.permute.xlu0 %4073
        %4075 = vrot.lane.b32.xlu0 %v3762, 127
        %v4076 = vpop.permute.xlu0 %4075
        %4077 = vrot.lane.b32.xlu0 %v3763, 127
        %v4078 = vpop.permute.xlu0 %4077
        %4079 = vrot.lane.b32.xlu0 %v3764, 127
        %v4080 = vpop.permute.xlu0 %4079
        %4081 = vrot.lane.b32.xlu0 %v3765, 127
        %v4082 = vpop.permute.xlu0 %4081
        %4083 = vrot.lane.b32.xlu0 %v3766, 127
        %v4084 = vpop.permute.xlu0 %4083
        %4085 = vrot.lane.b32.xlu0 %v3767, 127
        %v4086 = vpop.permute.xlu0 %4085
        %4087 = vrot.lane.b32.xlu0 %v3768, 127
        %v4088 = vpop.permute.xlu0 %4087
        %4089 = vrot.lane.b32.xlu0 %v3769, 127
        %v4090 = vpop.permute.xlu0 %4089
        %v4107 = vsel %vm854, %v4060, 0.0
        %v4108 = vsel %vm854, %v4062, 0.0
        %v4109 = vsel %vm854, %v4064, 0.0
        %v4110 = vsel %vm854, %v4066, 0.0
        %v4111 = vsel %vm854, %v4068, 0.0
        %v4112 = vsel %vm854, %v4070, 0.0
        %v4113 = vsel %vm854, %v4072, 0.0
        %v4114 = vsel %vm854, %v4074, 0.0
        %v4115 = vsel %vm854, %v4076, 0.0
        %v4116 = vsel %vm854, %v4078, 0.0
        %v4117 = vsel %vm854, %v4080, 0.0
        %v4118 = vsel %vm854, %v4082, 0.0
        %v4119 = vsel %vm854, %v4084, 0.0
        %v4120 = vsel %vm854, %v4086, 0.0
        %v4121 = vsel %vm854, %v4088, 0.0
        %v4122 = vsel %vm854, %v4090, 0.0
        %4123 = vset.pattern.permute.xlu0 2
        %4124 = vperm.xlu0 %4123, %v3771
        %v4125 = vpop.permute.xlu0 %4124
        %4127 = vset.pattern.permute.xlu0 2
        %4128 = vperm.xlu0 %4127, %v3772
        %v4129 = vpop.permute.xlu0 %4128
        %4131 = vset.pattern.permute.xlu0 2
        %4132 = vperm.xlu0 %4131, %v3773
        %v4133 = vpop.permute.xlu0 %4132
        %4135 = vset.pattern.permute.xlu0 2
        %4136 = vperm.xlu0 %4135, %v3774
        %v4137 = vpop.permute.xlu0 %4136
        %4139 = vset.pattern.permute.xlu0 2
        %4140 = vperm.xlu0 %4139, %v3775
        %v4141 = vpop.permute.xlu0 %4140
        %4143 = vset.pattern.permute.xlu0 2
        %4144 = vperm.xlu0 %4143, %v3776
        %v4145 = vpop.permute.xlu0 %4144
        %4147 = vset.pattern.permute.xlu0 2
        %4148 = vperm.xlu0 %4147, %v3777
        %v4149 = vpop.permute.xlu0 %4148
        %4151 = vset.pattern.permute.xlu0 2
        %4152 = vperm.xlu0 %4151, %v3778
        %v4153 = vpop.permute.xlu0 %4152
        %4155 = vset.pattern.permute.xlu0 2
        %4156 = vperm.xlu0 %4155, %v3779
        %v4157 = vpop.permute.xlu0 %4156
        %4159 = vset.pattern.permute.xlu0 2
        %4160 = vperm.xlu0 %4159, %v3780
        %v4161 = vpop.permute.xlu0 %4160
        %4163 = vset.pattern.permute.xlu0 2
        %4164 = vperm.xlu0 %4163, %v3781
        %v4165 = vpop.permute.xlu0 %4164
        %4167 = vset.pattern.permute.xlu0 2
        %4168 = vperm.xlu0 %4167, %v3782
        %v4169 = vpop.permute.xlu0 %4168
        %4171 = vset.pattern.permute.xlu0 2
        %4172 = vperm.xlu0 %4171, %v3783
        %v4173 = vpop.permute.xlu0 %4172
        %4175 = vset.pattern.permute.xlu0 2
        %4176 = vperm.xlu0 %4175, %v3784
        %v4177 = vpop.permute.xlu0 %4176
        %4179 = vset.pattern.permute.xlu0 2
        %4180 = vperm.xlu0 %4179, %v3785
        %v4181 = vpop.permute.xlu0 %4180
        %4183 = vset.pattern.permute.xlu0 2
        %4184 = vperm.xlu0 %4183, %v3786
        %v4185 = vpop.permute.xlu0 %4184
        %v4187 = vmul.f32 %v4125, %v4107
        %v4188 = vmul.f32 %v4129, %v4108
        %v4189 = vmul.f32 %v4133, %v4109
        %v4190 = vmul.f32 %v4137, %v4110
        %v4191 = vmul.f32 %v4141, %v4111
        %v4192 = vmul.f32 %v4145, %v4112
        %v4193 = vmul.f32 %v4149, %v4113
        %v4194 = vmul.f32 %v4153, %v4114
        %v4195 = vmul.f32 %v4157, %v4115
        %v4196 = vmul.f32 %v4161, %v4116
        %v4197 = vmul.f32 %v4165, %v4117
        %v4198 = vmul.f32 %v4169, %v4118
        %v4199 = vmul.f32 %v4173, %v4119
        %v4200 = vmul.f32 %v4177, %v4120
        %v4201 = vmul.f32 %v4181, %v4121
        %v4202 = vmul.f32 %v4185, %v4122
        %v4203 = vadd.f32 %v4043, %v4187
        %v4204 = vadd.f32 %v4044, %v4188
        %v4205 = vadd.f32 %v4045, %v4189
        %v4206 = vadd.f32 %v4046, %v4190
        %v4207 = vadd.f32 %v4047, %v4191
        %v4208 = vadd.f32 %v4048, %v4192
        %v4209 = vadd.f32 %v4049, %v4193
        %v4210 = vadd.f32 %v4050, %v4194
        %v4211 = vadd.f32 %v4051, %v4195
        %v4212 = vadd.f32 %v4052, %v4196
        %v4213 = vadd.f32 %v4053, %v4197
        %v4214 = vadd.f32 %v4054, %v4198
        %v4215 = vadd.f32 %v4055, %v4199
        %v4216 = vadd.f32 %v4056, %v4200
        %v4217 = vadd.f32 %v4057, %v4201
        %v4218 = vadd.f32 %v4058, %v4202
        %s4219 = scalar_lea.vmem %s4, 384
        %v4220 = vld [vmem:[%s4219] sm:$0xff]
        %v4221 = vld [vmem:[%s4219 + $0x8] sm:$0xff]
        %v4222 = vld [vmem:[%s4219 + $0x10] sm:$0xff]
        %v4223 = vld [vmem:[%s4219 + $0x18] sm:$0xff]
        %v4224 = vld [vmem:[%s4219 + $0x20] sm:$0xff]
        %v4225 = vld [vmem:[%s4219 + $0x28] sm:$0xff]
        %v4226 = vld [vmem:[%s4219 + $0x30] sm:$0xff]
        %v4227 = vld [vmem:[%s4219 + $0x38] sm:$0xff]
        %v4228 = vld [vmem:[%s4219 + $0x40] sm:$0xff]
        %v4229 = vld [vmem:[%s4219 + $0x48] sm:$0xff]
        %v4230 = vld [vmem:[%s4219 + $0x50] sm:$0xff]
        %v4231 = vld [vmem:[%s4219 + $0x58] sm:$0xff]
        %v4232 = vld [vmem:[%s4219 + $0x60] sm:$0xff]
        %v4233 = vld [vmem:[%s4219 + $0x68] sm:$0xff]
        %v4234 = vld [vmem:[%s4219 + $0x70] sm:$0xff]
        %v4235 = vld [vmem:[%s4219 + $0x78] sm:$0xff]
        %4237 = vset.pattern.permute.xlu0 0
        %4238 = vperm.xlu0 %4237, %v4220
        %v4239 = vpop.permute.xlu0 %4238
        %4242 = vset.pattern.permute.xlu0 0
        %4243 = vperm.xlu0 %4242, %v4221
        %v4244 = vpop.permute.xlu0 %4243
        %4247 = vset.pattern.permute.xlu0 0
        %4248 = vperm.xlu0 %4247, %v4222
        %v4249 = vpop.permute.xlu0 %4248
        %4252 = vset.pattern.permute.xlu0 0
        %4253 = vperm.xlu0 %4252, %v4223
        %v4254 = vpop.permute.xlu0 %4253
        %4257 = vset.pattern.permute.xlu0 0
        %4258 = vperm.xlu0 %4257, %v4224
        %v4259 = vpop.permute.xlu0 %4258
        %4262 = vset.pattern.permute.xlu0 0
        %4263 = vperm.xlu0 %4262, %v4225
        %v4264 = vpop.permute.xlu0 %4263
        %4267 = vset.pattern.permute.xlu0 0
        %4268 = vperm.xlu0 %4267, %v4226
        %v4269 = vpop.permute.xlu0 %4268
        %4272 = vset.pattern.permute.xlu0 0
        %4273 = vperm.xlu0 %4272, %v4227
        %v4274 = vpop.permute.xlu0 %4273
        %4277 = vset.pattern.permute.xlu0 0
        %4278 = vperm.xlu0 %4277, %v4228
        %v4279 = vpop.permute.xlu0 %4278
        %4282 = vset.pattern.permute.xlu0 0
        %4283 = vperm.xlu0 %4282, %v4229
        %v4284 = vpop.permute.xlu0 %4283
        %4287 = vset.pattern.permute.xlu0 0
        %4288 = vperm.xlu0 %4287, %v4230
        %v4289 = vpop.permute.xlu0 %4288
        %4292 = vset.pattern.permute.xlu0 0
        %4293 = vperm.xlu0 %4292, %v4231
        %v4294 = vpop.permute.xlu0 %4293
        %4297 = vset.pattern.permute.xlu0 0
        %4298 = vperm.xlu0 %4297, %v4232
        %v4299 = vpop.permute.xlu0 %4298
        %4302 = vset.pattern.permute.xlu0 0
        %4303 = vperm.xlu0 %4302, %v4233
        %v4304 = vpop.permute.xlu0 %4303
        %4307 = vset.pattern.permute.xlu0 0
        %4308 = vperm.xlu0 %4307, %v4234
        %v4309 = vpop.permute.xlu0 %4308
        %4312 = vset.pattern.permute.xlu0 0
        %4313 = vperm.xlu0 %4312, %v4235
        %v4314 = vpop.permute.xlu0 %4313
        %v4316 = vadd.f32 %v4203, %v4239
        %v4317 = vadd.f32 %v4204, %v4244
        %v4318 = vadd.f32 %v4205, %v4249
        %v4319 = vadd.f32 %v4206, %v4254
        %v4320 = vadd.f32 %v4207, %v4259
        %v4321 = vadd.f32 %v4208, %v4264
        %v4322 = vadd.f32 %v4209, %v4269
        %v4323 = vadd.f32 %v4210, %v4274
        %v4324 = vadd.f32 %v4211, %v4279
        %v4325 = vadd.f32 %v4212, %v4284
        %v4326 = vadd.f32 %v4213, %v4289
        %v4327 = vadd.f32 %v4214, %v4294
        %v4328 = vadd.f32 %v4215, %v4299
        %v4329 = vadd.f32 %v4216, %v4304
        %v4330 = vadd.f32 %v4217, %v4309
        %v4331 = vadd.f32 %v4218, %v4314
        %s4332 = scalar_lea.vmem %s5, 192
        %v4333 = vld [vmem:[%s4332] sm:$0xf]
        %v4334 = vld [vmem:[%s4332 + $0x4] sm:$0xf]
        %v4335 = vld [vmem:[%s4332 + $0x8] sm:$0xf]
        %v4336 = vld [vmem:[%s4332 + $0xc] sm:$0xf]
        %v4337 = vld [vmem:[%s4332 + $0x10] sm:$0xf]
        %v4338 = vld [vmem:[%s4332 + $0x14] sm:$0xf]
        %v4339 = vld [vmem:[%s4332 + $0x18] sm:$0xf]
        %v4340 = vld [vmem:[%s4332 + $0x1c] sm:$0xf]
        %v4341 = vld [vmem:[%s4332 + $0x20] sm:$0xf]
        %v4342 = vld [vmem:[%s4332 + $0x24] sm:$0xf]
        %v4343 = vld [vmem:[%s4332 + $0x28] sm:$0xf]
        %v4344 = vld [vmem:[%s4332 + $0x2c] sm:$0xf]
        %v4345 = vld [vmem:[%s4332 + $0x30] sm:$0xf]
        %v4346 = vld [vmem:[%s4332 + $0x34] sm:$0xf]
        %v4347 = vld [vmem:[%s4332 + $0x38] sm:$0xf]
        %v4348 = vld [vmem:[%s4332 + $0x3c] sm:$0xf]
        %v4349 = vpack.c.bf16 %v4317, %v4316
        %v4350 = vpack.c.bf16 %v4319, %v4318
        %v4351 = vpack.c.bf16 %v4321, %v4320
        %v4352 = vpack.c.bf16 %v4323, %v4322
        %v4353 = vpack.c.bf16 %v4325, %v4324
        %v4354 = vpack.c.bf16 %v4327, %v4326
        %v4355 = vpack.c.bf16 %v4329, %v4328
        %v4356 = vpack.c.bf16 %v4331, %v4330
        %s4357 = scalar_lea.vmem %s6, 384
        %v4358 = vld [vmem:[%s4357] sm:$0xff]
        %v4359 = vld [vmem:[%s4357 + $0x8] sm:$0xff]
        %v4360 = vld [vmem:[%s4357 + $0x10] sm:$0xff]
        %v4361 = vld [vmem:[%s4357 + $0x18] sm:$0xff]
        %v4362 = vld [vmem:[%s4357 + $0x20] sm:$0xff]
        %v4363 = vld [vmem:[%s4357 + $0x28] sm:$0xff]
        %v4364 = vld [vmem:[%s4357 + $0x30] sm:$0xff]
        %v4365 = vld [vmem:[%s4357 + $0x38] sm:$0xff]
        %v4366 = vld [vmem:[%s4357 + $0x40] sm:$0xff]
        %v4367 = vld [vmem:[%s4357 + $0x48] sm:$0xff]
        %v4368 = vld [vmem:[%s4357 + $0x50] sm:$0xff]
        %v4369 = vld [vmem:[%s4357 + $0x58] sm:$0xff]
        %v4370 = vld [vmem:[%s4357 + $0x60] sm:$0xff]
        %v4371 = vld [vmem:[%s4357 + $0x68] sm:$0xff]
        %v4372 = vld [vmem:[%s4357 + $0x70] sm:$0xff]
        %v4373 = vld [vmem:[%s4357 + $0x78] sm:$0xff]
        %4375 = vset.pattern.permute.xlu0 0
        %4376 = vperm.xlu0 %4375, %v4358
        %v4377 = vpop.permute.xlu0 %4376
        %4380 = vset.pattern.permute.xlu0 0
        %4381 = vperm.xlu0 %4380, %v4359
        %v4382 = vpop.permute.xlu0 %4381
        %4385 = vset.pattern.permute.xlu0 0
        %4386 = vperm.xlu0 %4385, %v4360
        %v4387 = vpop.permute.xlu0 %4386
        %4390 = vset.pattern.permute.xlu0 0
        %4391 = vperm.xlu0 %4390, %v4361
        %v4392 = vpop.permute.xlu0 %4391
        %4395 = vset.pattern.permute.xlu0 0
        %4396 = vperm.xlu0 %4395, %v4362
        %v4397 = vpop.permute.xlu0 %4396
        %4400 = vset.pattern.permute.xlu0 0
        %4401 = vperm.xlu0 %4400, %v4363
        %v4402 = vpop.permute.xlu0 %4401
        %4405 = vset.pattern.permute.xlu0 0
        %4406 = vperm.xlu0 %4405, %v4364
        %v4407 = vpop.permute.xlu0 %4406
        %4410 = vset.pattern.permute.xlu0 0
        %4411 = vperm.xlu0 %4410, %v4365
        %v4412 = vpop.permute.xlu0 %4411
        %4415 = vset.pattern.permute.xlu0 0
        %4416 = vperm.xlu0 %4415, %v4366
        %v4417 = vpop.permute.xlu0 %4416
        %4420 = vset.pattern.permute.xlu0 0
        %4421 = vperm.xlu0 %4420, %v4367
        %v4422 = vpop.permute.xlu0 %4421
        %4425 = vset.pattern.permute.xlu0 0
        %4426 = vperm.xlu0 %4425, %v4368
        %v4427 = vpop.permute.xlu0 %4426
        %4430 = vset.pattern.permute.xlu0 0
        %4431 = vperm.xlu0 %4430, %v4369
        %v4432 = vpop.permute.xlu0 %4431
        %4435 = vset.pattern.permute.xlu0 0
        %4436 = vperm.xlu0 %4435, %v4370
        %v4437 = vpop.permute.xlu0 %4436
        %4440 = vset.pattern.permute.xlu0 0
        %4441 = vperm.xlu0 %4440, %v4371
        %v4442 = vpop.permute.xlu0 %4441
        %4445 = vset.pattern.permute.xlu0 0
        %4446 = vperm.xlu0 %4445, %v4372
        %v4447 = vpop.permute.xlu0 %4446
        %4450 = vset.pattern.permute.xlu0 0
        %4451 = vperm.xlu0 %4450, %v4373
        %v4452 = vpop.permute.xlu0 %4451
        %v4470 = vunpack.c.l.b16 %v4333
        %v4471 = vunpack.c.l.b16 %v4334
        %v4472 = vunpack.c.l.b16 %v4335
        %v4473 = vunpack.c.l.b16 %v4336
        %v4474 = vunpack.c.l.b16 %v4337
        %v4475 = vunpack.c.l.b16 %v4338
        %v4476 = vunpack.c.l.b16 %v4339
        %v4477 = vunpack.c.l.b16 %v4340
        %v4478 = vunpack.c.l.b16 %v4341
        %v4479 = vunpack.c.l.b16 %v4342
        %v4480 = vunpack.c.l.b16 %v4343
        %v4481 = vunpack.c.l.b16 %v4344
        %v4482 = vunpack.c.l.b16 %v4345
        %v4483 = vunpack.c.l.b16 %v4346
        %v4484 = vunpack.c.l.b16 %v4347
        %v4485 = vunpack.c.l.b16 %v4348
        %v4486 = vpack.c.b16 %v4471, %v4470
        %v4487 = vpack.c.b16 %v4473, %v4472
        %v4488 = vpack.c.b16 %v4475, %v4474
        %v4489 = vpack.c.b16 %v4477, %v4476
        %v4490 = vpack.c.b16 %v4479, %v4478
        %v4491 = vpack.c.b16 %v4481, %v4480
        %v4492 = vpack.c.b16 %v4483, %v4482
        %v4493 = vpack.c.b16 %v4485, %v4484
        %4502 = vmatprep.subr.bf16.mxu0 0
        %4503 = vmatpush1.bf16.msra.mxu0 %v4356
        %4504 = vmatprep.subr.bf16.mxu0 0
        %4505 = vmatpush1.bf16.msra.mxu0 %v4355
        %4506 = vmatprep.subr.bf16.mxu0 0
        %4507 = vmatpush1.bf16.msra.mxu0 %v4354
        %4508 = vmatprep.subr.bf16.mxu0 0
        %4509 = vmatpush1.bf16.msra.mxu0 %v4353
        %4510 = vmatprep.subr.bf16.mxu0 0
        %4511 = vmatpush1.bf16.msra.mxu0 %v4352
        %4512 = vmatprep.subr.bf16.mxu0 0
        %4513 = vmatpush1.bf16.msra.mxu0 %v4351
        %4514 = vmatprep.subr.bf16.mxu0 0
        %4515 = vmatpush1.bf16.msra.mxu0 %v4350
        %4516 = vmatprep.subr.bf16.mxu0 0
        %4517 = vmatpush1.bf16.msra.mxu0 %v4349
        %4518 = vmatprep.subr.bf16.mxu0 0
        %4519 = vmatpush2.bf16.msra.mxu0 0
        %4520 = vmatprep.subr.bf16.mxu0 0
        %4521 = vmatpush2.bf16.msra.mxu0 0
        %4522 = vmatprep.subr.bf16.mxu0 0
        %4523 = vmatpush2.bf16.msra.mxu0 0
        %4524 = vmatprep.subr.bf16.mxu0 0
        %4525 = vmatpush2.bf16.msra.mxu0 0
        %4526 = vmatprep.subr.bf16.mxu0 0
        %4527 = vmatpush2.bf16.msra.mxu0 0
        %4528 = vmatprep.subr.bf16.mxu0 0
        %4529 = vmatpush2.bf16.msra.mxu0 0
        %4530 = vmatprep.subr.bf16.mxu0 0
        %4531 = vmatpush2.bf16.msra.mxu0 0
        %4532 = vmatprep.subr.bf16.mxu0 0
        %4533 = vmatpush2.bf16.msra.mxu0 0
        %4534 = vmatprep.mubr.bf16.mxu0 0
        %4535 = vmatmul.mubr.bf16.gmra.mxu0 %v4486
        %v4536 = vpop.f32.mrf.mxu0
        %v4537 = vadd.f32 %v4377, %v4536
        %v4538 = vpop.f32.mrf.mxu0
        %v4539 = vpop.f32.mrf.mxu0
        %v4540 = vadd.f32 %v4382, %v4539
        %v4541 = vpop.f32.mrf.mxu0
        %4542 = vmatprep.mubr.bf16.mxu0 0
        %4543 = vmatmul.mubr.bf16.gmra.mxu0 %v4487
        %v4544 = vpop.f32.mrf.mxu0
        %v4545 = vadd.f32 %v4387, %v4544
        %v4546 = vpop.f32.mrf.mxu0
        %v4547 = vpop.f32.mrf.mxu0
        %v4548 = vadd.f32 %v4392, %v4547
        %v4549 = vpop.f32.mrf.mxu0
        %4550 = vmatprep.mubr.bf16.mxu0 0
        %4551 = vmatmul.mubr.bf16.gmra.mxu0 %v4488
        %v4552 = vpop.f32.mrf.mxu0
        %v4553 = vadd.f32 %v4397, %v4552
        %v4554 = vpop.f32.mrf.mxu0
        %v4555 = vpop.f32.mrf.mxu0
        %v4556 = vadd.f32 %v4402, %v4555
        %v4557 = vpop.f32.mrf.mxu0
        %4558 = vmatprep.mubr.bf16.mxu0 0
        %4559 = vmatmul.mubr.bf16.gmra.mxu0 %v4489
        %v4560 = vpop.f32.mrf.mxu0
        %v4561 = vadd.f32 %v4407, %v4560
        %v4562 = vpop.f32.mrf.mxu0
        %v4563 = vpop.f32.mrf.mxu0
        %v4564 = vadd.f32 %v4412, %v4563
        %v4565 = vpop.f32.mrf.mxu0
        %4566 = vmatprep.mubr.bf16.mxu0 0
        %4567 = vmatmul.mubr.bf16.gmra.mxu0 %v4490
        %v4568 = vpop.f32.mrf.mxu0
        %v4569 = vadd.f32 %v4417, %v4568
        %v4570 = vpop.f32.mrf.mxu0
        %v4571 = vpop.f32.mrf.mxu0
        %v4572 = vadd.f32 %v4422, %v4571
        %v4573 = vpop.f32.mrf.mxu0
        %4574 = vmatprep.mubr.bf16.mxu0 0
        %4575 = vmatmul.mubr.bf16.gmra.mxu0 %v4491
        %v4576 = vpop.f32.mrf.mxu0
        %v4577 = vadd.f32 %v4427, %v4576
        %v4578 = vpop.f32.mrf.mxu0
        %v4579 = vpop.f32.mrf.mxu0
        %v4580 = vadd.f32 %v4432, %v4579
        %v4581 = vpop.f32.mrf.mxu0
        %4582 = vmatprep.mubr.bf16.mxu0 0
        %4583 = vmatmul.mubr.bf16.gmra.mxu0 %v4492
        %v4584 = vpop.f32.mrf.mxu0
        %v4585 = vadd.f32 %v4437, %v4584
        %v4586 = vpop.f32.mrf.mxu0
        %v4587 = vpop.f32.mrf.mxu0
        %v4588 = vadd.f32 %v4442, %v4587
        %v4589 = vpop.f32.mrf.mxu0
        %4590 = vmatprep.mubr.bf16.mxu0 0
        %4591 = vmatmul.mubr.bf16.gmra.mxu0 %v4493
        %v4592 = vpop.f32.mrf.mxu0
        %v4593 = vadd.f32 %v4447, %v4592
        %v4594 = vpop.f32.mrf.mxu0
        %v4595 = vpop.f32.mrf.mxu0
        %v4596 = vadd.f32 %v4452, %v4595
        %v4597 = vpop.f32.mrf.mxu0
        %4598 = vdwg.mxu0
        %v4599 = vmax.f32 %v4537, 0.0
        %v4600 = vmax.f32 %v4540, 0.0
        %v4601 = vmax.f32 %v4545, 0.0
        %v4602 = vmax.f32 %v4548, 0.0
        %v4603 = vmax.f32 %v4553, 0.0
        %v4604 = vmax.f32 %v4556, 0.0
        %v4605 = vmax.f32 %v4561, 0.0
        %v4606 = vmax.f32 %v4564, 0.0
        %v4607 = vmax.f32 %v4569, 0.0
        %v4608 = vmax.f32 %v4572, 0.0
        %v4609 = vmax.f32 %v4577, 0.0
        %v4610 = vmax.f32 %v4580, 0.0
        %v4611 = vmax.f32 %v4585, 0.0
        %v4612 = vmax.f32 %v4588, 0.0
        %v4613 = vmax.f32 %v4593, 0.0
        %v4614 = vmax.f32 %v4596, 0.0
        %v4615 = vadd.f32 %v4599, %v3530
        %v4616 = vadd.f32 %v4600, %v3531
        %v4617 = vadd.f32 %v4601, %v3532
        %v4618 = vadd.f32 %v4602, %v3533
        %v4619 = vadd.f32 %v4603, %v3534
        %v4620 = vadd.f32 %v4604, %v3535
        %v4621 = vadd.f32 %v4605, %v3536
        %v4622 = vadd.f32 %v4606, %v3537
        %v4623 = vadd.f32 %v4607, %v3538
        %v4624 = vadd.f32 %v4608, %v3539
        %v4625 = vadd.f32 %v4609, %v3540
        %v4626 = vadd.f32 %v4610, %v3541
        %v4627 = vadd.f32 %v4611, %v3542
        %v4628 = vadd.f32 %v4612, %v3543
        %v4629 = vadd.f32 %v4613, %v3544
        %v4630 = vadd.f32 %v4614, %v3545
        %4631 = vst [vmem:[%s271] sm:$0xff] %v4615
        %4632 = vst [vmem:[%s271 + $0x8] sm:$0xff] %v4616
        %4633 = vst [vmem:[%s271 + $0x10] sm:$0xff] %v4617
        %4634 = vst [vmem:[%s271 + $0x18] sm:$0xff] %v4618
        %4635 = vst [vmem:[%s271 + $0x20] sm:$0xff] %v4619
        %4636 = vst [vmem:[%s271 + $0x28] sm:$0xff] %v4620
        %4637 = vst [vmem:[%s271 + $0x30] sm:$0xff] %v4621
        %4638 = vst [vmem:[%s271 + $0x38] sm:$0xff] %v4622
        %4639 = vst [vmem:[%s271 + $0x40] sm:$0xff] %v4623
        %4640 = vst [vmem:[%s271 + $0x48] sm:$0xff] %v4624
        %4641 = vst [vmem:[%s271 + $0x50] sm:$0xff] %v4625
        %4642 = vst [vmem:[%s271 + $0x58] sm:$0xff] %v4626
        %4643 = vst [vmem:[%s271 + $0x60] sm:$0xff] %v4627
        %4644 = vst [vmem:[%s271 + $0x68] sm:$0xff] %v4628
        %4645 = vst [vmem:[%s271 + $0x70] sm:$0xff] %v4629
        %4646 = vst [vmem:[%s271 + $0x78] sm:$0xff] %v4630
        %s4647 = sand.u32 %s181, 1
        %s4648 = scalar_lea.sflag [#allocation3], %s4647
        %s4649 = sand.u32 %s181, 1
        %s4650 = smul.addr %s4649, 128
        %s4651 = scalar_lea.vmem [#allocation2], %s4650
        // Predicated region
        $region49: #{tpu_custom_call.1} parent=47 // pred_check
          %p4652 = pneg %p191
        $region50: #{tpu_custom_call.1} parent=47 // pred_check_branch
          %4654 = sbr.rel (%p4652) target = $region52
        $region51: #{tpu_custom_call.1} parent=47 // pred_region
          %s4656 = ssub.s32 2048, 2048
          %4657 = vsyncadd %s4648, %s4656
          %s4658 = smul.addr %s21, 16
          %s4659 = smul.addr %s4658, 128
          %s4660 = scalar_lea.hbm %s7, %s4659
          %s4661 = sshll.u32 %s4651, 4
          %s4662 = int_to_ptr.vmem [resolvable:$true] %s4661
          %4667 = dma.vmem_to_hbm [thread:$0]  %s4662, 2048, %s4660, %s4648, 128, 128, 8
        $region52: #{tpu_custom_call.1} parent=47 // pred_fallthru
          _
      $region48: #{tpu_custom_call.1} parent=5 // pred_fallthru
        _
      %p4668 = scmp.le.s32.totalorder 2, %s16
      // Predicated region
      $region53: #{tpu_custom_call.1} parent=5 // pred_check
        %p4669 = pneg %p4668
      $region54: #{tpu_custom_call.1} parent=5 // pred_check_branch
        %4671 = sbr.rel (%p4669) target = $region56
      $region55: #{tpu_custom_call.1} parent=5 // pred_region
        %s4672 = ssub.s32 %s16, 2
        // Predicated region
        $region57: #{tpu_custom_call.1} parent=55 // pred_check
          %p4673 = pneg %p197
        $region58: #{tpu_custom_call.1} parent=55 // pred_check_branch
          %4675 = sbr.rel (%p4673) target = $region60
        $region59: #{tpu_custom_call.1} parent=55 // pred_region
          %s4676 = sand.u32 %s182, 1
          %s4677 = scalar_lea.sflag [#allocation3], %s4676
          %s4678 = sand.u32 %s182, 1
          %s4679 = smul.addr %s4678, 128
          %s4680 = scalar_lea.vmem [#allocation2], %s4679
          %4681 = dma.done %s4677, 2048
        $region60: #{tpu_custom_call.1} parent=55 // pred_fallthru
          _
      $region56: #{tpu_custom_call.1} parent=5 // pred_fallthru
        _
    $region6: #{tpu_custom_call.1} parent=1 // loop_footer
      %s20 = sadd.s32 1, %s16
    $region7: #{tpu_custom_call.1} parent=1 // loop_footer_branch
      %15 = sbr.rel target = $region3
    $region8: #{tpu_custom_call.1} parent=1 // loop_exit
      _
    %4682 = vsyncpa [#allocation3], 1
    %s4683 = scalar_lea.sflag [#allocation3], 1
    %4684 = vsyncpa %s4683, 1

</llo_original>
